<compile_context>
chip_gen: v7x
topology: tpu7x:2x2x1
jax: 0.10.0
libtpu: 0.0.40
codegen_flags: <defaults>
</compile_context>

<pallas_src>
import functools

import jax
import jax.numpy as jnp
import numpy as np
from jax.experimental import pallas as pl
from jax.experimental.pallas import tpu as pltpu


# ---------------------------------------------------------------------------
# Fused Pallas kernel: whole bottleneck + shortcut + ReLU for one image.
# ---------------------------------------------------------------------------
def _resblock_kernel(x_ref, w1_ref, b1_ref, w2_ref, b2_ref, w3_ref, b3_ref,
                     *rest, strides, paddings, change_channels, has_p2_scratch):
    i = 0
    if change_channels:
        wsc_ref, bsc_ref = rest[i], rest[i + 1]
        i += 2
    o_ref = rest[i]
    h1p_ref = rest[i + 1]
    h2p_ref = rest[i + 2] if has_p2_scratch else None

    s0, s1, s2 = strides
    p0, p1, p2 = paddings

    x = x_ref[0]                                   # (Hp0, Wp0, Cin) bf16
    Hp0, Wp0, cin = x.shape
    H0, W0 = Hp0 - 2 * p0, Wp0 - 2 * p0            # un-padded input spatial dims
    cmid = w1_ref.shape[1]
    cout = w3_ref.shape[1]

    # ---- stage 1: 1x1 conv (stride s0) + folded-BN shift + ReLU -------------
    x1 = x[::s0, ::s0, :] if s0 > 1 else x
    H1, W1 = x1.shape[0], x1.shape[1]
    h1 = jnp.dot(x1.reshape(H1 * W1, cin), w1_ref[...],
                 preferred_element_type=jnp.float32)
    h1 = jnp.maximum(h1 + b1_ref[...], 0.0)        # f32 (H1*W1, cmid)

    # ---- stage 2: 3x3 conv (stride s1, pad p1) as 9 shifted-tap matmuls -----
    if p1 > 0:
        h1p_ref[...] = jnp.zeros(h1p_ref.shape, h1p_ref.dtype)
    h1p_ref[p1:p1 + H1, p1:p1 + W1, :] = h1.reshape(H1, W1, cmid)
    Hq, Wq = H1 + 2 * p1, W1 + 2 * p1
    H2 = (Hq - 3) // s1 + 1
    W2 = (Wq - 3) // s1 + 1
    acc2 = jnp.zeros((H2 * W2, cmid), jnp.float32)
    for kh in range(3):
        for kw in range(3):
            tap = h1p_ref[kh:kh + (H2 - 1) * s1 + 1, kw:kw + (W2 - 1) * s1 + 1, :]
            if s1 > 1:
                tap = tap[::s1, ::s1, :]
            tap2 = tap.reshape(H2 * W2, cmid).astype(jnp.bfloat16)
            acc2 = acc2 + jnp.dot(tap2, w2_ref[kh * 3 + kw],
                                  preferred_element_type=jnp.float32)
    h2 = jnp.maximum(acc2 + b2_ref[...], 0.0)      # f32 (H2*W2, cmid)

    # ---- stage 3: 1x1 conv (stride s2, pad p2) + folded-BN shift ------------
    if p2 > 0 or s2 > 1:
        h2_3 = h2.reshape(H2, W2, cmid)
        if p2 > 0:
            h2p_ref[...] = jnp.zeros(h2p_ref.shape, h2p_ref.dtype)
            h2p_ref[p2:p2 + H2, p2:p2 + W2, :] = h2_3
            h2_3 = h2p_ref[...]
        if s2 > 1:
            h2_3 = h2_3[::s2, ::s2, :]
        H3, W3 = h2_3.shape[0], h2_3.shape[1]
        h2m = h2_3.reshape(H3 * W3, cmid)
    else:
        H3, W3 = H2, W2
        h2m = h2
    out = jnp.dot(h2m.astype(jnp.bfloat16), w3_ref[...],
                  preferred_element_type=jnp.float32) + b3_ref[...]

    # ---- shortcut ------------------------------------------------------------
    xs = x[p0:p0 + H0, p0:p0 + W0, :] if p0 > 0 else x   # original (unpadded) x
    if change_channels:
        if s1 > 1:
            xs = xs[::s1, ::s1, :]
        Hs, Ws = xs.shape[0], xs.shape[1]
        sc = jnp.dot(xs.reshape(Hs * Ws, cin), wsc_ref[...],
                     preferred_element_type=jnp.float32) + bsc_ref[...]
    else:
        # identity shortcut: requires cin == cout and matching spatial dims
        sc = xs.reshape(H0 * W0, cin).astype(jnp.float32)

    # ---- residual add + final ReLU -------------------------------------------
    out = jnp.maximum(out + sc, 0.0)
    o_ref[0] = out.reshape(H3, W3, cout).astype(o_ref.dtype)


# ---------------------------------------------------------------------------
# Parameter / BN folding helpers
# ---------------------------------------------------------------------------
def _bn_fold(gamma, beta, mean, var, eps=1e-5):
    scale = gamma / jnp.sqrt(var + eps)
    shift = beta - mean * scale
    return scale, shift


# ---------------------------------------------------------------------------
# ResBlock
# ---------------------------------------------------------------------------
class ResBlockPallas:
    def __init__(self, in_channels, out_channels, strides, paddings,
                 change_channels=False, key=None):
        self.strides = tuple(strides)
        self.paddings = tuple(paddings)
        self.change_channels = change_channels
        cin, cmid, cout = in_channels, out_channels, out_channels * 4
        if key is None:
            key = jax.random.PRNGKey(42)
        ks = jax.random.split(key, 8)

        def bn_params(k, c):
            k1, k2, k3, k4 = jax.random.split(k, 4)
            gamma = 0.5 + jax.random.uniform(k1, (c,), jnp.float32)
            beta = 0.1 * jax.random.normal(k2, (c,), jnp.float32)
            mean = 0.1 * jax.random.normal(k3, (c,), jnp.float32)
            var = 0.5 + jax.random.uniform(k4, (c,), jnp.float32)
            return gamma, beta, mean, var

        # Raw f32 parameters (kept for the pure-JAX reference).
        self.w1 = 0.1 * jax.random.normal(ks[0], (cin, cmid), jnp.float32)        # 1x1
        self.w2_hwio = 0.1 * jax.random.normal(ks[1], (3, 3, cmid, cmid), jnp.float32)
        self.w3 = 0.1 * jax.random.normal(ks[2], (cmid, cout), jnp.float32)       # 1x1
        self.bn1 = bn_params(ks[3], cmid)
        self.bn2 = bn_params(ks[4], cmid)
        self.bn3 = bn_params(ks[5], cout)

        # Fold BN scale into the conv weights (bf16 for the MXU); keep only the
        # per-channel shift (f32) as an in-kernel bias add.
        s1_, b1_ = _bn_fold(*self.bn1)
        s2_, b2_ = _bn_fold(*self.bn2)
        s3_, b3_ = _bn_fold(*self.bn3)
        self.w1f = (self.w1 * s1_[None, :]).astype(jnp.bfloat16)
        self.w2f = (self.w2_hwio * s2_).reshape(9, cmid, cmid).astype(jnp.bfloat16)
        self.w3f = (self.w3 * s3_[None, :]).astype(jnp.bfloat16)
        self.b1f = b1_.reshape(1, cmid)
        self.b2f = b2_.reshape(1, cmid)
        self.b3f = b3_.reshape(1, cout)
        if change_channels:
            self.wsc = 0.1 * jax.random.normal(ks[6], (cin, cout), jnp.float32)   # 1x1
            self.bnsc = bn_params(ks[7], cout)
            ssc_, bsc_ = _bn_fold(*self.bnsc)
            self.wscf = (self.wsc * ssc_[None, :]).astype(jnp.bfloat16)
            self.bscf = bsc_.reshape(1, cout)

    def __call__(self, x_nchw):
        s0, s1, s2 = self.strides
        p0, p1, p2 = self.paddings
        x = jnp.transpose(x_nchw, (0, 2, 3, 1)).astype(jnp.bfloat16)   # NHWC bf16
        if p0 > 0:                       # pre-pad for the first 1x1 conv (no-op here)
            x = jnp.pad(x, ((0, 0), (p0, p0), (p0, p0), (0, 0)))
        N, Hp0, Wp0, cin = x.shape
        cmid = self.w1f.shape[1]
        cout = self.w3f.shape[1]

        # Static shape arithmetic (mirrors the in-kernel slicing).
        H1 = (Hp0 - 1) // s0 + 1
        W1 = (Wp0 - 1) // s0 + 1
        Hq, Wq = H1 + 2 * p1, W1 + 2 * p1
        H2 = (Hq - 3) // s1 + 1
        W2 = (Wq - 3) // s1 + 1
        Hr, Wr = H2 + 2 * p2, W2 + 2 * p2
        H3 = (Hr - 1) // s2 + 1
        W3 = (Wr - 1) // s2 + 1

        kernel = functools.partial(
            _resblock_kernel, strides=self.strides, paddings=self.paddings,
            change_channels=self.change_channels, has_p2_scratch=(p2 > 0))

        in_specs = [
            pl.BlockSpec((1, Hp0, Wp0, cin), lambda b: (b, 0, 0, 0)),   # x (per image)
            pl.BlockSpec((cin, cmid), lambda b: (0, 0)),                # w1 (BN folded)
            pl.BlockSpec((1, cmid), lambda b: (0, 0)),                  # shift1
            pl.BlockSpec((9, cmid, cmid), lambda b: (0, 0, 0)),         # w2 taps
            pl.BlockSpec((1, cmid), lambda b: (0, 0)),                  # shift2
            pl.BlockSpec((cmid, cout), lambda b: (0, 0)),               # w3
            pl.BlockSpec((1, cout), lambda b: (0, 0)),                  # shift3
        ]
        args = [x, self.w1f, self.b1f, self.w2f, self.b2f, self.w3f, self.b3f]
        if self.change_channels:
            in_specs += [pl.BlockSpec((cin, cout), lambda b: (0, 0)),   # shortcut w
                         pl.BlockSpec((1, cout), lambda b: (0, 0))]     # shortcut shift
            args += [self.wscf, self.bscf]

        scratch_shapes = [pltpu.VMEM((Hq, Wq, cmid), jnp.float32)]      # padded h1
        if p2 > 0:
            scratch_shapes.append(pltpu.VMEM((Hr, Wr, cmid), jnp.float32))

        out = pl.pallas_call(
            kernel,
            out_shape=jax.ShapeDtypeStruct((N, H3, W3, cout), jnp.float32),
            grid_spec=pltpu.PrefetchScalarGridSpec(
                num_scalar_prefetch=0,
                grid=(N,),
                in_specs=in_specs,
                out_specs=pl.BlockSpec((1, H3, W3, cout), lambda b: (b, 0, 0, 0)),
                scratch_shapes=scratch_shapes),
            compiler_params=pltpu.CompilerParams(
                dimension_semantics=("parallel",)),
        )(*args)
        return jnp.transpose(out, (0, 3, 1, 2))    # back to NCHW


# ---------------------------------------------------------------------------
# Pure-JAX reference (lax conv + explicit eval-mode BN, all f32) for checking
# ---------------------------------------------------------------------------
def _ref_forward(block, x_nchw):
    def conv(x, w_hwio, stride, padding):
        return jax.lax.conv_general_dilated(
            x, w_hwio, (stride, stride), [(padding, padding)] * 2,
            dimension_numbers=("NHWC", "HWIO", "NHWC"))

    def bn(x, params, eps=1e-5):
        gamma, beta, mean, var = params
        return (x - mean) / jnp.sqrt(var + eps) * gamma + beta

    x = jnp.transpose(x_nchw, (0, 2, 3, 1)).astype(jnp.float32)
    s0, s1, s2 = block.strides
    p0, p1, p2 = block.paddings
    cin, cmid = block.w1.shape
    h = jax.nn.relu(bn(conv(x, block.w1.reshape(1, 1, cin, cmid), s0, p0), block.bn1))
    h = jax.nn.relu(bn(conv(h, block.w2_hwio, s1, p1), block.bn2))
    h = bn(conv(h, block.w3.reshape(1, 1, cmid, -1), s2, p2), block.bn3)
    if block.change_channels:
        sc = bn(conv(x, block.wsc.reshape(1, 1, cin, -1), s1, 0), block.bnsc)
    else:
        sc = x
    out = jax.nn.relu(h + sc)
    return jnp.transpose(out, (0, 3, 1, 2))


# ---------------------------------------------------------------------------
if __name__ == "__main__":
    # ResBlock(in_channels=4, out_channels=8, strides=(1,1,1), paddings=(0,1,0),
    #          change_channels=True)  -> output (2, 32, 16, 16)
    block = ResBlockPallas(in_channels=4, out_channels=8,
                           strides=(1, 1, 1), paddings=(0, 1, 0),
                           change_channels=True,
                           key=jax.random.PRNGKey(42))

    x = jax.random.normal(jax.random.PRNGKey(0), (2, 4, 16, 16), jnp.float32)

    out = jax.block_until_ready(block(x))
    ref = jax.block_until_ready(_ref_forward(block, x))

    # bf16 weights/activations on the MXU (f32 accumulate) -> relaxed tolerance
    np.testing.assert_allclose(np.asarray(out), np.asarray(ref),
                               rtol=3e-2, atol=3e-2)
    assert out.shape == (2, 32, 16, 16)
    print("KERNEL_OK")
</pallas_src>

<mosaic_0001>
module attributes {stable_mosaic.version = 11 : i64} {
  func.func @_resblock_kernel(%arg0: i32, %arg1: memref<1x16x16x4xbf16, #tpu.memory_space<vmem>>, %arg2: memref<4x8xbf16, #tpu.memory_space<vmem>>, %arg3: memref<1x8xf32, #tpu.memory_space<vmem>>, %arg4: memref<9x8x8xbf16, #tpu.memory_space<vmem>>, %arg5: memref<1x8xf32, #tpu.memory_space<vmem>>, %arg6: memref<8x32xbf16, #tpu.memory_space<vmem>>, %arg7: memref<1x32xf32, #tpu.memory_space<vmem>>, %arg8: memref<4x32xbf16, #tpu.memory_space<vmem>>, %arg9: memref<1x32xf32, #tpu.memory_space<vmem>>, %arg10: memref<1x16x16x32xf32, #tpu.memory_space<vmem>>, %arg11: memref<18x18x8xf32, #tpu.memory_space<vmem>>) attributes {dimension_semantics = [#tpu.dimension_semantics<parallel>], iteration_bounds = array<i64: 2>, scalar_prefetch = 0 : i64, scratch_operands = 1 : i64, tpu.core_type = #tpu.core_type<tc>, window_params = [{transform_indices = @transform_0, window_bounds = array<i64: 1, 16, 16, 4>}, {pipeline_mode = #tpu.pipeline_mode<synchronous>, transform_indices = @transform_1, window_bounds = array<i64: 4, 8>}, {pipeline_mode = #tpu.pipeline_mode<synchronous>, transform_indices = @transform_2, window_bounds = array<i64: 1, 8>}, {pipeline_mode = #tpu.pipeline_mode<synchronous>, transform_indices = @transform_3, window_bounds = array<i64: 9, 8, 8>}, {pipeline_mode = #tpu.pipeline_mode<synchronous>, transform_indices = @transform_4, window_bounds = array<i64: 1, 8>}, {pipeline_mode = #tpu.pipeline_mode<synchronous>, transform_indices = @transform_5, window_bounds = array<i64: 8, 32>}, {pipeline_mode = #tpu.pipeline_mode<synchronous>, transform_indices = @transform_6, window_bounds = array<i64: 1, 32>}, {pipeline_mode = #tpu.pipeline_mode<synchronous>, transform_indices = @transform_7, window_bounds = array<i64: 4, 32>}, {pipeline_mode = #tpu.pipeline_mode<synchronous>, transform_indices = @transform_8, window_bounds = array<i64: 1, 32>}, {transform_indices = @transform_9, window_bounds = array<i64: 1, 16, 16, 32>}]} {
    %c0 = arith.constant 0 : index
    %c0_0 = arith.constant 0 : index
    %c0_1 = arith.constant 0 : index
    %c0_2 = arith.constant 0 : index
    %0 = vector.load %arg1[%c0, %c0_0, %c0_1, %c0_2] : memref<1x16x16x4xbf16, #tpu.memory_space<vmem>>, vector<1x16x16x4xbf16>
    %1 = vector.shape_cast %0 : vector<1x16x16x4xbf16> to vector<16x16x4xbf16>
    %2 = vector.shape_cast %1 : vector<16x16x4xbf16> to vector<256x4xbf16>
    %c0_3 = arith.constant 0 : index
    %c0_4 = arith.constant 0 : index
    %3 = vector.load %arg2[%c0_3, %c0_4] : memref<4x8xbf16, #tpu.memory_space<vmem>>, vector<4x8xbf16>
    %cst = arith.constant dense<0.000000e+00> : vector<256x8xf32>
    %4 = tpu.matmul %2, %3, %cst {dimension_numbers = #tpu.dot_dimension_numbers<[1], [0], [0], [1], [0, 0, 1, 1], [], []>} : vector<256x4xbf16>, vector<4x8xbf16>, vector<256x8xf32> -> vector<256x8xf32>
    %c0_5 = arith.constant 0 : index
    %c0_6 = arith.constant 0 : index
    %5 = vector.load %arg3[%c0_5, %c0_6] : memref<1x8xf32, #tpu.memory_space<vmem>>, vector<1x8xf32>
    %6 = vector.broadcast %5 : vector<1x8xf32> to vector<256x8xf32>
    %7 = arith.addf %4, %6 : vector<256x8xf32>
    %cst_7 = arith.constant 0.000000e+00 : f32
    %8 = vector.broadcast %cst_7 : f32 to vector<256x8xf32>
    %9 = arith.maximumf %7, %8 : vector<256x8xf32>
    %cst_8 = arith.constant 0.000000e+00 : f32
    %10 = vector.broadcast %cst_8 : f32 to vector<18x18x8xf32>
    %c0_9 = arith.constant 0 : index
    %c0_10 = arith.constant 0 : index
    %c0_11 = arith.constant 0 : index
    %11 = vector.load %arg11[%c0_9, %c0_10, %c0_11] : memref<18x18x8xf32, #tpu.memory_space<vmem>>, vector<18x18x8xf32>
    tpu.vector_store %arg11[%c0_9, %c0_10, %c0_11], %10 {strides = array<i32>} : memref<18x18x8xf32, #tpu.memory_space<vmem>>, vector<18x18x8xf32>,
    %12 = vector.shape_cast %9 : vector<256x8xf32> to vector<16x16x8xf32>
    %c1 = arith.constant 1 : index
    %c1_12 = arith.constant 1 : index
    %c0_13 = arith.constant 0 : index
    %13 = vector.load %arg11[%c1, %c1_12, %c0_13] : memref<18x18x8xf32, #tpu.memory_space<vmem>>, vector<16x16x8xf32>
    tpu.vector_store %arg11[%c1, %c1_12, %c0_13], %12 {strides = array<i32>} : memref<18x18x8xf32, #tpu.memory_space<vmem>>, vector<16x16x8xf32>,
    %cst_14 = arith.constant 0.000000e+00 : f32
    %14 = vector.broadcast %cst_14 : f32 to vector<256x8xf32>
    %c0_15 = arith.constant 0 : index
    %c0_16 = arith.constant 0 : index
    %c0_17 = arith.constant 0 : index
    %15 = vector.load %arg11[%c0_15, %c0_16, %c0_17] : memref<18x18x8xf32, #tpu.memory_space<vmem>>, vector<16x16x8xf32>
    %16 = vector.shape_cast %15 : vector<16x16x8xf32> to vector<256x8xf32>
    %17 = arith.truncf %16 : vector<256x8xf32> to vector<256x8xbf16>
    %c0_18 = arith.constant 0 : index
    %c0_19 = arith.constant 0 : index
    %c0_20 = arith.constant 0 : index
    %18 = vector.load %arg4[%c0_18, %c0_19, %c0_20] : memref<9x8x8xbf16, #tpu.memory_space<vmem>>, vector<1x8x8xbf16>
    %19 = vector.shape_cast %18 : vector<1x8x8xbf16> to vector<8x8xbf16>
    %cst_21 = arith.constant dense<0.000000e+00> : vector<256x8xf32>
    %20 = tpu.matmul %17, %19, %cst_21 {dimension_numbers = #tpu.dot_dimension_numbers<[1], [0], [0], [1], [0, 0, 1, 1], [], []>} : vector<256x8xbf16>, vector<8x8xbf16>, vector<256x8xf32> -> vector<256x8xf32>
    %21 = arith.addf %14, %20 : vector<256x8xf32>
    %c0_22 = arith.constant 0 : index
    %c1_23 = arith.constant 1 : index
    %c0_24 = arith.constant 0 : index
    %22 = vector.load %arg11[%c0_22, %c1_23, %c0_24] : memref<18x18x8xf32, #tpu.memory_space<vmem>>, vector<16x16x8xf32>
    %23 = vector.shape_cast %22 : vector<16x16x8xf32> to vector<256x8xf32>
    %24 = arith.truncf %23 : vector<256x8xf32> to vector<256x8xbf16>
    %c1_25 = arith.constant 1 : index
    %c0_26 = arith.constant 0 : index
    %c0_27 = arith.constant 0 : index
    %25 = vector.load %arg4[%c1_25, %c0_26, %c0_27] : memref<9x8x8xbf16, #tpu.memory_space<vmem>>, vector<1x8x8xbf16>
    %26 = vector.shape_cast %25 : vector<1x8x8xbf16> to vector<8x8xbf16>
    %cst_28 = arith.constant dense<0.000000e+00> : vector<256x8xf32>
    %27 = tpu.matmul %24, %26, %cst_28 {dimension_numbers = #tpu.dot_dimension_numbers<[1], [0], [0], [1], [0, 0, 1, 1], [], []>} : vector<256x8xbf16>, vector<8x8xbf16>, vector<256x8xf32> -> vector<256x8xf32>
    %28 = arith.addf %21, %27 : vector<256x8xf32>
    %c0_29 = arith.constant 0 : index
    %c2 = arith.constant 2 : index
    %c0_30 = arith.constant 0 : index
    %29 = vector.load %arg11[%c0_29, %c2, %c0_30] : memref<18x18x8xf32, #tpu.memory_space<vmem>>, vector<16x16x8xf32>
    %30 = vector.shape_cast %29 : vector<16x16x8xf32> to vector<256x8xf32>
    %31 = arith.truncf %30 : vector<256x8xf32> to vector<256x8xbf16>
    %c2_31 = arith.constant 2 : index
    %c0_32 = arith.constant 0 : index
    %c0_33 = arith.constant 0 : index
    %32 = vector.load %arg4[%c2_31, %c0_32, %c0_33] : memref<9x8x8xbf16, #tpu.memory_space<vmem>>, vector<1x8x8xbf16>
    %33 = vector.shape_cast %32 : vector<1x8x8xbf16> to vector<8x8xbf16>
    %cst_34 = arith.constant dense<0.000000e+00> : vector<256x8xf32>
    %34 = tpu.matmul %31, %33, %cst_34 {dimension_numbers = #tpu.dot_dimension_numbers<[1], [0], [0], [1], [0, 0, 1, 1], [], []>} : vector<256x8xbf16>, vector<8x8xbf16>, vector<256x8xf32> -> vector<256x8xf32>
    %35 = arith.addf %28, %34 : vector<256x8xf32>
    %c1_35 = arith.constant 1 : index
    %c0_36 = arith.constant 0 : index
    %c0_37 = arith.constant 0 : index
    %36 = vector.load %arg11[%c1_35, %c0_36, %c0_37] : memref<18x18x8xf32, #tpu.memory_space<vmem>>, vector<16x16x8xf32>
    %37 = vector.shape_cast %36 : vector<16x16x8xf32> to vector<256x8xf32>
    %38 = arith.truncf %37 : vector<256x8xf32> to vector<256x8xbf16>
    %c3 = arith.constant 3 : index
    %c0_38 = arith.constant 0 : index
    %c0_39 = arith.constant 0 : index
    %39 = vector.load %arg4[%c3, %c0_38, %c0_39] : memref<9x8x8xbf16, #tpu.memory_space<vmem>>, vector<1x8x8xbf16>
    %40 = vector.shape_cast %39 : vector<1x8x8xbf16> to vector<8x8xbf16>
    %cst_40 = arith.constant dense<0.000000e+00> : vector<256x8xf32>
    %41 = tpu.matmul %38, %40, %cst_40 {dimension_numbers = #tpu.dot_dimension_numbers<[1], [0], [0], [1], [0, 0, 1, 1], [], []>} : vector<256x8xbf16>, vector<8x8xbf16>, vector<256x8xf32> -> vector<256x8xf32>
    %42 = arith.addf %35, %41 : vector<256x8xf32>
    %c1_41 = arith.constant 1 : index
    %c1_42 = arith.constant 1 : index
    %c0_43 = arith.constant 0 : index
    %43 = vector.load %arg11[%c1_41, %c1_42, %c0_43] : memref<18x18x8xf32, #tpu.memory_space<vmem>>, vector<16x16x8xf32>
    %44 = vector.shape_cast %43 : vector<16x16x8xf32> to vector<256x8xf32>
    %45 = arith.truncf %44 : vector<256x8xf32> to vector<256x8xbf16>
    %c4 = arith.constant 4 : index
    %c0_44 = arith.constant 0 : index
    %c0_45 = arith.constant 0 : index
    %46 = vector.load %arg4[%c4, %c0_44, %c0_45] : memref<9x8x8xbf16, #tpu.memory_space<vmem>>, vector<1x8x8xbf16>
    %47 = vector.shape_cast %46 : vector<1x8x8xbf16> to vector<8x8xbf16>
    %cst_46 = arith.constant dense<0.000000e+00> : vector<256x8xf32>
    %48 = tpu.matmul %45, %47, %cst_46 {dimension_numbers = #tpu.dot_dimension_numbers<[1], [0], [0], [1], [0, 0, 1, 1], [], []>} : vector<256x8xbf16>, vector<8x8xbf16>, vector<256x8xf32> -> vector<256x8xf32>
    %49 = arith.addf %42, %48 : vector<256x8xf32>
    %c1_47 = arith.constant 1 : index
    %c2_48 = arith.constant 2 : index
    %c0_49 = arith.constant 0 : index
    %50 = vector.load %arg11[%c1_47, %c2_48, %c0_49] : memref<18x18x8xf32, #tpu.memory_space<vmem>>, vector<16x16x8xf32>
    %51 = vector.shape_cast %50 : vector<16x16x8xf32> to vector<256x8xf32>
    %52 = arith.truncf %51 : vector<256x8xf32> to vector<256x8xbf16>
    %c5 = arith.constant 5 : index
    %c0_50 = arith.constant 0 : index
    %c0_51 = arith.constant 0 : index
    %53 = vector.load %arg4[%c5, %c0_50, %c0_51] : memref<9x8x8xbf16, #tpu.memory_space<vmem>>, vector<1x8x8xbf16>
    %54 = vector.shape_cast %53 : vector<1x8x8xbf16> to vector<8x8xbf16>
    %cst_52 = arith.constant dense<0.000000e+00> : vector<256x8xf32>
    %55 = tpu.matmul %52, %54, %cst_52 {dimension_numbers = #tpu.dot_dimension_numbers<[1], [0], [0], [1], [0, 0, 1, 1], [], []>} : vector<256x8xbf16>, vector<8x8xbf16>, vector<256x8xf32> -> vector<256x8xf32>
    %56 = arith.addf %49, %55 : vector<256x8xf32>
    %c2_53 = arith.constant 2 : index
    %c0_54 = arith.constant 0 : index
    %c0_55 = arith.constant 0 : index
    %57 = vector.load %arg11[%c2_53, %c0_54, %c0_55] : memref<18x18x8xf32, #tpu.memory_space<vmem>>, vector<16x16x8xf32>
    %58 = vector.shape_cast %57 : vector<16x16x8xf32> to vector<256x8xf32>
    %59 = arith.truncf %58 : vector<256x8xf32> to vector<256x8xbf16>
    %c6 = arith.constant 6 : index
    %c0_56 = arith.constant 0 : index
    %c0_57 = arith.constant 0 : index
    %60 = vector.load %arg4[%c6, %c0_56, %c0_57] : memref<9x8x8xbf16, #tpu.memory_space<vmem>>, vector<1x8x8xbf16>
    %61 = vector.shape_cast %60 : vector<1x8x8xbf16> to vector<8x8xbf16>
    %cst_58 = arith.constant dense<0.000000e+00> : vector<256x8xf32>
    %62 = tpu.matmul %59, %61, %cst_58 {dimension_numbers = #tpu.dot_dimension_numbers<[1], [0], [0], [1], [0, 0, 1, 1], [], []>} : vector<256x8xbf16>, vector<8x8xbf16>, vector<256x8xf32> -> vector<256x8xf32>
    %63 = arith.addf %56, %62 : vector<256x8xf32>
    %c2_59 = arith.constant 2 : index
    %c1_60 = arith.constant 1 : index
    %c0_61 = arith.constant 0 : index
    %64 = vector.load %arg11[%c2_59, %c1_60, %c0_61] : memref<18x18x8xf32, #tpu.memory_space<vmem>>, vector<16x16x8xf32>
    %65 = vector.shape_cast %64 : vector<16x16x8xf32> to vector<256x8xf32>
    %66 = arith.truncf %65 : vector<256x8xf32> to vector<256x8xbf16>
    %c7 = arith.constant 7 : index
    %c0_62 = arith.constant 0 : index
    %c0_63 = arith.constant 0 : index
    %67 = vector.load %arg4[%c7, %c0_62, %c0_63] : memref<9x8x8xbf16, #tpu.memory_space<vmem>>, vector<1x8x8xbf16>
    %68 = vector.shape_cast %67 : vector<1x8x8xbf16> to vector<8x8xbf16>
    %cst_64 = arith.constant dense<0.000000e+00> : vector<256x8xf32>
    %69 = tpu.matmul %66, %68, %cst_64 {dimension_numbers = #tpu.dot_dimension_numbers<[1], [0], [0], [1], [0, 0, 1, 1], [], []>} : vector<256x8xbf16>, vector<8x8xbf16>, vector<256x8xf32> -> vector<256x8xf32>
    %70 = arith.addf %63, %69 : vector<256x8xf32>
    %c2_65 = arith.constant 2 : index
    %c2_66 = arith.constant 2 : index
    %c0_67 = arith.constant 0 : index
    %71 = vector.load %arg11[%c2_65, %c2_66, %c0_67] : memref<18x18x8xf32, #tpu.memory_space<vmem>>, vector<16x16x8xf32>
    %72 = vector.shape_cast %71 : vector<16x16x8xf32> to vector<256x8xf32>
    %73 = arith.truncf %72 : vector<256x8xf32> to vector<256x8xbf16>
    %c8 = arith.constant 8 : index
    %c0_68 = arith.constant 0 : index
    %c0_69 = arith.constant 0 : index
    %74 = vector.load %arg4[%c8, %c0_68, %c0_69] : memref<9x8x8xbf16, #tpu.memory_space<vmem>>, vector<1x8x8xbf16>
    %75 = vector.shape_cast %74 : vector<1x8x8xbf16> to vector<8x8xbf16>
    %cst_70 = arith.constant dense<0.000000e+00> : vector<256x8xf32>
    %76 = tpu.matmul %73, %75, %cst_70 {dimension_numbers = #tpu.dot_dimension_numbers<[1], [0], [0], [1], [0, 0, 1, 1], [], []>} : vector<256x8xbf16>, vector<8x8xbf16>, vector<256x8xf32> -> vector<256x8xf32>
    %77 = arith.addf %70, %76 : vector<256x8xf32>
    %c0_71 = arith.constant 0 : index
    %c0_72 = arith.constant 0 : index
    %78 = vector.load %arg5[%c0_71, %c0_72] : memref<1x8xf32, #tpu.memory_space<vmem>>, vector<1x8xf32>
    %79 = vector.broadcast %78 : vector<1x8xf32> to vector<256x8xf32>
    %80 = arith.addf %77, %79 : vector<256x8xf32>
    %cst_73 = arith.constant 0.000000e+00 : f32
    %81 = vector.broadcast %cst_73 : f32 to vector<256x8xf32>
    %82 = arith.maximumf %80, %81 : vector<256x8xf32>
    %83 = arith.truncf %82 : vector<256x8xf32> to vector<256x8xbf16>
    %c0_74 = arith.constant 0 : index
    %c0_75 = arith.constant 0 : index
    %84 = vector.load %arg6[%c0_74, %c0_75] : memref<8x32xbf16, #tpu.memory_space<vmem>>, vector<8x32xbf16>
    %cst_76 = arith.constant dense<0.000000e+00> : vector<256x32xf32>
    %85 = tpu.matmul %83, %84, %cst_76 {dimension_numbers = #tpu.dot_dimension_numbers<[1], [0], [0], [1], [0, 0, 1, 1], [], []>} : vector<256x8xbf16>, vector<8x32xbf16>, vector<256x32xf32> -> vector<256x32xf32>
    %c0_77 = arith.constant 0 : index
    %c0_78 = arith.constant 0 : index
    %86 = vector.load %arg7[%c0_77, %c0_78] : memref<1x32xf32, #tpu.memory_space<vmem>>, vector<1x32xf32>
    %87 = vector.broadcast %86 : vector<1x32xf32> to vector<256x32xf32>
    %88 = arith.addf %85, %87 : vector<256x32xf32>
    %89 = vector.shape_cast %1 : vector<16x16x4xbf16> to vector<256x4xbf16>
    %c0_79 = arith.constant 0 : index
    %c0_80 = arith.constant 0 : index
    %90 = vector.load %arg8[%c0_79, %c0_80] : memref<4x32xbf16, #tpu.memory_space<vmem>>, vector<4x32xbf16>
    %cst_81 = arith.constant dense<0.000000e+00> : vector<256x32xf32>
    %91 = tpu.matmul %89, %90, %cst_81 {dimension_numbers = #tpu.dot_dimension_numbers<[1], [0], [0], [1], [0, 0, 1, 1], [], []>} : vector<256x4xbf16>, vector<4x32xbf16>, vector<256x32xf32> -> vector<256x32xf32>
    %c0_82 = arith.constant 0 : index
    %c0_83 = arith.constant 0 : index
    %92 = vector.load %arg9[%c0_82, %c0_83] : memref<1x32xf32, #tpu.memory_space<vmem>>, vector<1x32xf32>
    %93 = vector.broadcast %92 : vector<1x32xf32> to vector<256x32xf32>
    %94 = arith.addf %91, %93 : vector<256x32xf32>
    %95 = arith.addf %88, %94 : vector<256x32xf32>
    %cst_84 = arith.constant 0.000000e+00 : f32
    %96 = vector.broadcast %cst_84 : f32 to vector<256x32xf32>
    %97 = arith.maximumf %95, %96 : vector<256x32xf32>
    %98 = vector.shape_cast %97 : vector<256x32xf32> to vector<16x16x32xf32>
    %c0_85 = arith.constant 0 : index
    %c0_86 = arith.constant 0 : index
    %c0_87 = arith.constant 0 : index
    %c0_88 = arith.constant 0 : index
    %99 = vector.load %arg10[%c0_85, %c0_86, %c0_87, %c0_88] : memref<1x16x16x32xf32, #tpu.memory_space<vmem>>, vector<1x16x16x32xf32>
    %100 = vector.shape_cast %99 : vector<1x16x16x32xf32> to vector<16x16x32xf32>
    %101 = vector.shape_cast %98 : vector<16x16x32xf32> to vector<1x16x16x32xf32>
    tpu.vector_store %arg10[%c0_85, %c0_86, %c0_87, %c0_88], %101 {strides = array<i32>} : memref<1x16x16x32xf32, #tpu.memory_space<vmem>>, vector<1x16x16x32xf32>,
    return
  }
  func.func @transform_0(%arg0: i32) -> (i32, i32, i32, i32) {
    %c0_i32 = arith.constant 0 : i32
    %c0_i32_0 = arith.constant 0 : i32
    %c0_i32_1 = arith.constant 0 : i32
    %c0_i32_2 = arith.constant 0 : i32
    return %arg0, %c0_i32, %c0_i32_0, %c0_i32_1 : i32, i32, i32, i32
  }
  func.func @transform_1(%arg0: i32) -> (i32, i32) {
    %c0_i32 = arith.constant 0 : i32
    %c0_i32_0 = arith.constant 0 : i32
    %c0_i32_1 = arith.constant 0 : i32
    return %c0_i32, %c0_i32_0 : i32, i32
  }
  func.func @transform_2(%arg0: i32) -> (i32, i32) {
    %c0_i32 = arith.constant 0 : i32
    %c0_i32_0 = arith.constant 0 : i32
    %c0_i32_1 = arith.constant 0 : i32
    return %c0_i32, %c0_i32_0 : i32, i32
  }
  func.func @transform_3(%arg0: i32) -> (i32, i32, i32) {
    %c0_i32 = arith.constant 0 : i32
    %c0_i32_0 = arith.constant 0 : i32
    %c0_i32_1 = arith.constant 0 : i32
    %c0_i32_2 = arith.constant 0 : i32
    return %c0_i32, %c0_i32_0, %c0_i32_1 : i32, i32, i32
  }
  func.func @transform_4(%arg0: i32) -> (i32, i32) {
    %c0_i32 = arith.constant 0 : i32
    %c0_i32_0 = arith.constant 0 : i32
    %c0_i32_1 = arith.constant 0 : i32
    return %c0_i32, %c0_i32_0 : i32, i32
  }
  func.func @transform_5(%arg0: i32) -> (i32, i32) {
    %c0_i32 = arith.constant 0 : i32
    %c0_i32_0 = arith.constant 0 : i32
    %c0_i32_1 = arith.constant 0 : i32
    return %c0_i32, %c0_i32_0 : i32, i32
  }
  func.func @transform_6(%arg0: i32) -> (i32, i32) {
    %c0_i32 = arith.constant 0 : i32
    %c0_i32_0 = arith.constant 0 : i32
    %c0_i32_1 = arith.constant 0 : i32
    return %c0_i32, %c0_i32_0 : i32, i32
  }
  func.func @transform_7(%arg0: i32) -> (i32, i32) {
    %c0_i32 = arith.constant 0 : i32
    %c0_i32_0 = arith.constant 0 : i32
    %c0_i32_1 = arith.constant 0 : i32
    return %c0_i32, %c0_i32_0 : i32, i32
  }
  func.func @transform_8(%arg0: i32) -> (i32, i32) {
    %c0_i32 = arith.constant 0 : i32
    %c0_i32_0 = arith.constant 0 : i32
    %c0_i32_1 = arith.constant 0 : i32
    return %c0_i32, %c0_i32_0 : i32, i32
  }
  func.func @transform_9(%arg0: i32) -> (i32, i32, i32, i32) {
    %c0_i32 = arith.constant 0 : i32
    %c0_i32_0 = arith.constant 0 : i32
    %c0_i32_1 = arith.constant 0 : i32
    %c0_i32_2 = arith.constant 0 : i32
    return %arg0, %c0_i32, %c0_i32_0, %c0_i32_1 : i32, i32, i32, i32
  }
}

</mosaic_0001>

<llo_original>
// kernel: tpu_custom_call.1
$region0: #{tpu_custom_call.1}
  #allocation0 [shape = 'u32[]', space=smem, size = 0x4, offset = 0x4, fixed_abs, tag = 'smem constant byte address 0x4 - core index']
  #allocation1 [shape = 'u32[144,128]{1,0:T(1,128)}', space=vmem, size = 0x12000, scoped, tag = 'internal scratch']
  #allocation2 [shape = 'f32[18,18,8]{2,1,0:T(8,128)}', space=vmem, size = 0x36000, scoped, tag = 'scratch operand']
  %s0 = inlined_call_operand.vmem [shape: bf16[2,16,16,4], index: 0, kind: input, shape index: {}]
  %s1 = inlined_call_operand.vmem [shape: bf16[4,8], index: 1, kind: input, shape index: {}]
  %s2 = inlined_call_operand.vmem [shape: f32[1,8], index: 2, kind: input, shape index: {}]
  %s3 = inlined_call_operand.vmem [shape: bf16[9,8,8], index: 3, kind: input, shape index: {}]
  %s4 = inlined_call_operand.vmem [shape: f32[1,8], index: 4, kind: input, shape index: {}]
  %s5 = inlined_call_operand.vmem [shape: bf16[8,32], index: 5, kind: input, shape index: {}]
  %s6 = inlined_call_operand.vmem [shape: f32[1,32], index: 6, kind: input, shape index: {}]
  %s7 = inlined_call_operand.vmem [shape: bf16[4,32], index: 7, kind: input, shape index: {}]
  %s8 = inlined_call_operand.vmem [shape: f32[1,32], index: 8, kind: input, shape index: {}]
  %s9 = inlined_call_operand.hbm [shape: f32[2,16,16,32], index: 9, kind: output, shape index: {}]
  %s10 = sld [smem:[#allocation0]]
  $region69: #{tpu_custom_call.1} parent=0
    _
  %s12 = ssub.s32 1, %s10
  %s13 = scalar_select 0, %s12, %s10
  $region1: #{tpu_custom_call.1} parent=0
    #allocation3 [shape = 'u8[262144]{0}', space=vmem, size = 0x40000, scoped, tag = 'output window, operand 0']
    #allocation4 [shape = 's32[2]{0}', space=sflag, size = 0x8, scoped, tag = 'scoped memory for tpu_custom_call.1']
    %14 = vsyncpa [#allocation4], 0
    %s15 = scalar_lea.sflag [#allocation4], 1
    %16 = vsyncpa %s15, 0
    loop: start=0, step=1, limit=4
    $region2: #{tpu_custom_call.1} parent=1 // loop_pre_header
      _
    $region3: #{tpu_custom_call.1} parent=1 // loop_header
      %s18 = sphi 0, %s22
      %p19 = scmp.ge.s32.totalorder %s18, 4
      %s28 = sphi 0, %s30
      %s31 = sphi 0, %s28
      %s32 = sphi 0, %s31
      %s48 = sphi 0, %s32
      %s52 = sphi 0, %s52
      %s54 = sphi 0, %s52
      %s55 = sphi 0, %s54
      %s69 = sphi 0, %s55
      %s73 = sphi 0, %s73
      %s75 = sphi 0, %s73
      %s76 = sphi 0, %s75
      %s90 = sphi 0, %s76
      %s94 = sphi 0, %s94
      %s96 = sphi 0, %s94
      %s97 = sphi 0, %s96
      %s111 = sphi 0, %s97
      %s115 = sphi 0, %s115
      %s117 = sphi 0, %s115
      %s118 = sphi 0, %s117
      %s132 = sphi 0, %s118
      %s136 = sphi 0, %s136
      %s138 = sphi 0, %s136
      %s139 = sphi 0, %s138
      %s153 = sphi 0, %s139
      %s157 = sphi 0, %s157
      %s159 = sphi 0, %s157
      %s160 = sphi 0, %s159
      %s174 = sphi 0, %s160
      %s178 = sphi 0, %s178
      %s180 = sphi 0, %s178
      %s181 = sphi 0, %s180
      %s195 = sphi 0, %s181
      %s199 = sphi 0, %s199
      %s201 = sphi 0, %s199
      %s202 = sphi 0, %s201
      %s216 = sphi 0, %s202
      %s222 = sphi 0, %s224
      %s225 = sphi 0, %s222
      %s226 = sphi 0, %s225
      %s242 = sphi 0, %s226
    $region4: #{tpu_custom_call.1} parent=1 // loop_header_branch
      %21 = sbr.rel (%p19) target = $region8
    $region5: #{tpu_custom_call.1} parent=1 // loop_body
      %s23 = ssub.s32 %s18, 1
      %s24 = ssub.s32 %s18, 2
      %s25 = sadd.s32 %s18, 1
      %s26 = ssub.s32 %s18, %s25
      %p27 = scmp.eq.s32.totalorder %s26, 0
      %s29 = sadd.s32 %s28, 1
      %s30 = scalar_select %p27, %s28, %s29
      %p33 = pneg %p27
      %p34 = scmp.eq.s32.totalorder %s18, 1
      %p35 = por %p33, %p34
      %p36 = scmp.ne.s32.totalorder %s28, %s31
      %p37 = scmp.eq.s32.totalorder %s18, 0
      %p38 = por %p36, %p37
      %p39 = scmp.ne.s32.totalorder %s28, %s31
      %p40 = scmp.eq.s32.totalorder %s23, 1
      %p41 = por %p39, %p40
      %p42 = scmp.ne.s32.totalorder %s31, %s32
      %p43 = scmp.eq.s32.totalorder %s23, 0
      %p44 = por %p42, %p43
      %p45 = scmp.ne.s32.totalorder %s31, %s32
      %p46 = scmp.eq.s32.totalorder %s24, 1
      %p47 = por %p45, %p46
      %p49 = scmp.ne.s32.totalorder %s32, %s48
      %p50 = scmp.eq.s32.totalorder %s24, 0
      %p51 = por %p49, %p50
      %s53 = sadd.s32 %s52, 1
      %p56 = scmp.eq.s32.totalorder %s18, 1
      %p57 = scmp.ne.s32.totalorder %s52, %s54
      %p58 = scmp.eq.s32.totalorder %s18, 0
      %p59 = por %p57, %p58
      %p60 = scmp.ne.s32.totalorder %s52, %s54
      %p61 = scmp.eq.s32.totalorder %s23, 1
      %p62 = por %p60, %p61
      %p63 = scmp.ne.s32.totalorder %s54, %s55
      %p64 = scmp.eq.s32.totalorder %s23, 0
      %p65 = por %p63, %p64
      %p66 = scmp.ne.s32.totalorder %s54, %s55
      %p67 = scmp.eq.s32.totalorder %s24, 1
      %p68 = por %p66, %p67
      %p70 = scmp.ne.s32.totalorder %s55, %s69
      %p71 = scmp.eq.s32.totalorder %s24, 0
      %p72 = por %p70, %p71
      %s74 = sadd.s32 %s73, 1
      %p77 = scmp.eq.s32.totalorder %s18, 1
      %p78 = scmp.ne.s32.totalorder %s73, %s75
      %p79 = scmp.eq.s32.totalorder %s18, 0
      %p80 = por %p78, %p79
      %p81 = scmp.ne.s32.totalorder %s73, %s75
      %p82 = scmp.eq.s32.totalorder %s23, 1
      %p83 = por %p81, %p82
      %p84 = scmp.ne.s32.totalorder %s75, %s76
      %p85 = scmp.eq.s32.totalorder %s23, 0
      %p86 = por %p84, %p85
      %p87 = scmp.ne.s32.totalorder %s75, %s76
      %p88 = scmp.eq.s32.totalorder %s24, 1
      %p89 = por %p87, %p88
      %p91 = scmp.ne.s32.totalorder %s76, %s90
      %p92 = scmp.eq.s32.totalorder %s24, 0
      %p93 = por %p91, %p92
      %s95 = sadd.s32 %s94, 1
      %p98 = scmp.eq.s32.totalorder %s18, 1
      %p99 = scmp.ne.s32.totalorder %s94, %s96
      %p100 = scmp.eq.s32.totalorder %s18, 0
      %p101 = por %p99, %p100
      %p102 = scmp.ne.s32.totalorder %s94, %s96
      %p103 = scmp.eq.s32.totalorder %s23, 1
      %p104 = por %p102, %p103
      %p105 = scmp.ne.s32.totalorder %s96, %s97
      %p106 = scmp.eq.s32.totalorder %s23, 0
      %p107 = por %p105, %p106
      %p108 = scmp.ne.s32.totalorder %s96, %s97
      %p109 = scmp.eq.s32.totalorder %s24, 1
      %p110 = por %p108, %p109
      %p112 = scmp.ne.s32.totalorder %s97, %s111
      %p113 = scmp.eq.s32.totalorder %s24, 0
      %p114 = por %p112, %p113
      %s116 = sadd.s32 %s115, 1
      %p119 = scmp.eq.s32.totalorder %s18, 1
      %p120 = scmp.ne.s32.totalorder %s115, %s117
      %p121 = scmp.eq.s32.totalorder %s18, 0
      %p122 = por %p120, %p121
      %p123 = scmp.ne.s32.totalorder %s115, %s117
      %p124 = scmp.eq.s32.totalorder %s23, 1
      %p125 = por %p123, %p124
      %p126 = scmp.ne.s32.totalorder %s117, %s118
      %p127 = scmp.eq.s32.totalorder %s23, 0
      %p128 = por %p126, %p127
      %p129 = scmp.ne.s32.totalorder %s117, %s118
      %p130 = scmp.eq.s32.totalorder %s24, 1
      %p131 = por %p129, %p130
      %p133 = scmp.ne.s32.totalorder %s118, %s132
      %p134 = scmp.eq.s32.totalorder %s24, 0
      %p135 = por %p133, %p134
      %s137 = sadd.s32 %s136, 1
      %p140 = scmp.eq.s32.totalorder %s18, 1
      %p141 = scmp.ne.s32.totalorder %s136, %s138
      %p142 = scmp.eq.s32.totalorder %s18, 0
      %p143 = por %p141, %p142
      %p144 = scmp.ne.s32.totalorder %s136, %s138
      %p145 = scmp.eq.s32.totalorder %s23, 1
      %p146 = por %p144, %p145
      %p147 = scmp.ne.s32.totalorder %s138, %s139
      %p148 = scmp.eq.s32.totalorder %s23, 0
      %p149 = por %p147, %p148
      %p150 = scmp.ne.s32.totalorder %s138, %s139
      %p151 = scmp.eq.s32.totalorder %s24, 1
      %p152 = por %p150, %p151
      %p154 = scmp.ne.s32.totalorder %s139, %s153
      %p155 = scmp.eq.s32.totalorder %s24, 0
      %p156 = por %p154, %p155
      %s158 = sadd.s32 %s157, 1
      %p161 = scmp.eq.s32.totalorder %s18, 1
      %p162 = scmp.ne.s32.totalorder %s157, %s159
      %p163 = scmp.eq.s32.totalorder %s18, 0
      %p164 = por %p162, %p163
      %p165 = scmp.ne.s32.totalorder %s157, %s159
      %p166 = scmp.eq.s32.totalorder %s23, 1
      %p167 = por %p165, %p166
      %p168 = scmp.ne.s32.totalorder %s159, %s160
      %p169 = scmp.eq.s32.totalorder %s23, 0
      %p170 = por %p168, %p169
      %p171 = scmp.ne.s32.totalorder %s159, %s160
      %p172 = scmp.eq.s32.totalorder %s24, 1
      %p173 = por %p171, %p172
      %p175 = scmp.ne.s32.totalorder %s160, %s174
      %p176 = scmp.eq.s32.totalorder %s24, 0
      %p177 = por %p175, %p176
      %s179 = sadd.s32 %s178, 1
      %p182 = scmp.eq.s32.totalorder %s18, 1
      %p183 = scmp.ne.s32.totalorder %s178, %s180
      %p184 = scmp.eq.s32.totalorder %s18, 0
      %p185 = por %p183, %p184
      %p186 = scmp.ne.s32.totalorder %s178, %s180
      %p187 = scmp.eq.s32.totalorder %s23, 1
      %p188 = por %p186, %p187
      %p189 = scmp.ne.s32.totalorder %s180, %s181
      %p190 = scmp.eq.s32.totalorder %s23, 0
      %p191 = por %p189, %p190
      %p192 = scmp.ne.s32.totalorder %s180, %s181
      %p193 = scmp.eq.s32.totalorder %s24, 1
      %p194 = por %p192, %p193
      %p196 = scmp.ne.s32.totalorder %s181, %s195
      %p197 = scmp.eq.s32.totalorder %s24, 0
      %p198 = por %p196, %p197
      %s200 = sadd.s32 %s199, 1
      %p203 = scmp.eq.s32.totalorder %s18, 1
      %p204 = scmp.ne.s32.totalorder %s199, %s201
      %p205 = scmp.eq.s32.totalorder %s18, 0
      %p206 = por %p204, %p205
      %p207 = scmp.ne.s32.totalorder %s199, %s201
      %p208 = scmp.eq.s32.totalorder %s23, 1
      %p209 = por %p207, %p208
      %p210 = scmp.ne.s32.totalorder %s201, %s202
      %p211 = scmp.eq.s32.totalorder %s23, 0
      %p212 = por %p210, %p211
      %p213 = scmp.ne.s32.totalorder %s201, %s202
      %p214 = scmp.eq.s32.totalorder %s24, 1
      %p215 = por %p213, %p214
      %p217 = scmp.ne.s32.totalorder %s202, %s216
      %p218 = scmp.eq.s32.totalorder %s24, 0
      %p219 = por %p217, %p218
      %s220 = ssub.s32 %s18, %s25
      %p221 = scmp.eq.s32.totalorder %s220, 0
      %s223 = sadd.s32 %s222, 1
      %s224 = scalar_select %p221, %s222, %s223
      %p227 = pneg %p221
      %p228 = scmp.eq.s32.totalorder %s18, 1
      %p229 = por %p227, %p228
      %p230 = scmp.ne.s32.totalorder %s222, %s225
      %p231 = scmp.eq.s32.totalorder %s18, 0
      %p232 = por %p230, %p231
      %p233 = scmp.ne.s32.totalorder %s222, %s225
      %p234 = scmp.eq.s32.totalorder %s23, 1
      %p235 = por %p233, %p234
      %p236 = scmp.ne.s32.totalorder %s225, %s226
      %p237 = scmp.eq.s32.totalorder %s23, 0
      %p238 = por %p236, %p237
      %p239 = scmp.ne.s32.totalorder %s225, %s226
      %p240 = scmp.eq.s32.totalorder %s24, 1
      %p241 = por %p239, %p240
      %p243 = scmp.ne.s32.totalorder %s226, %s242
      %p244 = scmp.eq.s32.totalorder %s24, 0
      %p245 = por %p243, %p244
      %p246 = scmp.le.s32.totalorder 1, %s18
      %p247 = scmp.lt.s32.totalorder %s18, 3
      %p248 = pnand %p246, %p247
      %p249 = pneg %p248
      // Predicated region
      $region9: #{tpu_custom_call.1} parent=5 // pred_check
        _
      $region10: #{tpu_custom_call.1} parent=5 // pred_check_branch
        %251 = sbr.rel (%p248) target = $region12
      $region11: #{tpu_custom_call.1} parent=5 // pred_region
        %s252 = ssub.s32 %s18, 1
        // Predicated region
        $region13: #{tpu_custom_call.1} parent=11 // pred_check
          %p253 = pneg %p65
        $region14: #{tpu_custom_call.1} parent=11 // pred_check_branch
          %255 = sbr.rel (%p253) target = $region16
        $region15: #{tpu_custom_call.1} parent=11 // pred_region
          _
        $region16: #{tpu_custom_call.1} parent=11 // pred_fallthru
          _
        // Predicated region
        $region17: #{tpu_custom_call.1} parent=11 // pred_check
          %p256 = pneg %p86
        $region18: #{tpu_custom_call.1} parent=11 // pred_check_branch
          %258 = sbr.rel (%p256) target = $region20
        $region19: #{tpu_custom_call.1} parent=11 // pred_region
          _
        $region20: #{tpu_custom_call.1} parent=11 // pred_fallthru
          _
        // Predicated region
        $region21: #{tpu_custom_call.1} parent=11 // pred_check
          %p259 = pneg %p107
        $region22: #{tpu_custom_call.1} parent=11 // pred_check_branch
          %261 = sbr.rel (%p259) target = $region24
        $region23: #{tpu_custom_call.1} parent=11 // pred_region
          _
        $region24: #{tpu_custom_call.1} parent=11 // pred_fallthru
          _
        // Predicated region
        $region25: #{tpu_custom_call.1} parent=11 // pred_check
          %p262 = pneg %p128
        $region26: #{tpu_custom_call.1} parent=11 // pred_check_branch
          %264 = sbr.rel (%p262) target = $region28
        $region27: #{tpu_custom_call.1} parent=11 // pred_region
          _
        $region28: #{tpu_custom_call.1} parent=11 // pred_fallthru
          _
        // Predicated region
        $region29: #{tpu_custom_call.1} parent=11 // pred_check
          %p265 = pneg %p149
        $region30: #{tpu_custom_call.1} parent=11 // pred_check_branch
          %267 = sbr.rel (%p265) target = $region32
        $region31: #{tpu_custom_call.1} parent=11 // pred_region
          _
        $region32: #{tpu_custom_call.1} parent=11 // pred_fallthru
          _
        // Predicated region
        $region33: #{tpu_custom_call.1} parent=11 // pred_check
          %p268 = pneg %p170
        $region34: #{tpu_custom_call.1} parent=11 // pred_check_branch
          %270 = sbr.rel (%p268) target = $region36
        $region35: #{tpu_custom_call.1} parent=11 // pred_region
          _
        $region36: #{tpu_custom_call.1} parent=11 // pred_fallthru
          _
        // Predicated region
        $region37: #{tpu_custom_call.1} parent=11 // pred_check
          %p271 = pneg %p191
        $region38: #{tpu_custom_call.1} parent=11 // pred_check_branch
          %273 = sbr.rel (%p271) target = $region40
        $region39: #{tpu_custom_call.1} parent=11 // pred_region
          _
        $region40: #{tpu_custom_call.1} parent=11 // pred_fallthru
          _
        // Predicated region
        $region41: #{tpu_custom_call.1} parent=11 // pred_check
          %p274 = pneg %p212
        $region42: #{tpu_custom_call.1} parent=11 // pred_check_branch
          %276 = sbr.rel (%p274) target = $region44
        $region43: #{tpu_custom_call.1} parent=11 // pred_region
          _
        $region44: #{tpu_custom_call.1} parent=11 // pred_fallthru
          _
      $region12: #{tpu_custom_call.1} parent=5 // pred_fallthru
        _
      %p277 = scmp.lt.s32.totalorder %s18, 2
      // Predicated region
      $region45: #{tpu_custom_call.1} parent=5 // pred_check
        %p278 = pneg %p277
      $region46: #{tpu_custom_call.1} parent=5 // pred_check_branch
        %280 = sbr.rel (%p278) target = $region48
      $region47: #{tpu_custom_call.1} parent=5 // pred_region
        // Predicated region
        $region49: #{tpu_custom_call.1} parent=47 // pred_check
          %p281 = pneg %p38
        $region50: #{tpu_custom_call.1} parent=47 // pred_check_branch
          %283 = sbr.rel (%p281) target = $region52
        $region51: #{tpu_custom_call.1} parent=47 // pred_region
          %p284 = scmp.lt.s32.totalorder %s18, 1
          %s285 = scalar_select %p284, %s18, 1
          %s286 = smul.addr %s285, 32
          %s287 = smul.addr %s286, 4
          %s288 = scalar_lea.vmem %s0, %s287
        $region52: #{tpu_custom_call.1} parent=47 // pred_fallthru
          _
      $region48: #{tpu_custom_call.1} parent=5 // pred_fallthru
        _
      %p289 = scmp.le.s32.totalorder 1, %s18
      %p290 = scmp.lt.s32.totalorder %s18, 3
      %p291 = pnand %p289, %p290
      %p292 = pneg %p291
      // Predicated region
      $region53: #{tpu_custom_call.1} parent=5 // pred_check
        _
      $region54: #{tpu_custom_call.1} parent=5 // pred_check_branch
        %294 = sbr.rel (%p291) target = $region56
      $region55: #{tpu_custom_call.1} parent=5 // pred_region
        %s295 = ssub.s32 %s18, 1
        %p296 = scmp.lt.s32.totalorder %s23, 1
        %s297 = scalar_select %p296, %s23, 1
        %s298 = smul.addr %s297, 32
        %s299 = smul.addr %s298, 4
        %s300 = scalar_lea.vmem %s0, %s299
        %p301 = pneg %p44
        %p302 = pneg %p41
        %p303 = pneg %p65
        %p304 = pneg %p62
        %p305 = pneg %p86
        %p306 = pneg %p83
        %p307 = pneg %p107
        %p308 = pneg %p104
        %p309 = pneg %p128
        %p310 = pneg %p125
        %p311 = pneg %p149
        %p312 = pneg %p146
        %p313 = pneg %p170
        %p314 = pneg %p167
        %p315 = pneg %p191
        %p316 = pneg %p188
        %p317 = pneg %p212
        %p318 = pneg %p209
        %p319 = pneg %p238
        %p320 = pneg %p235
        %s321 = sand.u32 %s225, 1
        %s322 = scalar_lea.sflag [#allocation4], %s321
        %s323 = sand.u32 %s225, 1
        %s324 = smul.addr %s323, 256
        %s325 = scalar_lea.vmem [#allocation3], %s324
        %p326 = scmp.lt.s32.totalorder %s23, 1
        %s327 = scalar_select %p326, %s23, 1
        %s328 = smul.addr %s327, 32
        %s329 = smul.addr %s328, 4
        %s330 = scalar_lea.vmem %s0, %s329
        %v332 = vld [vmem:[%s330] sm:$0xf]
        %v333 = vld [vmem:[%s330 + $0x4] sm:$0xf]
        %v334 = vld [vmem:[%s330 + $0x8] sm:$0xf]
        %v335 = vld [vmem:[%s330 + $0xc] sm:$0xf]
        %v336 = vld [vmem:[%s330 + $0x10] sm:$0xf]
        %v337 = vld [vmem:[%s330 + $0x14] sm:$0xf]
        %v338 = vld [vmem:[%s330 + $0x18] sm:$0xf]
        %v339 = vld [vmem:[%s330 + $0x1c] sm:$0xf]
        %v340 = vld [vmem:[%s330 + $0x20] sm:$0xf]
        %v341 = vld [vmem:[%s330 + $0x24] sm:$0xf]
        %v342 = vld [vmem:[%s330 + $0x28] sm:$0xf]
        %v343 = vld [vmem:[%s330 + $0x2c] sm:$0xf]
        %v344 = vld [vmem:[%s330 + $0x30] sm:$0xf]
        %v345 = vld [vmem:[%s330 + $0x34] sm:$0xf]
        %v346 = vld [vmem:[%s330 + $0x38] sm:$0xf]
        %v347 = vld [vmem:[%s330 + $0x3c] sm:$0xf]
        %v348 = vld [vmem:[%s330 + $0x40] sm:$0xf]
        %v349 = vld [vmem:[%s330 + $0x44] sm:$0xf]
        %v350 = vld [vmem:[%s330 + $0x48] sm:$0xf]
        %v351 = vld [vmem:[%s330 + $0x4c] sm:$0xf]
        %v352 = vld [vmem:[%s330 + $0x50] sm:$0xf]
        %v353 = vld [vmem:[%s330 + $0x54] sm:$0xf]
        %v354 = vld [vmem:[%s330 + $0x58] sm:$0xf]
        %v355 = vld [vmem:[%s330 + $0x5c] sm:$0xf]
        %v356 = vld [vmem:[%s330 + $0x60] sm:$0xf]
        %v357 = vld [vmem:[%s330 + $0x64] sm:$0xf]
        %v358 = vld [vmem:[%s330 + $0x68] sm:$0xf]
        %v359 = vld [vmem:[%s330 + $0x6c] sm:$0xf]
        %v360 = vld [vmem:[%s330 + $0x70] sm:$0xf]
        %v361 = vld [vmem:[%s330 + $0x74] sm:$0xf]
        %v362 = vld [vmem:[%s330 + $0x78] sm:$0xf]
        %v363 = vld [vmem:[%s330 + $0x7c] sm:$0xf]
        %v364 = vld [vmem:[%s1] sm:$0x3]
        %v365 = vld [vmem:[%s2] sm:$0x1]
        %v367 = vlaneseq
        %v368 = vshrl.u32 %v367, 7
        %v369 = vsub.s32 0, %v368
        %v370 = vrot.slane %v365, %v369
        %v404 = vunpack.c.l.b16 %v332
        %v405 = vunpack.c.l.b16 %v333
        %v406 = vunpack.c.l.b16 %v334
        %v407 = vunpack.c.l.b16 %v335
        %v408 = vunpack.c.l.b16 %v336
        %v409 = vunpack.c.l.b16 %v337
        %v410 = vunpack.c.l.b16 %v338
        %v411 = vunpack.c.l.b16 %v339
        %v412 = vunpack.c.l.b16 %v340
        %v413 = vunpack.c.l.b16 %v341
        %v414 = vunpack.c.l.b16 %v342
        %v415 = vunpack.c.l.b16 %v343
        %v416 = vunpack.c.l.b16 %v344
        %v417 = vunpack.c.l.b16 %v345
        %v418 = vunpack.c.l.b16 %v346
        %v419 = vunpack.c.l.b16 %v347
        %v420 = vunpack.c.l.b16 %v348
        %v421 = vunpack.c.l.b16 %v349
        %v422 = vunpack.c.l.b16 %v350
        %v423 = vunpack.c.l.b16 %v351
        %v424 = vunpack.c.l.b16 %v352
        %v425 = vunpack.c.l.b16 %v353
        %v426 = vunpack.c.l.b16 %v354
        %v427 = vunpack.c.l.b16 %v355
        %v428 = vunpack.c.l.b16 %v356
        %v429 = vunpack.c.l.b16 %v357
        %v430 = vunpack.c.l.b16 %v358
        %v431 = vunpack.c.l.b16 %v359
        %v432 = vunpack.c.l.b16 %v360
        %v433 = vunpack.c.l.b16 %v361
        %v434 = vunpack.c.l.b16 %v362
        %v435 = vunpack.c.l.b16 %v363
        %v436 = vpack.c.b16 %v405, %v404
        %v437 = vpack.c.b16 %v407, %v406
        %v438 = vpack.c.b16 %v409, %v408
        %v439 = vpack.c.b16 %v411, %v410
        %v440 = vpack.c.b16 %v413, %v412
        %v441 = vpack.c.b16 %v415, %v414
        %v442 = vpack.c.b16 %v417, %v416
        %v443 = vpack.c.b16 %v419, %v418
        %v444 = vpack.c.b16 %v421, %v420
        %v445 = vpack.c.b16 %v423, %v422
        %v446 = vpack.c.b16 %v425, %v424
        %v447 = vpack.c.b16 %v427, %v426
        %v448 = vpack.c.b16 %v429, %v428
        %v449 = vpack.c.b16 %v431, %v430
        %v450 = vpack.c.b16 %v433, %v432
        %v451 = vpack.c.b16 %v435, %v434
        %vm452 = vcmask 31744
        %v454 = vsel %vm452, %v436, 0
        %v457 = vsel %vm452, %v437, 0
        %v460 = vsel %vm452, %v438, 0
        %v463 = vsel %vm452, %v439, 0
        %v466 = vsel %vm452, %v440, 0
        %v469 = vsel %vm452, %v441, 0
        %v472 = vsel %vm452, %v442, 0
        %v475 = vsel %vm452, %v443, 0
        %v478 = vsel %vm452, %v444, 0
        %v481 = vsel %vm452, %v445, 0
        %v484 = vsel %vm452, %v446, 0
        %v487 = vsel %vm452, %v447, 0
        %v490 = vsel %vm452, %v448, 0
        %v493 = vsel %vm452, %v449, 0
        %v496 = vsel %vm452, %v450, 0
        %v499 = vsel %vm452, %v451, 0
        %vm501 = vcmask 1041408
        %v503 = vsel %vm501, %v364, 0
        %505 = vmatprep.subr.bf16.mxu0 0
        %506 = vmatpush1.bf16.msra.mxu0 %v503
        %507 = vmatprep.subr.bf16.mxu0 0
        %508 = vmatpush1.bf16.msra.mxu0 0
        %509 = vmatprep.subr.bf16.mxu0 0
        %510 = vmatpush1.bf16.msra.mxu0 0
        %511 = vmatprep.subr.bf16.mxu0 0
        %512 = vmatpush1.bf16.msra.mxu0 0
        %513 = vmatprep.subr.bf16.mxu0 0
        %514 = vmatpush1.bf16.msra.mxu0 0
        %515 = vmatprep.subr.bf16.mxu0 0
        %516 = vmatpush1.bf16.msra.mxu0 0
        %517 = vmatprep.subr.bf16.mxu0 0
        %518 = vmatpush1.bf16.msra.mxu0 0
        %519 = vmatprep.subr.bf16.mxu0 0
        %520 = vmatpush1.bf16.msra.mxu0 0
        %521 = vmatprep.subr.bf16.mxu0 0
        %522 = vmatpush1.bf16.msra.mxu0 0
        %523 = vmatprep.subr.bf16.mxu0 0
        %524 = vmatpush1.bf16.msra.mxu0 0
        %525 = vmatprep.subr.bf16.mxu0 0
        %526 = vmatpush1.bf16.msra.mxu0 0
        %527 = vmatprep.subr.bf16.mxu0 0
        %528 = vmatpush1.bf16.msra.mxu0 0
        %529 = vmatprep.subr.bf16.mxu0 0
        %530 = vmatpush1.bf16.msra.mxu0 0
        %531 = vmatprep.subr.bf16.mxu0 0
        %532 = vmatpush1.bf16.msra.mxu0 0
        %533 = vmatprep.subr.bf16.mxu0 0
        %534 = vmatpush1.bf16.msra.mxu0 0
        %535 = vmatprep.subr.bf16.mxu0 0
        %536 = vmatpush1.bf16.msra.mxu0 0
        %537 = vmatprep.mubr.bf16.mxu0 0
        %538 = vmatmul.mubr.bf16.gmra.mrb[0].mxu0 %v454
        %v539 = vpop.f32.mrb[0].mxu0
        %v540 = vadd.f32 %v370, %v539
        %v541 = vpop.f32.mrb[0].mxu0
        %v542 = vpop.f32.mrb[0].mxu0
        %v543 = vadd.f32 %v370, %v542
        %v544 = vpop.f32.mrb[0].mxu0
        %545 = vmatprep.mubr.bf16.mxu0 0
        %546 = vmatmul.mubr.bf16.gmra.mrb[0].mxu0 %v457
        %v547 = vpop.f32.mrb[0].mxu0
        %v548 = vadd.f32 %v370, %v547
        %v549 = vpop.f32.mrb[0].mxu0
        %v550 = vpop.f32.mrb[0].mxu0
        %v551 = vadd.f32 %v370, %v550
        %v552 = vpop.f32.mrb[0].mxu0
        %553 = vmatprep.mubr.bf16.mxu0 0
        %554 = vmatmul.mubr.bf16.gmra.mrb[0].mxu0 %v460
        %v555 = vpop.f32.mrb[0].mxu0
        %v556 = vadd.f32 %v370, %v555
        %v557 = vpop.f32.mrb[0].mxu0
        %v558 = vpop.f32.mrb[0].mxu0
        %v559 = vadd.f32 %v370, %v558
        %v560 = vpop.f32.mrb[0].mxu0
        %561 = vmatprep.mubr.bf16.mxu0 0
        %562 = vmatmul.mubr.bf16.gmra.mrb[0].mxu0 %v463
        %v563 = vpop.f32.mrb[0].mxu0
        %v564 = vadd.f32 %v370, %v563
        %v565 = vpop.f32.mrb[0].mxu0
        %v566 = vpop.f32.mrb[0].mxu0
        %v567 = vadd.f32 %v370, %v566
        %v568 = vpop.f32.mrb[0].mxu0
        %569 = vmatprep.mubr.bf16.mxu0 0
        %570 = vmatmul.mubr.bf16.gmra.mrb[0].mxu0 %v466
        %v571 = vpop.f32.mrb[0].mxu0
        %v572 = vadd.f32 %v370, %v571
        %v573 = vpop.f32.mrb[0].mxu0
        %v574 = vpop.f32.mrb[0].mxu0
        %v575 = vadd.f32 %v370, %v574
        %v576 = vpop.f32.mrb[0].mxu0
        %577 = vmatprep.mubr.bf16.mxu0 0
        %578 = vmatmul.mubr.bf16.gmra.mrb[0].mxu0 %v469
        %v579 = vpop.f32.mrb[0].mxu0
        %v580 = vadd.f32 %v370, %v579
        %v581 = vpop.f32.mrb[0].mxu0
        %v582 = vpop.f32.mrb[0].mxu0
        %v583 = vadd.f32 %v370, %v582
        %v584 = vpop.f32.mrb[0].mxu0
        %585 = vmatprep.mubr.bf16.mxu0 0
        %586 = vmatmul.mubr.bf16.gmra.mrb[0].mxu0 %v472
        %v587 = vpop.f32.mrb[0].mxu0
        %v588 = vadd.f32 %v370, %v587
        %v589 = vpop.f32.mrb[0].mxu0
        %v590 = vpop.f32.mrb[0].mxu0
        %v591 = vadd.f32 %v370, %v590
        %v592 = vpop.f32.mrb[0].mxu0
        %593 = vmatprep.mubr.bf16.mxu0 0
        %594 = vmatmul.mubr.bf16.gmra.mrb[0].mxu0 %v475
        %v595 = vpop.f32.mrb[0].mxu0
        %v596 = vadd.f32 %v370, %v595
        %v597 = vpop.f32.mrb[0].mxu0
        %v598 = vpop.f32.mrb[0].mxu0
        %v599 = vadd.f32 %v370, %v598
        %v600 = vpop.f32.mrb[0].mxu0
        %601 = vmatprep.mubr.bf16.mxu0 0
        %602 = vmatmul.mubr.bf16.gmra.mrb[0].mxu0 %v478
        %v603 = vpop.f32.mrb[0].mxu0
        %v604 = vadd.f32 %v370, %v603
        %v605 = vpop.f32.mrb[0].mxu0
        %v606 = vpop.f32.mrb[0].mxu0
        %v607 = vadd.f32 %v370, %v606
        %v608 = vpop.f32.mrb[0].mxu0
        %609 = vmatprep.mubr.bf16.mxu0 0
        %610 = vmatmul.mubr.bf16.gmra.mrb[0].mxu0 %v481
        %v611 = vpop.f32.mrb[0].mxu0
        %v612 = vadd.f32 %v370, %v611
        %v613 = vpop.f32.mrb[0].mxu0
        %v614 = vpop.f32.mrb[0].mxu0
        %v615 = vadd.f32 %v370, %v614
        %v616 = vpop.f32.mrb[0].mxu0
        %617 = vmatprep.mubr.bf16.mxu0 0
        %618 = vmatmul.mubr.bf16.gmra.mrb[0].mxu0 %v484
        %v619 = vpop.f32.mrb[0].mxu0
        %v620 = vadd.f32 %v370, %v619
        %v621 = vpop.f32.mrb[0].mxu0
        %v622 = vpop.f32.mrb[0].mxu0
        %v623 = vadd.f32 %v370, %v622
        %v624 = vpop.f32.mrb[0].mxu0
        %625 = vmatprep.mubr.bf16.mxu0 0
        %626 = vmatmul.mubr.bf16.gmra.mrb[0].mxu0 %v487
        %v627 = vpop.f32.mrb[0].mxu0
        %v628 = vadd.f32 %v370, %v627
        %v629 = vpop.f32.mrb[0].mxu0
        %v630 = vpop.f32.mrb[0].mxu0
        %v631 = vadd.f32 %v370, %v630
        %v632 = vpop.f32.mrb[0].mxu0
        %633 = vmatprep.mubr.bf16.mxu0 0
        %634 = vmatmul.mubr.bf16.gmra.mrb[0].mxu0 %v490
        %v635 = vpop.f32.mrb[0].mxu0
        %v636 = vadd.f32 %v370, %v635
        %v637 = vpop.f32.mrb[0].mxu0
        %v638 = vpop.f32.mrb[0].mxu0
        %v639 = vadd.f32 %v370, %v638
        %v640 = vpop.f32.mrb[0].mxu0
        %641 = vmatprep.mubr.bf16.mxu0 0
        %642 = vmatmul.mubr.bf16.gmra.mrb[0].mxu0 %v493
        %v643 = vpop.f32.mrb[0].mxu0
        %v644 = vadd.f32 %v370, %v643
        %v645 = vpop.f32.mrb[0].mxu0
        %v646 = vpop.f32.mrb[0].mxu0
        %v647 = vadd.f32 %v370, %v646
        %v648 = vpop.f32.mrb[0].mxu0
        %649 = vmatprep.mubr.bf16.mxu0 0
        %650 = vmatmul.mubr.bf16.gmra.mrb[0].mxu0 %v496
        %v651 = vpop.f32.mrb[0].mxu0
        %v652 = vadd.f32 %v370, %v651
        %v653 = vpop.f32.mrb[0].mxu0
        %v654 = vpop.f32.mrb[0].mxu0
        %v655 = vadd.f32 %v370, %v654
        %v656 = vpop.f32.mrb[0].mxu0
        %657 = vmatprep.mubr.bf16.mxu0 0
        %658 = vmatmul.mubr.bf16.gmra.mrb[0].mxu0 %v499
        %v659 = vpop.f32.mrb[0].mxu0
        %v660 = vadd.f32 %v370, %v659
        %v661 = vpop.f32.mrb[0].mxu0
        %v662 = vpop.f32.mrb[0].mxu0
        %v663 = vadd.f32 %v370, %v662
        %v664 = vpop.f32.mrb[0].mxu0
        %665 = vdwg.mxu0
        %v666 = vmax.f32 %v540, 0.0
        %v667 = vmax.f32 %v543, 0.0
        %v668 = vmax.f32 %v548, 0.0
        %v669 = vmax.f32 %v551, 0.0
        %v670 = vmax.f32 %v556, 0.0
        %v671 = vmax.f32 %v559, 0.0
        %v672 = vmax.f32 %v564, 0.0
        %v673 = vmax.f32 %v567, 0.0
        %v674 = vmax.f32 %v572, 0.0
        %v675 = vmax.f32 %v575, 0.0
        %v676 = vmax.f32 %v580, 0.0
        %v677 = vmax.f32 %v583, 0.0
        %v678 = vmax.f32 %v588, 0.0
        %v679 = vmax.f32 %v591, 0.0
        %v680 = vmax.f32 %v596, 0.0
        %v681 = vmax.f32 %v599, 0.0
        %v682 = vmax.f32 %v604, 0.0
        %v683 = vmax.f32 %v607, 0.0
        %v684 = vmax.f32 %v612, 0.0
        %v685 = vmax.f32 %v615, 0.0
        %v686 = vmax.f32 %v620, 0.0
        %v687 = vmax.f32 %v623, 0.0
        %v688 = vmax.f32 %v628, 0.0
        %v689 = vmax.f32 %v631, 0.0
        %v690 = vmax.f32 %v636, 0.0
        %v691 = vmax.f32 %v639, 0.0
        %v692 = vmax.f32 %v644, 0.0
        %v693 = vmax.f32 %v647, 0.0
        %v694 = vmax.f32 %v652, 0.0
        %v695 = vmax.f32 %v655, 0.0
        %v696 = vmax.f32 %v660, 0.0
        %v697 = vmax.f32 %v663, 0.0
        %vm698 = vcmask 64512
        %699 = vst.msk [vmem:[#allocation2] sm:$0xff] %vm698, 0.0
        %700 = vst.msk [vmem:[#allocation2 + $0x8] sm:$0xff] %vm698, 0.0
        %vm701 = vcmask 58368
        %702 = vst.msk [vmem:[#allocation2 + $0x10] sm:$0x3] %vm701, 0.0
        %703 = vst.msk [vmem:[#allocation2 + $0x18] sm:$0xff] %vm698, 0.0
        %704 = vst.msk [vmem:[#allocation2 + $0x20] sm:$0xff] %vm698, 0.0
        %705 = vst.msk [vmem:[#allocation2 + $0x28] sm:$0x3] %vm701, 0.0
        %706 = vst.msk [vmem:[#allocation2 + $0x30] sm:$0xff] %vm698, 0.0
        %707 = vst.msk [vmem:[#allocation2 + $0x38] sm:$0xff] %vm698, 0.0
        %708 = vst.msk [vmem:[#allocation2 + $0x40] sm:$0x3] %vm701, 0.0
        %709 = vst.msk [vmem:[#allocation2 + $0x48] sm:$0xff] %vm698, 0.0
        %710 = vst.msk [vmem:[#allocation2 + $0x50] sm:$0xff] %vm698, 0.0
        %711 = vst.msk [vmem:[#allocation2 + $0x58] sm:$0x3] %vm701, 0.0
        %712 = vst.msk [vmem:[#allocation2 + $0x60] sm:$0xff] %vm698, 0.0
        %713 = vst.msk [vmem:[#allocation2 + $0x68] sm:$0xff] %vm698, 0.0
        %714 = vst.msk [vmem:[#allocation2 + $0x70] sm:$0x3] %vm701, 0.0
        %715 = vst.msk [vmem:[#allocation2 + $0x78] sm:$0xff] %vm698, 0.0
        %716 = vst.msk [vmem:[#allocation2 + $0x80] sm:$0xff] %vm698, 0.0
        %717 = vst.msk [vmem:[#allocation2 + $0x88] sm:$0x3] %vm701, 0.0
        %718 = vst.msk [vmem:[#allocation2 + $0x90] sm:$0xff] %vm698, 0.0
        %719 = vst.msk [vmem:[#allocation2 + $0x98] sm:$0xff] %vm698, 0.0
        %720 = vst.msk [vmem:[#allocation2 + $0xa0] sm:$0x3] %vm701, 0.0
        %721 = vst.msk [vmem:[#allocation2 + $0xa8] sm:$0xff] %vm698, 0.0
        %722 = vst.msk [vmem:[#allocation2 + $0xb0] sm:$0xff] %vm698, 0.0
        %723 = vst.msk [vmem:[#allocation2 + $0xb8] sm:$0x3] %vm701, 0.0
        %724 = vst.msk [vmem:[#allocation2 + $0xc0] sm:$0xff] %vm698, 0.0
        %725 = vst.msk [vmem:[#allocation2 + $0xc8] sm:$0xff] %vm698, 0.0
        %726 = vst.msk [vmem:[#allocation2 + $0xd0] sm:$0x3] %vm701, 0.0
        %727 = vst.msk [vmem:[#allocation2 + $0xd8] sm:$0xff] %vm698, 0.0
        %728 = vst.msk [vmem:[#allocation2 + $0xe0] sm:$0xff] %vm698, 0.0
        %729 = vst.msk [vmem:[#allocation2 + $0xe8] sm:$0x3] %vm701, 0.0
        %730 = vst.msk [vmem:[#allocation2 + $0xf0] sm:$0xff] %vm698, 0.0
        %731 = vst.msk [vmem:[#allocation2 + $0xf8] sm:$0xff] %vm698, 0.0
        %732 = vst.msk [vmem:[#allocation2 + $0x100] sm:$0x3] %vm701, 0.0
        %733 = vst.msk [vmem:[#allocation2 + $0x108] sm:$0xff] %vm698, 0.0
        %734 = vst.msk [vmem:[#allocation2 + $0x110] sm:$0xff] %vm698, 0.0
        %735 = vst.msk [vmem:[#allocation2 + $0x118] sm:$0x3] %vm701, 0.0
        %736 = vst.msk [vmem:[#allocation2 + $0x120] sm:$0xff] %vm698, 0.0
        %737 = vst.msk [vmem:[#allocation2 + $0x128] sm:$0xff] %vm698, 0.0
        %738 = vst.msk [vmem:[#allocation2 + $0x130] sm:$0x3] %vm701, 0.0
        %739 = vst.msk [vmem:[#allocation2 + $0x138] sm:$0xff] %vm698, 0.0
        %740 = vst.msk [vmem:[#allocation2 + $0x140] sm:$0xff] %vm698, 0.0
        %741 = vst.msk [vmem:[#allocation2 + $0x148] sm:$0x3] %vm701, 0.0
        %742 = vst.msk [vmem:[#allocation2 + $0x150] sm:$0xff] %vm698, 0.0
        %743 = vst.msk [vmem:[#allocation2 + $0x158] sm:$0xff] %vm698, 0.0
        %744 = vst.msk [vmem:[#allocation2 + $0x160] sm:$0x3] %vm701, 0.0
        %745 = vst.msk [vmem:[#allocation2 + $0x168] sm:$0xff] %vm698, 0.0
        %746 = vst.msk [vmem:[#allocation2 + $0x170] sm:$0xff] %vm698, 0.0
        %747 = vst.msk [vmem:[#allocation2 + $0x178] sm:$0x3] %vm701, 0.0
        %748 = vst.msk [vmem:[#allocation2 + $0x180] sm:$0xff] %vm698, 0.0
        %749 = vst.msk [vmem:[#allocation2 + $0x188] sm:$0xff] %vm698, 0.0
        %750 = vst.msk [vmem:[#allocation2 + $0x190] sm:$0x3] %vm701, 0.0
        %751 = vst.msk [vmem:[#allocation2 + $0x198] sm:$0xff] %vm698, 0.0
        %752 = vst.msk [vmem:[#allocation2 + $0x1a0] sm:$0xff] %vm698, 0.0
        %753 = vst.msk [vmem:[#allocation2 + $0x1a8] sm:$0x3] %vm701, 0.0
        %s754 = scalar_lea.vmem [#allocation2], 24
        %755 = vst.msk [vmem:[%s754 + $0x1] sm:$0xff] %vm698, %v666
        %756 = vst.msk [vmem:[%s754 + $0x9] sm:$0xff] %vm698, %v667
        %757 = vst.msk [vmem:[%s754 + $0x19] sm:$0xff] %vm698, %v668
        %758 = vst.msk [vmem:[%s754 + $0x21] sm:$0xff] %vm698, %v669
        %759 = vst.msk [vmem:[%s754 + $0x31] sm:$0xff] %vm698, %v670
        %760 = vst.msk [vmem:[%s754 + $0x39] sm:$0xff] %vm698, %v671
        %761 = vst.msk [vmem:[%s754 + $0x49] sm:$0xff] %vm698, %v672
        %762 = vst.msk [vmem:[%s754 + $0x51] sm:$0xff] %vm698, %v673
        %763 = vst.msk [vmem:[%s754 + $0x61] sm:$0xff] %vm698, %v674
        %764 = vst.msk [vmem:[%s754 + $0x69] sm:$0xff] %vm698, %v675
        %765 = vst.msk [vmem:[%s754 + $0x79] sm:$0xff] %vm698, %v676
        %766 = vst.msk [vmem:[%s754 + $0x81] sm:$0xff] %vm698, %v677
        %767 = vst.msk [vmem:[%s754 + $0x91] sm:$0xff] %vm698, %v678
        %768 = vst.msk [vmem:[%s754 + $0x99] sm:$0xff] %vm698, %v679
        %769 = vst.msk [vmem:[%s754 + $0xa9] sm:$0xff] %vm698, %v680
        %770 = vst.msk [vmem:[%s754 + $0xb1] sm:$0xff] %vm698, %v681
        %771 = vst.msk [vmem:[%s754 + $0xc1] sm:$0xff] %vm698, %v682
        %772 = vst.msk [vmem:[%s754 + $0xc9] sm:$0xff] %vm698, %v683
        %773 = vst.msk [vmem:[%s754 + $0xd9] sm:$0xff] %vm698, %v684
        %774 = vst.msk [vmem:[%s754 + $0xe1] sm:$0xff] %vm698, %v685
        %775 = vst.msk [vmem:[%s754 + $0xf1] sm:$0xff] %vm698, %v686
        %776 = vst.msk [vmem:[%s754 + $0xf9] sm:$0xff] %vm698, %v687
        %777 = vst.msk [vmem:[%s754 + $0x109] sm:$0xff] %vm698, %v688
        %778 = vst.msk [vmem:[%s754 + $0x111] sm:$0xff] %vm698, %v689
        %779 = vst.msk [vmem:[%s754 + $0x121] sm:$0xff] %vm698, %v690
        %780 = vst.msk [vmem:[%s754 + $0x129] sm:$0xff] %vm698, %v691
        %781 = vst.msk [vmem:[%s754 + $0x139] sm:$0xff] %vm698, %v692
        %782 = vst.msk [vmem:[%s754 + $0x141] sm:$0xff] %vm698, %v693
        %783 = vst.msk [vmem:[%s754 + $0x151] sm:$0xff] %vm698, %v694
        %784 = vst.msk [vmem:[%s754 + $0x159] sm:$0xff] %vm698, %v695
        %785 = vst.msk [vmem:[%s754 + $0x169] sm:$0xff] %vm698, %v696
        %786 = vst.msk [vmem:[%s754 + $0x171] sm:$0xff] %vm698, %v697
        %v787 = vld [vmem:[#allocation2] sm:$0xff]
        %v788 = vld [vmem:[#allocation2 + $0x8] sm:$0xff]
        %v789 = vld [vmem:[#allocation2 + $0x18] sm:$0xff]
        %v790 = vld [vmem:[#allocation2 + $0x20] sm:$0xff]
        %v791 = vld [vmem:[#allocation2 + $0x30] sm:$0xff]
        %v792 = vld [vmem:[#allocation2 + $0x38] sm:$0xff]
        %v793 = vld [vmem:[#allocation2 + $0x48] sm:$0xff]
        %v794 = vld [vmem:[#allocation2 + $0x50] sm:$0xff]
        %v795 = vld [vmem:[#allocation2 + $0x60] sm:$0xff]
        %v796 = vld [vmem:[#allocation2 + $0x68] sm:$0xff]
        %v797 = vld [vmem:[#allocation2 + $0x78] sm:$0xff]
        %v798 = vld [vmem:[#allocation2 + $0x80] sm:$0xff]
        %v799 = vld [vmem:[#allocation2 + $0x90] sm:$0xff]
        %v800 = vld [vmem:[#allocation2 + $0x98] sm:$0xff]
        %v801 = vld [vmem:[#allocation2 + $0xa8] sm:$0xff]
        %v802 = vld [vmem:[#allocation2 + $0xb0] sm:$0xff]
        %v803 = vld [vmem:[#allocation2 + $0xc0] sm:$0xff]
        %v804 = vld [vmem:[#allocation2 + $0xc8] sm:$0xff]
        %v805 = vld [vmem:[#allocation2 + $0xd8] sm:$0xff]
        %v806 = vld [vmem:[#allocation2 + $0xe0] sm:$0xff]
        %v807 = vld [vmem:[#allocation2 + $0xf0] sm:$0xff]
        %v808 = vld [vmem:[#allocation2 + $0xf8] sm:$0xff]
        %v809 = vld [vmem:[#allocation2 + $0x108] sm:$0xff]
        %v810 = vld [vmem:[#allocation2 + $0x110] sm:$0xff]
        %v811 = vld [vmem:[#allocation2 + $0x120] sm:$0xff]
        %v812 = vld [vmem:[#allocation2 + $0x128] sm:$0xff]
        %v813 = vld [vmem:[#allocation2 + $0x138] sm:$0xff]
        %v814 = vld [vmem:[#allocation2 + $0x140] sm:$0xff]
        %v815 = vld [vmem:[#allocation2 + $0x150] sm:$0xff]
        %v816 = vld [vmem:[#allocation2 + $0x158] sm:$0xff]
        %v817 = vld [vmem:[#allocation2 + $0x168] sm:$0xff]
        %v818 = vld [vmem:[#allocation2 + $0x170] sm:$0xff]
        %v819 = vpack.c.bf16 %v788, %v787
        %v820 = vpack.c.bf16 %v790, %v789
        %v821 = vpack.c.bf16 %v792, %v791
        %v822 = vpack.c.bf16 %v794, %v793
        %v823 = vpack.c.bf16 %v796, %v795
        %v824 = vpack.c.bf16 %v798, %v797
        %v825 = vpack.c.bf16 %v800, %v799
        %v826 = vpack.c.bf16 %v802, %v801
        %v827 = vpack.c.bf16 %v804, %v803
        %v828 = vpack.c.bf16 %v806, %v805
        %v829 = vpack.c.bf16 %v808, %v807
        %v830 = vpack.c.bf16 %v810, %v809
        %v831 = vpack.c.bf16 %v812, %v811
        %v832 = vpack.c.bf16 %v814, %v813
        %v833 = vpack.c.bf16 %v816, %v815
        %v834 = vpack.c.bf16 %v818, %v817
        %v835 = vld [vmem:[%s3] sm:$0xf]
        %v836 = vld [vmem:[#allocation2 + $0x1] sm:$0xff]
        %v837 = vld [vmem:[#allocation2 + $0x9] sm:$0xff]
        %v838 = vld [vmem:[#allocation2 + $0x19] sm:$0xff]
        %v839 = vld [vmem:[#allocation2 + $0x21] sm:$0xff]
        %v840 = vld [vmem:[#allocation2 + $0x31] sm:$0xff]
        %v841 = vld [vmem:[#allocation2 + $0x39] sm:$0xff]
        %v842 = vld [vmem:[#allocation2 + $0x49] sm:$0xff]
        %v843 = vld [vmem:[#allocation2 + $0x51] sm:$0xff]
        %v844 = vld [vmem:[#allocation2 + $0x61] sm:$0xff]
        %v845 = vld [vmem:[#allocation2 + $0x69] sm:$0xff]
        %v846 = vld [vmem:[#allocation2 + $0x79] sm:$0xff]
        %v847 = vld [vmem:[#allocation2 + $0x81] sm:$0xff]
        %v848 = vld [vmem:[#allocation2 + $0x91] sm:$0xff]
        %v849 = vld [vmem:[#allocation2 + $0x99] sm:$0xff]
        %v850 = vld [vmem:[#allocation2 + $0xa9] sm:$0xff]
        %v851 = vld [vmem:[#allocation2 + $0xb1] sm:$0xff]
        %v852 = vld [vmem:[#allocation2 + $0xc1] sm:$0xff]
        %v853 = vld [vmem:[#allocation2 + $0xc9] sm:$0xff]
        %v854 = vld [vmem:[#allocation2 + $0xd9] sm:$0xff]
        %v855 = vld [vmem:[#allocation2 + $0xe1] sm:$0xff]
        %v856 = vld [vmem:[#allocation2 + $0xf1] sm:$0xff]
        %v857 = vld [vmem:[#allocation2 + $0xf9] sm:$0xff]
        %v858 = vld [vmem:[#allocation2 + $0x109] sm:$0xff]
        %v859 = vld [vmem:[#allocation2 + $0x111] sm:$0xff]
        %v860 = vld [vmem:[#allocation2 + $0x121] sm:$0xff]
        %v861 = vld [vmem:[#allocation2 + $0x129] sm:$0xff]
        %v862 = vld [vmem:[#allocation2 + $0x139] sm:$0xff]
        %v863 = vld [vmem:[#allocation2 + $0x141] sm:$0xff]
        %v864 = vld [vmem:[#allocation2 + $0x151] sm:$0xff]
        %v865 = vld [vmem:[#allocation2 + $0x159] sm:$0xff]
        %v866 = vld [vmem:[#allocation2 + $0x169] sm:$0xff]
        %v867 = vld [vmem:[#allocation2 + $0x171] sm:$0xff]
        %v868 = vpack.c.bf16 %v837, %v836
        %v869 = vpack.c.bf16 %v839, %v838
        %v870 = vpack.c.bf16 %v841, %v840
        %v871 = vpack.c.bf16 %v843, %v842
        %v872 = vpack.c.bf16 %v845, %v844
        %v873 = vpack.c.bf16 %v847, %v846
        %v874 = vpack.c.bf16 %v849, %v848
        %v875 = vpack.c.bf16 %v851, %v850
        %v876 = vpack.c.bf16 %v853, %v852
        %v877 = vpack.c.bf16 %v855, %v854
        %v878 = vpack.c.bf16 %v857, %v856
        %v879 = vpack.c.bf16 %v859, %v858
        %v880 = vpack.c.bf16 %v861, %v860
        %v881 = vpack.c.bf16 %v863, %v862
        %v882 = vpack.c.bf16 %v865, %v864
        %v883 = vpack.c.bf16 %v867, %v866
        %s884 = scalar_lea.vmem %s3, 4
        %v885 = vld [vmem:[%s884] sm:$0xf]
        %v887 = vsel %vm698, %v868, 0
        %v890 = vsel %vm698, %v869, 0
        %v893 = vsel %vm698, %v870, 0
        %v896 = vsel %vm698, %v871, 0
        %v899 = vsel %vm698, %v872, 0
        %v902 = vsel %vm698, %v873, 0
        %v905 = vsel %vm698, %v874, 0
        %v908 = vsel %vm698, %v875, 0
        %v911 = vsel %vm698, %v876, 0
        %v914 = vsel %vm698, %v877, 0
        %v917 = vsel %vm698, %v878, 0
        %v920 = vsel %vm698, %v879, 0
        %v923 = vsel %vm698, %v880, 0
        %v926 = vsel %vm698, %v881, 0
        %v929 = vsel %vm698, %v882, 0
        %v932 = vsel %vm698, %v883, 0
        %vm934 = vcmask 1043456
        %v936 = vsel %vm934, %v885, 0
        %938 = vmatprep.subr.bf16.mxu0 0
        %939 = vmatpush1.bf16.msra.mxu0 %v936
        %940 = vmatprep.subr.bf16.mxu0 0
        %941 = vmatpush1.bf16.msra.mxu0 0
        %942 = vmatprep.subr.bf16.mxu0 0
        %943 = vmatpush1.bf16.msra.mxu0 0
        %944 = vmatprep.subr.bf16.mxu0 0
        %945 = vmatpush1.bf16.msra.mxu0 0
        %946 = vmatprep.subr.bf16.mxu0 0
        %947 = vmatpush1.bf16.msra.mxu0 0
        %948 = vmatprep.subr.bf16.mxu0 0
        %949 = vmatpush1.bf16.msra.mxu0 0
        %950 = vmatprep.subr.bf16.mxu0 0
        %951 = vmatpush1.bf16.msra.mxu0 0
        %952 = vmatprep.subr.bf16.mxu0 0
        %953 = vmatpush1.bf16.msra.mxu0 0
        %954 = vmatprep.subr.bf16.mxu0 0
        %955 = vmatpush1.bf16.msra.mxu0 0
        %956 = vmatprep.subr.bf16.mxu0 0
        %957 = vmatpush1.bf16.msra.mxu0 0
        %958 = vmatprep.subr.bf16.mxu0 0
        %959 = vmatpush1.bf16.msra.mxu0 0
        %960 = vmatprep.subr.bf16.mxu0 0
        %961 = vmatpush1.bf16.msra.mxu0 0
        %962 = vmatprep.subr.bf16.mxu0 0
        %963 = vmatpush1.bf16.msra.mxu0 0
        %964 = vmatprep.subr.bf16.mxu0 0
        %965 = vmatpush1.bf16.msra.mxu0 0
        %966 = vmatprep.subr.bf16.mxu0 0
        %967 = vmatpush1.bf16.msra.mxu0 0
        %968 = vmatprep.subr.bf16.mxu0 0
        %969 = vmatpush1.bf16.msra.mxu0 0
        %970 = vmatprep.mubr.bf16.mxu0 0
        %971 = vmatmul.mubr.bf16.gmra.mrb[0].mxu0 %v887
        %v972 = vpop.f32.mrb[0].mxu0
        %v973 = vadd.f32 0.0, %v972
        %v974 = vpop.f32.mrb[0].mxu0
        %v975 = vpop.f32.mrb[0].mxu0
        %v976 = vadd.f32 0.0, %v975
        %v977 = vpop.f32.mrb[0].mxu0
        %978 = vmatprep.mubr.bf16.mxu0 0
        %979 = vmatmul.mubr.bf16.gmra.mrb[0].mxu0 %v890
        %v980 = vpop.f32.mrb[0].mxu0
        %v981 = vadd.f32 0.0, %v980
        %v982 = vpop.f32.mrb[0].mxu0
        %v983 = vpop.f32.mrb[0].mxu0
        %v984 = vadd.f32 0.0, %v983
        %v985 = vpop.f32.mrb[0].mxu0
        %986 = vmatprep.mubr.bf16.mxu0 0
        %987 = vmatmul.mubr.bf16.gmra.mrb[0].mxu0 %v893
        %v988 = vpop.f32.mrb[0].mxu0
        %v989 = vadd.f32 0.0, %v988
        %v990 = vpop.f32.mrb[0].mxu0
        %v991 = vpop.f32.mrb[0].mxu0
        %v992 = vadd.f32 0.0, %v991
        %v993 = vpop.f32.mrb[0].mxu0
        %994 = vmatprep.mubr.bf16.mxu0 0
        %995 = vmatmul.mubr.bf16.gmra.mrb[0].mxu0 %v896
        %v996 = vpop.f32.mrb[0].mxu0
        %v997 = vadd.f32 0.0, %v996
        %v998 = vpop.f32.mrb[0].mxu0
        %v999 = vpop.f32.mrb[0].mxu0
        %v1000 = vadd.f32 0.0, %v999
        %v1001 = vpop.f32.mrb[0].mxu0
        %1002 = vmatprep.mubr.bf16.mxu0 0
        %1003 = vmatmul.mubr.bf16.gmra.mrb[0].mxu0 %v899
        %v1004 = vpop.f32.mrb[0].mxu0
        %v1005 = vadd.f32 0.0, %v1004
        %v1006 = vpop.f32.mrb[0].mxu0
        %v1007 = vpop.f32.mrb[0].mxu0
        %v1008 = vadd.f32 0.0, %v1007
        %v1009 = vpop.f32.mrb[0].mxu0
        %1010 = vmatprep.mubr.bf16.mxu0 0
        %1011 = vmatmul.mubr.bf16.gmra.mrb[0].mxu0 %v902
        %v1012 = vpop.f32.mrb[0].mxu0
        %v1013 = vadd.f32 0.0, %v1012
        %v1014 = vpop.f32.mrb[0].mxu0
        %v1015 = vpop.f32.mrb[0].mxu0
        %v1016 = vadd.f32 0.0, %v1015
        %v1017 = vpop.f32.mrb[0].mxu0
        %1018 = vmatprep.mubr.bf16.mxu0 0
        %1019 = vmatmul.mubr.bf16.gmra.mrb[0].mxu0 %v905
        %v1020 = vpop.f32.mrb[0].mxu0
        %v1021 = vadd.f32 0.0, %v1020
        %v1022 = vpop.f32.mrb[0].mxu0
        %v1023 = vpop.f32.mrb[0].mxu0
        %v1024 = vadd.f32 0.0, %v1023
        %v1025 = vpop.f32.mrb[0].mxu0
        %1026 = vmatprep.mubr.bf16.mxu0 0
        %1027 = vmatmul.mubr.bf16.gmra.mrb[0].mxu0 %v908
        %v1028 = vpop.f32.mrb[0].mxu0
        %v1029 = vadd.f32 0.0, %v1028
        %v1030 = vpop.f32.mrb[0].mxu0
        %v1031 = vpop.f32.mrb[0].mxu0
        %v1032 = vadd.f32 0.0, %v1031
        %v1033 = vpop.f32.mrb[0].mxu0
        %1034 = vmatprep.mubr.bf16.mxu0 0
        %1035 = vmatmul.mubr.bf16.gmra.mrb[0].mxu0 %v911
        %v1036 = vpop.f32.mrb[0].mxu0
        %v1037 = vadd.f32 0.0, %v1036
        %v1038 = vpop.f32.mrb[0].mxu0
        %v1039 = vpop.f32.mrb[0].mxu0
        %v1040 = vadd.f32 0.0, %v1039
        %v1041 = vpop.f32.mrb[0].mxu0
        %1042 = vmatprep.mubr.bf16.mxu0 0
        %1043 = vmatmul.mubr.bf16.gmra.mrb[0].mxu0 %v914
        %v1044 = vpop.f32.mrb[0].mxu0
        %v1045 = vadd.f32 0.0, %v1044
        %v1046 = vpop.f32.mrb[0].mxu0
        %v1047 = vpop.f32.mrb[0].mxu0
        %v1048 = vadd.f32 0.0, %v1047
        %v1049 = vpop.f32.mrb[0].mxu0
        %1050 = vmatprep.mubr.bf16.mxu0 0
        %1051 = vmatmul.mubr.bf16.gmra.mrb[0].mxu0 %v917
        %v1052 = vpop.f32.mrb[0].mxu0
        %v1053 = vadd.f32 0.0, %v1052
        %v1054 = vpop.f32.mrb[0].mxu0
        %v1055 = vpop.f32.mrb[0].mxu0
        %v1056 = vadd.f32 0.0, %v1055
        %v1057 = vpop.f32.mrb[0].mxu0
        %1058 = vmatprep.mubr.bf16.mxu0 0
        %1059 = vmatmul.mubr.bf16.gmra.mrb[0].mxu0 %v920
        %v1060 = vpop.f32.mrb[0].mxu0
        %v1061 = vadd.f32 0.0, %v1060
        %v1062 = vpop.f32.mrb[0].mxu0
        %v1063 = vpop.f32.mrb[0].mxu0
        %v1064 = vadd.f32 0.0, %v1063
        %v1065 = vpop.f32.mrb[0].mxu0
        %1066 = vmatprep.mubr.bf16.mxu0 0
        %1067 = vmatmul.mubr.bf16.gmra.mrb[0].mxu0 %v923
        %v1068 = vpop.f32.mrb[0].mxu0
        %v1069 = vadd.f32 0.0, %v1068
        %v1070 = vpop.f32.mrb[0].mxu0
        %v1071 = vpop.f32.mrb[0].mxu0
        %v1072 = vadd.f32 0.0, %v1071
        %v1073 = vpop.f32.mrb[0].mxu0
        %1074 = vmatprep.mubr.bf16.mxu0 0
        %1075 = vmatmul.mubr.bf16.gmra.mrb[0].mxu0 %v926
        %v1076 = vpop.f32.mrb[0].mxu0
        %v1077 = vadd.f32 0.0, %v1076
        %v1078 = vpop.f32.mrb[0].mxu0
        %v1079 = vpop.f32.mrb[0].mxu0
        %v1080 = vadd.f32 0.0, %v1079
        %v1081 = vpop.f32.mrb[0].mxu0
        %1082 = vmatprep.mubr.bf16.mxu0 0
        %1083 = vmatmul.mubr.bf16.gmra.mrb[0].mxu0 %v929
        %v1084 = vpop.f32.mrb[0].mxu0
        %v1085 = vadd.f32 0.0, %v1084
        %v1086 = vpop.f32.mrb[0].mxu0
        %v1087 = vpop.f32.mrb[0].mxu0
        %v1088 = vadd.f32 0.0, %v1087
        %v1089 = vpop.f32.mrb[0].mxu0
        %1090 = vmatprep.mubr.bf16.mxu0 0
        %1091 = vmatmul.mubr.bf16.gmra.mrb[0].mxu0 %v932
        %v1092 = vpop.f32.mrb[0].mxu0
        %v1093 = vadd.f32 0.0, %v1092
        %v1094 = vpop.f32.mrb[0].mxu0
        %v1095 = vpop.f32.mrb[0].mxu0
        %v1096 = vadd.f32 0.0, %v1095
        %v1097 = vpop.f32.mrb[0].mxu0
        %1098 = vdwg.mxu0
        %v1100 = vsel %vm698, %v819, 0
        %v1103 = vsel %vm698, %v820, 0
        %v1106 = vsel %vm698, %v821, 0
        %v1109 = vsel %vm698, %v822, 0
        %v1112 = vsel %vm698, %v823, 0
        %v1115 = vsel %vm698, %v824, 0
        %v1118 = vsel %vm698, %v825, 0
        %v1121 = vsel %vm698, %v826, 0
        %v1124 = vsel %vm698, %v827, 0
        %v1127 = vsel %vm698, %v828, 0
        %v1130 = vsel %vm698, %v829, 0
        %v1133 = vsel %vm698, %v830, 0
        %v1136 = vsel %vm698, %v831, 0
        %v1139 = vsel %vm698, %v832, 0
        %v1142 = vsel %vm698, %v833, 0
        %v1145 = vsel %vm698, %v834, 0
        %v1148 = vsel %vm934, %v835, 0
        %1150 = vmatprep.subr.bf16.mxu0 0
        %1151 = vmatpush1.bf16.msra.mxu0 %v1148
        %1152 = vmatprep.subr.bf16.mxu0 0
        %1153 = vmatpush1.bf16.msra.mxu0 0
        %1154 = vmatprep.subr.bf16.mxu0 0
        %1155 = vmatpush1.bf16.msra.mxu0 0
        %1156 = vmatprep.subr.bf16.mxu0 0
        %1157 = vmatpush1.bf16.msra.mxu0 0
        %1158 = vmatprep.subr.bf16.mxu0 0
        %1159 = vmatpush1.bf16.msra.mxu0 0
        %1160 = vmatprep.subr.bf16.mxu0 0
        %1161 = vmatpush1.bf16.msra.mxu0 0
        %1162 = vmatprep.subr.bf16.mxu0 0
        %1163 = vmatpush1.bf16.msra.mxu0 0
        %1164 = vmatprep.subr.bf16.mxu0 0
        %1165 = vmatpush1.bf16.msra.mxu0 0
        %1166 = vmatprep.subr.bf16.mxu0 0
        %1167 = vmatpush1.bf16.msra.mxu0 0
        %1168 = vmatprep.subr.bf16.mxu0 0
        %1169 = vmatpush1.bf16.msra.mxu0 0
        %1170 = vmatprep.subr.bf16.mxu0 0
        %1171 = vmatpush1.bf16.msra.mxu0 0
        %1172 = vmatprep.subr.bf16.mxu0 0
        %1173 = vmatpush1.bf16.msra.mxu0 0
        %1174 = vmatprep.subr.bf16.mxu0 0
        %1175 = vmatpush1.bf16.msra.mxu0 0
        %1176 = vmatprep.subr.bf16.mxu0 0
        %1177 = vmatpush1.bf16.msra.mxu0 0
        %1178 = vmatprep.subr.bf16.mxu0 0
        %1179 = vmatpush1.bf16.msra.mxu0 0
        %1180 = vmatprep.subr.bf16.mxu0 0
        %1181 = vmatpush1.bf16.msra.mxu0 0
        %1182 = vmatprep.mubr.bf16.mxu0 0
        %1183 = vmatmul.mubr.bf16.gmra.mrb[0].mxu0 %v1100
        %v1184 = vpop.f32.mrb[0].mxu0
        %v1185 = vadd.f32 %v973, %v1184
        %v1186 = vpop.f32.mrb[0].mxu0
        %v1187 = vpop.f32.mrb[0].mxu0
        %v1188 = vadd.f32 %v976, %v1187
        %v1189 = vpop.f32.mrb[0].mxu0
        %1190 = vmatprep.mubr.bf16.mxu0 0
        %1191 = vmatmul.mubr.bf16.gmra.mrb[0].mxu0 %v1103
        %v1192 = vpop.f32.mrb[0].mxu0
        %v1193 = vadd.f32 %v981, %v1192
        %v1194 = vpop.f32.mrb[0].mxu0
        %v1195 = vpop.f32.mrb[0].mxu0
        %v1196 = vadd.f32 %v984, %v1195
        %v1197 = vpop.f32.mrb[0].mxu0
        %1198 = vmatprep.mubr.bf16.mxu0 0
        %1199 = vmatmul.mubr.bf16.gmra.mrb[0].mxu0 %v1106
        %v1200 = vpop.f32.mrb[0].mxu0
        %v1201 = vadd.f32 %v989, %v1200
        %v1202 = vpop.f32.mrb[0].mxu0
        %v1203 = vpop.f32.mrb[0].mxu0
        %v1204 = vadd.f32 %v992, %v1203
        %v1205 = vpop.f32.mrb[0].mxu0
        %1206 = vmatprep.mubr.bf16.mxu0 0
        %1207 = vmatmul.mubr.bf16.gmra.mrb[0].mxu0 %v1109
        %v1208 = vpop.f32.mrb[0].mxu0
        %v1209 = vadd.f32 %v997, %v1208
        %v1210 = vpop.f32.mrb[0].mxu0
        %v1211 = vpop.f32.mrb[0].mxu0
        %v1212 = vadd.f32 %v1000, %v1211
        %v1213 = vpop.f32.mrb[0].mxu0
        %1214 = vmatprep.mubr.bf16.mxu0 0
        %1215 = vmatmul.mubr.bf16.gmra.mrb[0].mxu0 %v1112
        %v1216 = vpop.f32.mrb[0].mxu0
        %v1217 = vadd.f32 %v1005, %v1216
        %v1218 = vpop.f32.mrb[0].mxu0
        %v1219 = vpop.f32.mrb[0].mxu0
        %v1220 = vadd.f32 %v1008, %v1219
        %v1221 = vpop.f32.mrb[0].mxu0
        %1222 = vmatprep.mubr.bf16.mxu0 0
        %1223 = vmatmul.mubr.bf16.gmra.mrb[0].mxu0 %v1115
        %v1224 = vpop.f32.mrb[0].mxu0
        %v1225 = vadd.f32 %v1013, %v1224
        %v1226 = vpop.f32.mrb[0].mxu0
        %v1227 = vpop.f32.mrb[0].mxu0
        %v1228 = vadd.f32 %v1016, %v1227
        %v1229 = vpop.f32.mrb[0].mxu0
        %1230 = vmatprep.mubr.bf16.mxu0 0
        %1231 = vmatmul.mubr.bf16.gmra.mrb[0].mxu0 %v1118
        %v1232 = vpop.f32.mrb[0].mxu0
        %v1233 = vadd.f32 %v1021, %v1232
        %v1234 = vpop.f32.mrb[0].mxu0
        %v1235 = vpop.f32.mrb[0].mxu0
        %v1236 = vadd.f32 %v1024, %v1235
        %v1237 = vpop.f32.mrb[0].mxu0
        %1238 = vmatprep.mubr.bf16.mxu0 0
        %1239 = vmatmul.mubr.bf16.gmra.mrb[0].mxu0 %v1121
        %v1240 = vpop.f32.mrb[0].mxu0
        %v1241 = vadd.f32 %v1029, %v1240
        %v1242 = vpop.f32.mrb[0].mxu0
        %v1243 = vpop.f32.mrb[0].mxu0
        %v1244 = vadd.f32 %v1032, %v1243
        %v1245 = vpop.f32.mrb[0].mxu0
        %1246 = vmatprep.mubr.bf16.mxu0 0
        %1247 = vmatmul.mubr.bf16.gmra.mrb[0].mxu0 %v1124
        %v1248 = vpop.f32.mrb[0].mxu0
        %v1249 = vadd.f32 %v1037, %v1248
        %v1250 = vpop.f32.mrb[0].mxu0
        %v1251 = vpop.f32.mrb[0].mxu0
        %v1252 = vadd.f32 %v1040, %v1251
        %v1253 = vpop.f32.mrb[0].mxu0
        %1254 = vmatprep.mubr.bf16.mxu0 0
        %1255 = vmatmul.mubr.bf16.gmra.mrb[0].mxu0 %v1127
        %v1256 = vpop.f32.mrb[0].mxu0
        %v1257 = vadd.f32 %v1045, %v1256
        %v1258 = vpop.f32.mrb[0].mxu0
        %v1259 = vpop.f32.mrb[0].mxu0
        %v1260 = vadd.f32 %v1048, %v1259
        %v1261 = vpop.f32.mrb[0].mxu0
        %1262 = vmatprep.mubr.bf16.mxu0 0
        %1263 = vmatmul.mubr.bf16.gmra.mrb[0].mxu0 %v1130
        %v1264 = vpop.f32.mrb[0].mxu0
        %v1265 = vadd.f32 %v1053, %v1264
        %v1266 = vpop.f32.mrb[0].mxu0
        %v1267 = vpop.f32.mrb[0].mxu0
        %v1268 = vadd.f32 %v1056, %v1267
        %v1269 = vpop.f32.mrb[0].mxu0
        %1270 = vmatprep.mubr.bf16.mxu0 0
        %1271 = vmatmul.mubr.bf16.gmra.mrb[0].mxu0 %v1133
        %v1272 = vpop.f32.mrb[0].mxu0
        %v1273 = vadd.f32 %v1061, %v1272
        %v1274 = vpop.f32.mrb[0].mxu0
        %v1275 = vpop.f32.mrb[0].mxu0
        %v1276 = vadd.f32 %v1064, %v1275
        %v1277 = vpop.f32.mrb[0].mxu0
        %1278 = vmatprep.mubr.bf16.mxu0 0
        %1279 = vmatmul.mubr.bf16.gmra.mrb[0].mxu0 %v1136
        %v1280 = vpop.f32.mrb[0].mxu0
        %v1281 = vadd.f32 %v1069, %v1280
        %v1282 = vpop.f32.mrb[0].mxu0
        %v1283 = vpop.f32.mrb[0].mxu0
        %v1284 = vadd.f32 %v1072, %v1283
        %v1285 = vpop.f32.mrb[0].mxu0
        %1286 = vmatprep.mubr.bf16.mxu0 0
        %1287 = vmatmul.mubr.bf16.gmra.mrb[0].mxu0 %v1139
        %v1288 = vpop.f32.mrb[0].mxu0
        %v1289 = vadd.f32 %v1077, %v1288
        %v1290 = vpop.f32.mrb[0].mxu0
        %v1291 = vpop.f32.mrb[0].mxu0
        %v1292 = vadd.f32 %v1080, %v1291
        %v1293 = vpop.f32.mrb[0].mxu0
        %1294 = vmatprep.mubr.bf16.mxu0 0
        %1295 = vmatmul.mubr.bf16.gmra.mrb[0].mxu0 %v1142
        %v1296 = vpop.f32.mrb[0].mxu0
        %v1297 = vadd.f32 %v1085, %v1296
        %v1298 = vpop.f32.mrb[0].mxu0
        %v1299 = vpop.f32.mrb[0].mxu0
        %v1300 = vadd.f32 %v1088, %v1299
        %v1301 = vpop.f32.mrb[0].mxu0
        %1302 = vmatprep.mubr.bf16.mxu0 0
        %1303 = vmatmul.mubr.bf16.gmra.mrb[0].mxu0 %v1145
        %v1304 = vpop.f32.mrb[0].mxu0
        %v1305 = vadd.f32 %v1093, %v1304
        %v1306 = vpop.f32.mrb[0].mxu0
        %v1307 = vpop.f32.mrb[0].mxu0
        %v1308 = vadd.f32 %v1096, %v1307
        %v1309 = vpop.f32.mrb[0].mxu0
        %1310 = vdwg.mxu0
        %v1311 = vld [vmem:[#allocation2 + $0x2] sm:$0xff]
        %v1312 = vld [vmem:[#allocation2 + $0xa] sm:$0xff]
        %v1313 = vld [vmem:[#allocation2 + $0x1a] sm:$0xff]
        %v1314 = vld [vmem:[#allocation2 + $0x22] sm:$0xff]
        %v1315 = vld [vmem:[#allocation2 + $0x32] sm:$0xff]
        %v1316 = vld [vmem:[#allocation2 + $0x3a] sm:$0xff]
        %v1317 = vld [vmem:[#allocation2 + $0x4a] sm:$0xff]
        %v1318 = vld [vmem:[#allocation2 + $0x52] sm:$0xff]
        %v1319 = vld [vmem:[#allocation2 + $0x62] sm:$0xff]
        %v1320 = vld [vmem:[#allocation2 + $0x6a] sm:$0xff]
        %v1321 = vld [vmem:[#allocation2 + $0x7a] sm:$0xff]
        %v1322 = vld [vmem:[#allocation2 + $0x82] sm:$0xff]
        %v1323 = vld [vmem:[#allocation2 + $0x92] sm:$0xff]
        %v1324 = vld [vmem:[#allocation2 + $0x9a] sm:$0xff]
        %v1325 = vld [vmem:[#allocation2 + $0xaa] sm:$0xff]
        %v1326 = vld [vmem:[#allocation2 + $0xb2] sm:$0xff]
        %v1327 = vld [vmem:[#allocation2 + $0xc2] sm:$0xff]
        %v1328 = vld [vmem:[#allocation2 + $0xca] sm:$0xff]
        %v1329 = vld [vmem:[#allocation2 + $0xda] sm:$0xff]
        %v1330 = vld [vmem:[#allocation2 + $0xe2] sm:$0xff]
        %v1331 = vld [vmem:[#allocation2 + $0xf2] sm:$0xff]
        %v1332 = vld [vmem:[#allocation2 + $0xfa] sm:$0xff]
        %v1333 = vld [vmem:[#allocation2 + $0x10a] sm:$0xff]
        %v1334 = vld [vmem:[#allocation2 + $0x112] sm:$0xff]
        %v1335 = vld [vmem:[#allocation2 + $0x122] sm:$0xff]
        %v1336 = vld [vmem:[#allocation2 + $0x12a] sm:$0xff]
        %v1337 = vld [vmem:[#allocation2 + $0x13a] sm:$0xff]
        %v1338 = vld [vmem:[#allocation2 + $0x142] sm:$0xff]
        %v1339 = vld [vmem:[#allocation2 + $0x152] sm:$0xff]
        %v1340 = vld [vmem:[#allocation2 + $0x15a] sm:$0xff]
        %v1341 = vld [vmem:[#allocation2 + $0x16a] sm:$0xff]
        %v1342 = vld [vmem:[#allocation2 + $0x172] sm:$0xff]
        %v1343 = vpack.c.bf16 %v1312, %v1311
        %v1344 = vpack.c.bf16 %v1314, %v1313
        %v1345 = vpack.c.bf16 %v1316, %v1315
        %v1346 = vpack.c.bf16 %v1318, %v1317
        %v1347 = vpack.c.bf16 %v1320, %v1319
        %v1348 = vpack.c.bf16 %v1322, %v1321
        %v1349 = vpack.c.bf16 %v1324, %v1323
        %v1350 = vpack.c.bf16 %v1326, %v1325
        %v1351 = vpack.c.bf16 %v1328, %v1327
        %v1352 = vpack.c.bf16 %v1330, %v1329
        %v1353 = vpack.c.bf16 %v1332, %v1331
        %v1354 = vpack.c.bf16 %v1334, %v1333
        %v1355 = vpack.c.bf16 %v1336, %v1335
        %v1356 = vpack.c.bf16 %v1338, %v1337
        %v1357 = vpack.c.bf16 %v1340, %v1339
        %v1358 = vpack.c.bf16 %v1342, %v1341
        %s1359 = scalar_lea.vmem %s3, 8
        %v1360 = vld [vmem:[%s1359] sm:$0xf]
        %v1362 = vsel %vm698, %v1343, 0
        %v1365 = vsel %vm698, %v1344, 0
        %v1368 = vsel %vm698, %v1345, 0
        %v1371 = vsel %vm698, %v1346, 0
        %v1374 = vsel %vm698, %v1347, 0
        %v1377 = vsel %vm698, %v1348, 0
        %v1380 = vsel %vm698, %v1349, 0
        %v1383 = vsel %vm698, %v1350, 0
        %v1386 = vsel %vm698, %v1351, 0
        %v1389 = vsel %vm698, %v1352, 0
        %v1392 = vsel %vm698, %v1353, 0
        %v1395 = vsel %vm698, %v1354, 0
        %v1398 = vsel %vm698, %v1355, 0
        %v1401 = vsel %vm698, %v1356, 0
        %v1404 = vsel %vm698, %v1357, 0
        %v1407 = vsel %vm698, %v1358, 0
        %v1410 = vsel %vm934, %v1360, 0
        %1412 = vmatprep.subr.bf16.mxu0 0
        %1413 = vmatpush1.bf16.msra.mxu0 %v1410
        %1414 = vmatprep.subr.bf16.mxu0 0
        %1415 = vmatpush1.bf16.msra.mxu0 0
        %1416 = vmatprep.subr.bf16.mxu0 0
        %1417 = vmatpush1.bf16.msra.mxu0 0
        %1418 = vmatprep.subr.bf16.mxu0 0
        %1419 = vmatpush1.bf16.msra.mxu0 0
        %1420 = vmatprep.subr.bf16.mxu0 0
        %1421 = vmatpush1.bf16.msra.mxu0 0
        %1422 = vmatprep.subr.bf16.mxu0 0
        %1423 = vmatpush1.bf16.msra.mxu0 0
        %1424 = vmatprep.subr.bf16.mxu0 0
        %1425 = vmatpush1.bf16.msra.mxu0 0
        %1426 = vmatprep.subr.bf16.mxu0 0
        %1427 = vmatpush1.bf16.msra.mxu0 0
        %1428 = vmatprep.subr.bf16.mxu0 0
        %1429 = vmatpush1.bf16.msra.mxu0 0
        %1430 = vmatprep.subr.bf16.mxu0 0
        %1431 = vmatpush1.bf16.msra.mxu0 0
        %1432 = vmatprep.subr.bf16.mxu0 0
        %1433 = vmatpush1.bf16.msra.mxu0 0
        %1434 = vmatprep.subr.bf16.mxu0 0
        %1435 = vmatpush1.bf16.msra.mxu0 0
        %1436 = vmatprep.subr.bf16.mxu0 0
        %1437 = vmatpush1.bf16.msra.mxu0 0
        %1438 = vmatprep.subr.bf16.mxu0 0
        %1439 = vmatpush1.bf16.msra.mxu0 0
        %1440 = vmatprep.subr.bf16.mxu0 0
        %1441 = vmatpush1.bf16.msra.mxu0 0
        %1442 = vmatprep.subr.bf16.mxu0 0
        %1443 = vmatpush1.bf16.msra.mxu0 0
        %1444 = vmatprep.mubr.bf16.mxu0 0
        %1445 = vmatmul.mubr.bf16.gmra.mrb[0].mxu0 %v1362
        %v1446 = vpop.f32.mrb[0].mxu0
        %v1447 = vadd.f32 0.0, %v1446
        %v1448 = vpop.f32.mrb[0].mxu0
        %v1449 = vpop.f32.mrb[0].mxu0
        %v1450 = vadd.f32 0.0, %v1449
        %v1451 = vpop.f32.mrb[0].mxu0
        %1452 = vmatprep.mubr.bf16.mxu0 0
        %1453 = vmatmul.mubr.bf16.gmra.mrb[0].mxu0 %v1365
        %v1454 = vpop.f32.mrb[0].mxu0
        %v1455 = vadd.f32 0.0, %v1454
        %v1456 = vpop.f32.mrb[0].mxu0
        %v1457 = vpop.f32.mrb[0].mxu0
        %v1458 = vadd.f32 0.0, %v1457
        %v1459 = vpop.f32.mrb[0].mxu0
        %1460 = vmatprep.mubr.bf16.mxu0 0
        %1461 = vmatmul.mubr.bf16.gmra.mrb[0].mxu0 %v1368
        %v1462 = vpop.f32.mrb[0].mxu0
        %v1463 = vadd.f32 0.0, %v1462
        %v1464 = vpop.f32.mrb[0].mxu0
        %v1465 = vpop.f32.mrb[0].mxu0
        %v1466 = vadd.f32 0.0, %v1465
        %v1467 = vpop.f32.mrb[0].mxu0
        %1468 = vmatprep.mubr.bf16.mxu0 0
        %1469 = vmatmul.mubr.bf16.gmra.mrb[0].mxu0 %v1371
        %v1470 = vpop.f32.mrb[0].mxu0
        %v1471 = vadd.f32 0.0, %v1470
        %v1472 = vpop.f32.mrb[0].mxu0
        %v1473 = vpop.f32.mrb[0].mxu0
        %v1474 = vadd.f32 0.0, %v1473
        %v1475 = vpop.f32.mrb[0].mxu0
        %1476 = vmatprep.mubr.bf16.mxu0 0
        %1477 = vmatmul.mubr.bf16.gmra.mrb[0].mxu0 %v1374
        %v1478 = vpop.f32.mrb[0].mxu0
        %v1479 = vadd.f32 0.0, %v1478
        %v1480 = vpop.f32.mrb[0].mxu0
        %v1481 = vpop.f32.mrb[0].mxu0
        %v1482 = vadd.f32 0.0, %v1481
        %v1483 = vpop.f32.mrb[0].mxu0
        %1484 = vmatprep.mubr.bf16.mxu0 0
        %1485 = vmatmul.mubr.bf16.gmra.mrb[0].mxu0 %v1377
        %v1486 = vpop.f32.mrb[0].mxu0
        %v1487 = vadd.f32 0.0, %v1486
        %v1488 = vpop.f32.mrb[0].mxu0
        %v1489 = vpop.f32.mrb[0].mxu0
        %v1490 = vadd.f32 0.0, %v1489
        %v1491 = vpop.f32.mrb[0].mxu0
        %1492 = vmatprep.mubr.bf16.mxu0 0
        %1493 = vmatmul.mubr.bf16.gmra.mrb[0].mxu0 %v1380
        %v1494 = vpop.f32.mrb[0].mxu0
        %v1495 = vadd.f32 0.0, %v1494
        %v1496 = vpop.f32.mrb[0].mxu0
        %v1497 = vpop.f32.mrb[0].mxu0
        %v1498 = vadd.f32 0.0, %v1497
        %v1499 = vpop.f32.mrb[0].mxu0
        %1500 = vmatprep.mubr.bf16.mxu0 0
        %1501 = vmatmul.mubr.bf16.gmra.mrb[0].mxu0 %v1383
        %v1502 = vpop.f32.mrb[0].mxu0
        %v1503 = vadd.f32 0.0, %v1502
        %v1504 = vpop.f32.mrb[0].mxu0
        %v1505 = vpop.f32.mrb[0].mxu0
        %v1506 = vadd.f32 0.0, %v1505
        %v1507 = vpop.f32.mrb[0].mxu0
        %1508 = vmatprep.mubr.bf16.mxu0 0
        %1509 = vmatmul.mubr.bf16.gmra.mrb[0].mxu0 %v1386
        %v1510 = vpop.f32.mrb[0].mxu0
        %v1511 = vadd.f32 0.0, %v1510
        %v1512 = vpop.f32.mrb[0].mxu0
        %v1513 = vpop.f32.mrb[0].mxu0
        %v1514 = vadd.f32 0.0, %v1513
        %v1515 = vpop.f32.mrb[0].mxu0
        %1516 = vmatprep.mubr.bf16.mxu0 0
        %1517 = vmatmul.mubr.bf16.gmra.mrb[0].mxu0 %v1389
        %v1518 = vpop.f32.mrb[0].mxu0
        %v1519 = vadd.f32 0.0, %v1518
        %v1520 = vpop.f32.mrb[0].mxu0
        %v1521 = vpop.f32.mrb[0].mxu0
        %v1522 = vadd.f32 0.0, %v1521
        %v1523 = vpop.f32.mrb[0].mxu0
        %1524 = vmatprep.mubr.bf16.mxu0 0
        %1525 = vmatmul.mubr.bf16.gmra.mrb[0].mxu0 %v1392
        %v1526 = vpop.f32.mrb[0].mxu0
        %v1527 = vadd.f32 0.0, %v1526
        %v1528 = vpop.f32.mrb[0].mxu0
        %v1529 = vpop.f32.mrb[0].mxu0
        %v1530 = vadd.f32 0.0, %v1529
        %v1531 = vpop.f32.mrb[0].mxu0
        %1532 = vmatprep.mubr.bf16.mxu0 0
        %1533 = vmatmul.mubr.bf16.gmra.mrb[0].mxu0 %v1395
        %v1534 = vpop.f32.mrb[0].mxu0
        %v1535 = vadd.f32 0.0, %v1534
        %v1536 = vpop.f32.mrb[0].mxu0
        %v1537 = vpop.f32.mrb[0].mxu0
        %v1538 = vadd.f32 0.0, %v1537
        %v1539 = vpop.f32.mrb[0].mxu0
        %1540 = vmatprep.mubr.bf16.mxu0 0
        %1541 = vmatmul.mubr.bf16.gmra.mrb[0].mxu0 %v1398
        %v1542 = vpop.f32.mrb[0].mxu0
        %v1543 = vadd.f32 0.0, %v1542
        %v1544 = vpop.f32.mrb[0].mxu0
        %v1545 = vpop.f32.mrb[0].mxu0
        %v1546 = vadd.f32 0.0, %v1545
        %v1547 = vpop.f32.mrb[0].mxu0
        %1548 = vmatprep.mubr.bf16.mxu0 0
        %1549 = vmatmul.mubr.bf16.gmra.mrb[0].mxu0 %v1401
        %v1550 = vpop.f32.mrb[0].mxu0
        %v1551 = vadd.f32 0.0, %v1550
        %v1552 = vpop.f32.mrb[0].mxu0
        %v1553 = vpop.f32.mrb[0].mxu0
        %v1554 = vadd.f32 0.0, %v1553
        %v1555 = vpop.f32.mrb[0].mxu0
        %1556 = vmatprep.mubr.bf16.mxu0 0
        %1557 = vmatmul.mubr.bf16.gmra.mrb[0].mxu0 %v1404
        %v1558 = vpop.f32.mrb[0].mxu0
        %v1559 = vadd.f32 0.0, %v1558
        %v1560 = vpop.f32.mrb[0].mxu0
        %v1561 = vpop.f32.mrb[0].mxu0
        %v1562 = vadd.f32 0.0, %v1561
        %v1563 = vpop.f32.mrb[0].mxu0
        %1564 = vmatprep.mubr.bf16.mxu0 0
        %1565 = vmatmul.mubr.bf16.gmra.mrb[0].mxu0 %v1407
        %v1566 = vpop.f32.mrb[0].mxu0
        %v1567 = vadd.f32 0.0, %v1566
        %v1568 = vpop.f32.mrb[0].mxu0
        %v1569 = vpop.f32.mrb[0].mxu0
        %v1570 = vadd.f32 0.0, %v1569
        %v1571 = vpop.f32.mrb[0].mxu0
        %1572 = vdwg.mxu0
        %v1573 = vadd.f32 %v1185, %v1447
        %v1574 = vadd.f32 %v1188, %v1450
        %v1575 = vadd.f32 %v1193, %v1455
        %v1576 = vadd.f32 %v1196, %v1458
        %v1577 = vadd.f32 %v1201, %v1463
        %v1578 = vadd.f32 %v1204, %v1466
        %v1579 = vadd.f32 %v1209, %v1471
        %v1580 = vadd.f32 %v1212, %v1474
        %v1581 = vadd.f32 %v1217, %v1479
        %v1582 = vadd.f32 %v1220, %v1482
        %v1583 = vadd.f32 %v1225, %v1487
        %v1584 = vadd.f32 %v1228, %v1490
        %v1585 = vadd.f32 %v1233, %v1495
        %v1586 = vadd.f32 %v1236, %v1498
        %v1587 = vadd.f32 %v1241, %v1503
        %v1588 = vadd.f32 %v1244, %v1506
        %v1589 = vadd.f32 %v1249, %v1511
        %v1590 = vadd.f32 %v1252, %v1514
        %v1591 = vadd.f32 %v1257, %v1519
        %v1592 = vadd.f32 %v1260, %v1522
        %v1593 = vadd.f32 %v1265, %v1527
        %v1594 = vadd.f32 %v1268, %v1530
        %v1595 = vadd.f32 %v1273, %v1535
        %v1596 = vadd.f32 %v1276, %v1538
        %v1597 = vadd.f32 %v1281, %v1543
        %v1598 = vadd.f32 %v1284, %v1546
        %v1599 = vadd.f32 %v1289, %v1551
        %v1600 = vadd.f32 %v1292, %v1554
        %v1601 = vadd.f32 %v1297, %v1559
        %v1602 = vadd.f32 %v1300, %v1562
        %v1603 = vadd.f32 %v1305, %v1567
        %v1604 = vadd.f32 %v1308, %v1570
        %v1605 = vld [vmem:[%s754] sm:$0xff]
        %v1606 = vld [vmem:[%s754 + $0x8] sm:$0xff]
        %v1607 = vld [vmem:[%s754 + $0x18] sm:$0xff]
        %v1608 = vld [vmem:[%s754 + $0x20] sm:$0xff]
        %v1609 = vld [vmem:[%s754 + $0x30] sm:$0xff]
        %v1610 = vld [vmem:[%s754 + $0x38] sm:$0xff]
        %v1611 = vld [vmem:[%s754 + $0x48] sm:$0xff]
        %v1612 = vld [vmem:[%s754 + $0x50] sm:$0xff]
        %v1613 = vld [vmem:[%s754 + $0x60] sm:$0xff]
        %v1614 = vld [vmem:[%s754 + $0x68] sm:$0xff]
        %v1615 = vld [vmem:[%s754 + $0x78] sm:$0xff]
        %v1616 = vld [vmem:[%s754 + $0x80] sm:$0xff]
        %v1617 = vld [vmem:[%s754 + $0x90] sm:$0xff]
        %v1618 = vld [vmem:[%s754 + $0x98] sm:$0xff]
        %v1619 = vld [vmem:[%s754 + $0xa8] sm:$0xff]
        %v1620 = vld [vmem:[%s754 + $0xb0] sm:$0xff]
        %v1621 = vld [vmem:[%s754 + $0xc0] sm:$0xff]
        %v1622 = vld [vmem:[%s754 + $0xc8] sm:$0xff]
        %v1623 = vld [vmem:[%s754 + $0xd8] sm:$0xff]
        %v1624 = vld [vmem:[%s754 + $0xe0] sm:$0xff]
        %v1625 = vld [vmem:[%s754 + $0xf0] sm:$0xff]
        %v1626 = vld [vmem:[%s754 + $0xf8] sm:$0xff]
        %v1627 = vld [vmem:[%s754 + $0x108] sm:$0xff]
        %v1628 = vld [vmem:[%s754 + $0x110] sm:$0xff]
        %v1629 = vld [vmem:[%s754 + $0x120] sm:$0xff]
        %v1630 = vld [vmem:[%s754 + $0x128] sm:$0xff]
        %v1631 = vld [vmem:[%s754 + $0x138] sm:$0xff]
        %v1632 = vld [vmem:[%s754 + $0x140] sm:$0xff]
        %v1633 = vld [vmem:[%s754 + $0x150] sm:$0xff]
        %v1634 = vld [vmem:[%s754 + $0x158] sm:$0xff]
        %v1635 = vld [vmem:[%s754 + $0x168] sm:$0xff]
        %v1636 = vld [vmem:[%s754 + $0x170] sm:$0xff]
        %v1637 = vpack.c.bf16 %v1606, %v1605
        %v1638 = vpack.c.bf16 %v1608, %v1607
        %v1639 = vpack.c.bf16 %v1610, %v1609
        %v1640 = vpack.c.bf16 %v1612, %v1611
        %v1641 = vpack.c.bf16 %v1614, %v1613
        %v1642 = vpack.c.bf16 %v1616, %v1615
        %v1643 = vpack.c.bf16 %v1618, %v1617
        %v1644 = vpack.c.bf16 %v1620, %v1619
        %v1645 = vpack.c.bf16 %v1622, %v1621
        %v1646 = vpack.c.bf16 %v1624, %v1623
        %v1647 = vpack.c.bf16 %v1626, %v1625
        %v1648 = vpack.c.bf16 %v1628, %v1627
        %v1649 = vpack.c.bf16 %v1630, %v1629
        %v1650 = vpack.c.bf16 %v1632, %v1631
        %v1651 = vpack.c.bf16 %v1634, %v1633
        %v1652 = vpack.c.bf16 %v1636, %v1635
        %s1653 = scalar_lea.vmem %s3, 12
        %v1654 = vld [vmem:[%s1653] sm:$0xf]
        %v1656 = vsel %vm698, %v1637, 0
        %v1659 = vsel %vm698, %v1638, 0
        %v1662 = vsel %vm698, %v1639, 0
        %v1665 = vsel %vm698, %v1640, 0
        %v1668 = vsel %vm698, %v1641, 0
        %v1671 = vsel %vm698, %v1642, 0
        %v1674 = vsel %vm698, %v1643, 0
        %v1677 = vsel %vm698, %v1644, 0
        %v1680 = vsel %vm698, %v1645, 0
        %v1683 = vsel %vm698, %v1646, 0
        %v1686 = vsel %vm698, %v1647, 0
        %v1689 = vsel %vm698, %v1648, 0
        %v1692 = vsel %vm698, %v1649, 0
        %v1695 = vsel %vm698, %v1650, 0
        %v1698 = vsel %vm698, %v1651, 0
        %v1701 = vsel %vm698, %v1652, 0
        %v1704 = vsel %vm934, %v1654, 0
        %1706 = vmatprep.subr.bf16.mxu0 0
        %1707 = vmatpush1.bf16.msra.mxu0 %v1704
        %1708 = vmatprep.subr.bf16.mxu0 0
        %1709 = vmatpush1.bf16.msra.mxu0 0
        %1710 = vmatprep.subr.bf16.mxu0 0
        %1711 = vmatpush1.bf16.msra.mxu0 0
        %1712 = vmatprep.subr.bf16.mxu0 0
        %1713 = vmatpush1.bf16.msra.mxu0 0
        %1714 = vmatprep.subr.bf16.mxu0 0
        %1715 = vmatpush1.bf16.msra.mxu0 0
        %1716 = vmatprep.subr.bf16.mxu0 0
        %1717 = vmatpush1.bf16.msra.mxu0 0
        %1718 = vmatprep.subr.bf16.mxu0 0
        %1719 = vmatpush1.bf16.msra.mxu0 0
        %1720 = vmatprep.subr.bf16.mxu0 0
        %1721 = vmatpush1.bf16.msra.mxu0 0
        %1722 = vmatprep.subr.bf16.mxu0 0
        %1723 = vmatpush1.bf16.msra.mxu0 0
        %1724 = vmatprep.subr.bf16.mxu0 0
        %1725 = vmatpush1.bf16.msra.mxu0 0
        %1726 = vmatprep.subr.bf16.mxu0 0
        %1727 = vmatpush1.bf16.msra.mxu0 0
        %1728 = vmatprep.subr.bf16.mxu0 0
        %1729 = vmatpush1.bf16.msra.mxu0 0
        %1730 = vmatprep.subr.bf16.mxu0 0
        %1731 = vmatpush1.bf16.msra.mxu0 0
        %1732 = vmatprep.subr.bf16.mxu0 0
        %1733 = vmatpush1.bf16.msra.mxu0 0
        %1734 = vmatprep.subr.bf16.mxu0 0
        %1735 = vmatpush1.bf16.msra.mxu0 0
        %1736 = vmatprep.subr.bf16.mxu0 0
        %1737 = vmatpush1.bf16.msra.mxu0 0
        %1738 = vmatprep.mubr.bf16.mxu0 0
        %1739 = vmatmul.mubr.bf16.gmra.mrb[0].mxu0 %v1656
        %v1740 = vpop.f32.mrb[0].mxu0
        %v1741 = vadd.f32 0.0, %v1740
        %v1742 = vpop.f32.mrb[0].mxu0
        %v1743 = vpop.f32.mrb[0].mxu0
        %v1744 = vadd.f32 0.0, %v1743
        %v1745 = vpop.f32.mrb[0].mxu0
        %1746 = vmatprep.mubr.bf16.mxu0 0
        %1747 = vmatmul.mubr.bf16.gmra.mrb[0].mxu0 %v1659
        %v1748 = vpop.f32.mrb[0].mxu0
        %v1749 = vadd.f32 0.0, %v1748
        %v1750 = vpop.f32.mrb[0].mxu0
        %v1751 = vpop.f32.mrb[0].mxu0
        %v1752 = vadd.f32 0.0, %v1751
        %v1753 = vpop.f32.mrb[0].mxu0
        %1754 = vmatprep.mubr.bf16.mxu0 0
        %1755 = vmatmul.mubr.bf16.gmra.mrb[0].mxu0 %v1662
        %v1756 = vpop.f32.mrb[0].mxu0
        %v1757 = vadd.f32 0.0, %v1756
        %v1758 = vpop.f32.mrb[0].mxu0
        %v1759 = vpop.f32.mrb[0].mxu0
        %v1760 = vadd.f32 0.0, %v1759
        %v1761 = vpop.f32.mrb[0].mxu0
        %1762 = vmatprep.mubr.bf16.mxu0 0
        %1763 = vmatmul.mubr.bf16.gmra.mrb[0].mxu0 %v1665
        %v1764 = vpop.f32.mrb[0].mxu0
        %v1765 = vadd.f32 0.0, %v1764
        %v1766 = vpop.f32.mrb[0].mxu0
        %v1767 = vpop.f32.mrb[0].mxu0
        %v1768 = vadd.f32 0.0, %v1767
        %v1769 = vpop.f32.mrb[0].mxu0
        %1770 = vmatprep.mubr.bf16.mxu0 0
        %1771 = vmatmul.mubr.bf16.gmra.mrb[0].mxu0 %v1668
        %v1772 = vpop.f32.mrb[0].mxu0
        %v1773 = vadd.f32 0.0, %v1772
        %v1774 = vpop.f32.mrb[0].mxu0
        %v1775 = vpop.f32.mrb[0].mxu0
        %v1776 = vadd.f32 0.0, %v1775
        %v1777 = vpop.f32.mrb[0].mxu0
        %1778 = vmatprep.mubr.bf16.mxu0 0
        %1779 = vmatmul.mubr.bf16.gmra.mrb[0].mxu0 %v1671
        %v1780 = vpop.f32.mrb[0].mxu0
        %v1781 = vadd.f32 0.0, %v1780
        %v1782 = vpop.f32.mrb[0].mxu0
        %v1783 = vpop.f32.mrb[0].mxu0
        %v1784 = vadd.f32 0.0, %v1783
        %v1785 = vpop.f32.mrb[0].mxu0
        %1786 = vmatprep.mubr.bf16.mxu0 0
        %1787 = vmatmul.mubr.bf16.gmra.mrb[0].mxu0 %v1674
        %v1788 = vpop.f32.mrb[0].mxu0
        %v1789 = vadd.f32 0.0, %v1788
        %v1790 = vpop.f32.mrb[0].mxu0
        %v1791 = vpop.f32.mrb[0].mxu0
        %v1792 = vadd.f32 0.0, %v1791
        %v1793 = vpop.f32.mrb[0].mxu0
        %1794 = vmatprep.mubr.bf16.mxu0 0
        %1795 = vmatmul.mubr.bf16.gmra.mrb[0].mxu0 %v1677
        %v1796 = vpop.f32.mrb[0].mxu0
        %v1797 = vadd.f32 0.0, %v1796
        %v1798 = vpop.f32.mrb[0].mxu0
        %v1799 = vpop.f32.mrb[0].mxu0
        %v1800 = vadd.f32 0.0, %v1799
        %v1801 = vpop.f32.mrb[0].mxu0
        %1802 = vmatprep.mubr.bf16.mxu0 0
        %1803 = vmatmul.mubr.bf16.gmra.mrb[0].mxu0 %v1680
        %v1804 = vpop.f32.mrb[0].mxu0
        %v1805 = vadd.f32 0.0, %v1804
        %v1806 = vpop.f32.mrb[0].mxu0
        %v1807 = vpop.f32.mrb[0].mxu0
        %v1808 = vadd.f32 0.0, %v1807
        %v1809 = vpop.f32.mrb[0].mxu0
        %1810 = vmatprep.mubr.bf16.mxu0 0
        %1811 = vmatmul.mubr.bf16.gmra.mrb[0].mxu0 %v1683
        %v1812 = vpop.f32.mrb[0].mxu0
        %v1813 = vadd.f32 0.0, %v1812
        %v1814 = vpop.f32.mrb[0].mxu0
        %v1815 = vpop.f32.mrb[0].mxu0
        %v1816 = vadd.f32 0.0, %v1815
        %v1817 = vpop.f32.mrb[0].mxu0
        %1818 = vmatprep.mubr.bf16.mxu0 0
        %1819 = vmatmul.mubr.bf16.gmra.mrb[0].mxu0 %v1686
        %v1820 = vpop.f32.mrb[0].mxu0
        %v1821 = vadd.f32 0.0, %v1820
        %v1822 = vpop.f32.mrb[0].mxu0
        %v1823 = vpop.f32.mrb[0].mxu0
        %v1824 = vadd.f32 0.0, %v1823
        %v1825 = vpop.f32.mrb[0].mxu0
        %1826 = vmatprep.mubr.bf16.mxu0 0
        %1827 = vmatmul.mubr.bf16.gmra.mrb[0].mxu0 %v1689
        %v1828 = vpop.f32.mrb[0].mxu0
        %v1829 = vadd.f32 0.0, %v1828
        %v1830 = vpop.f32.mrb[0].mxu0
        %v1831 = vpop.f32.mrb[0].mxu0
        %v1832 = vadd.f32 0.0, %v1831
        %v1833 = vpop.f32.mrb[0].mxu0
        %1834 = vmatprep.mubr.bf16.mxu0 0
        %1835 = vmatmul.mubr.bf16.gmra.mrb[0].mxu0 %v1692
        %v1836 = vpop.f32.mrb[0].mxu0
        %v1837 = vadd.f32 0.0, %v1836
        %v1838 = vpop.f32.mrb[0].mxu0
        %v1839 = vpop.f32.mrb[0].mxu0
        %v1840 = vadd.f32 0.0, %v1839
        %v1841 = vpop.f32.mrb[0].mxu0
        %1842 = vmatprep.mubr.bf16.mxu0 0
        %1843 = vmatmul.mubr.bf16.gmra.mrb[0].mxu0 %v1695
        %v1844 = vpop.f32.mrb[0].mxu0
        %v1845 = vadd.f32 0.0, %v1844
        %v1846 = vpop.f32.mrb[0].mxu0
        %v1847 = vpop.f32.mrb[0].mxu0
        %v1848 = vadd.f32 0.0, %v1847
        %v1849 = vpop.f32.mrb[0].mxu0
        %1850 = vmatprep.mubr.bf16.mxu0 0
        %1851 = vmatmul.mubr.bf16.gmra.mrb[0].mxu0 %v1698
        %v1852 = vpop.f32.mrb[0].mxu0
        %v1853 = vadd.f32 0.0, %v1852
        %v1854 = vpop.f32.mrb[0].mxu0
        %v1855 = vpop.f32.mrb[0].mxu0
        %v1856 = vadd.f32 0.0, %v1855
        %v1857 = vpop.f32.mrb[0].mxu0
        %1858 = vmatprep.mubr.bf16.mxu0 0
        %1859 = vmatmul.mubr.bf16.gmra.mrb[0].mxu0 %v1701
        %v1860 = vpop.f32.mrb[0].mxu0
        %v1861 = vadd.f32 0.0, %v1860
        %v1862 = vpop.f32.mrb[0].mxu0
        %v1863 = vpop.f32.mrb[0].mxu0
        %v1864 = vadd.f32 0.0, %v1863
        %v1865 = vpop.f32.mrb[0].mxu0
        %1866 = vdwg.mxu0
        %v1867 = vadd.f32 %v1573, %v1741
        %v1868 = vadd.f32 %v1574, %v1744
        %v1869 = vadd.f32 %v1575, %v1749
        %v1870 = vadd.f32 %v1576, %v1752
        %v1871 = vadd.f32 %v1577, %v1757
        %v1872 = vadd.f32 %v1578, %v1760
        %v1873 = vadd.f32 %v1579, %v1765
        %v1874 = vadd.f32 %v1580, %v1768
        %v1875 = vadd.f32 %v1581, %v1773
        %v1876 = vadd.f32 %v1582, %v1776
        %v1877 = vadd.f32 %v1583, %v1781
        %v1878 = vadd.f32 %v1584, %v1784
        %v1879 = vadd.f32 %v1585, %v1789
        %v1880 = vadd.f32 %v1586, %v1792
        %v1881 = vadd.f32 %v1587, %v1797
        %v1882 = vadd.f32 %v1588, %v1800
        %v1883 = vadd.f32 %v1589, %v1805
        %v1884 = vadd.f32 %v1590, %v1808
        %v1885 = vadd.f32 %v1591, %v1813
        %v1886 = vadd.f32 %v1592, %v1816
        %v1887 = vadd.f32 %v1593, %v1821
        %v1888 = vadd.f32 %v1594, %v1824
        %v1889 = vadd.f32 %v1595, %v1829
        %v1890 = vadd.f32 %v1596, %v1832
        %v1891 = vadd.f32 %v1597, %v1837
        %v1892 = vadd.f32 %v1598, %v1840
        %v1893 = vadd.f32 %v1599, %v1845
        %v1894 = vadd.f32 %v1600, %v1848
        %v1895 = vadd.f32 %v1601, %v1853
        %v1896 = vadd.f32 %v1602, %v1856
        %v1897 = vadd.f32 %v1603, %v1861
        %v1898 = vadd.f32 %v1604, %v1864
        %v1899 = vld [vmem:[%s754 + $0x1] sm:$0xff]
        %v1900 = vld [vmem:[%s754 + $0x9] sm:$0xff]
        %v1901 = vld [vmem:[%s754 + $0x19] sm:$0xff]
        %v1902 = vld [vmem:[%s754 + $0x21] sm:$0xff]
        %v1903 = vld [vmem:[%s754 + $0x31] sm:$0xff]
        %v1904 = vld [vmem:[%s754 + $0x39] sm:$0xff]
        %v1905 = vld [vmem:[%s754 + $0x49] sm:$0xff]
        %v1906 = vld [vmem:[%s754 + $0x51] sm:$0xff]
        %v1907 = vld [vmem:[%s754 + $0x61] sm:$0xff]
        %v1908 = vld [vmem:[%s754 + $0x69] sm:$0xff]
        %v1909 = vld [vmem:[%s754 + $0x79] sm:$0xff]
        %v1910 = vld [vmem:[%s754 + $0x81] sm:$0xff]
        %v1911 = vld [vmem:[%s754 + $0x91] sm:$0xff]
        %v1912 = vld [vmem:[%s754 + $0x99] sm:$0xff]
        %v1913 = vld [vmem:[%s754 + $0xa9] sm:$0xff]
        %v1914 = vld [vmem:[%s754 + $0xb1] sm:$0xff]
        %v1915 = vld [vmem:[%s754 + $0xc1] sm:$0xff]
        %v1916 = vld [vmem:[%s754 + $0xc9] sm:$0xff]
        %v1917 = vld [vmem:[%s754 + $0xd9] sm:$0xff]
        %v1918 = vld [vmem:[%s754 + $0xe1] sm:$0xff]
        %v1919 = vld [vmem:[%s754 + $0xf1] sm:$0xff]
        %v1920 = vld [vmem:[%s754 + $0xf9] sm:$0xff]
        %v1921 = vld [vmem:[%s754 + $0x109] sm:$0xff]
        %v1922 = vld [vmem:[%s754 + $0x111] sm:$0xff]
        %v1923 = vld [vmem:[%s754 + $0x121] sm:$0xff]
        %v1924 = vld [vmem:[%s754 + $0x129] sm:$0xff]
        %v1925 = vld [vmem:[%s754 + $0x139] sm:$0xff]
        %v1926 = vld [vmem:[%s754 + $0x141] sm:$0xff]
        %v1927 = vld [vmem:[%s754 + $0x151] sm:$0xff]
        %v1928 = vld [vmem:[%s754 + $0x159] sm:$0xff]
        %v1929 = vld [vmem:[%s754 + $0x169] sm:$0xff]
        %v1930 = vld [vmem:[%s754 + $0x171] sm:$0xff]
        %v1931 = vpack.c.bf16 %v1900, %v1899
        %v1932 = vpack.c.bf16 %v1902, %v1901
        %v1933 = vpack.c.bf16 %v1904, %v1903
        %v1934 = vpack.c.bf16 %v1906, %v1905
        %v1935 = vpack.c.bf16 %v1908, %v1907
        %v1936 = vpack.c.bf16 %v1910, %v1909
        %v1937 = vpack.c.bf16 %v1912, %v1911
        %v1938 = vpack.c.bf16 %v1914, %v1913
        %v1939 = vpack.c.bf16 %v1916, %v1915
        %v1940 = vpack.c.bf16 %v1918, %v1917
        %v1941 = vpack.c.bf16 %v1920, %v1919
        %v1942 = vpack.c.bf16 %v1922, %v1921
        %v1943 = vpack.c.bf16 %v1924, %v1923
        %v1944 = vpack.c.bf16 %v1926, %v1925
        %v1945 = vpack.c.bf16 %v1928, %v1927
        %v1946 = vpack.c.bf16 %v1930, %v1929
        %s1947 = scalar_lea.vmem %s3, 16
        %v1948 = vld [vmem:[%s1947] sm:$0xf]
        %v1950 = vsel %vm698, %v1931, 0
        %v1953 = vsel %vm698, %v1932, 0
        %v1956 = vsel %vm698, %v1933, 0
        %v1959 = vsel %vm698, %v1934, 0
        %v1962 = vsel %vm698, %v1935, 0
        %v1965 = vsel %vm698, %v1936, 0
        %v1968 = vsel %vm698, %v1937, 0
        %v1971 = vsel %vm698, %v1938, 0
        %v1974 = vsel %vm698, %v1939, 0
        %v1977 = vsel %vm698, %v1940, 0
        %v1980 = vsel %vm698, %v1941, 0
        %v1983 = vsel %vm698, %v1942, 0
        %v1986 = vsel %vm698, %v1943, 0
        %v1989 = vsel %vm698, %v1944, 0
        %v1992 = vsel %vm698, %v1945, 0
        %v1995 = vsel %vm698, %v1946, 0
        %v1998 = vsel %vm934, %v1948, 0
        %2000 = vmatprep.subr.bf16.mxu0 0
        %2001 = vmatpush1.bf16.msra.mxu0 %v1998
        %2002 = vmatprep.subr.bf16.mxu0 0
        %2003 = vmatpush1.bf16.msra.mxu0 0
        %2004 = vmatprep.subr.bf16.mxu0 0
        %2005 = vmatpush1.bf16.msra.mxu0 0
        %2006 = vmatprep.subr.bf16.mxu0 0
        %2007 = vmatpush1.bf16.msra.mxu0 0
        %2008 = vmatprep.subr.bf16.mxu0 0
        %2009 = vmatpush1.bf16.msra.mxu0 0
        %2010 = vmatprep.subr.bf16.mxu0 0
        %2011 = vmatpush1.bf16.msra.mxu0 0
        %2012 = vmatprep.subr.bf16.mxu0 0
        %2013 = vmatpush1.bf16.msra.mxu0 0
        %2014 = vmatprep.subr.bf16.mxu0 0
        %2015 = vmatpush1.bf16.msra.mxu0 0
        %2016 = vmatprep.subr.bf16.mxu0 0
        %2017 = vmatpush1.bf16.msra.mxu0 0
        %2018 = vmatprep.subr.bf16.mxu0 0
        %2019 = vmatpush1.bf16.msra.mxu0 0
        %2020 = vmatprep.subr.bf16.mxu0 0
        %2021 = vmatpush1.bf16.msra.mxu0 0
        %2022 = vmatprep.subr.bf16.mxu0 0
        %2023 = vmatpush1.bf16.msra.mxu0 0
        %2024 = vmatprep.subr.bf16.mxu0 0
        %2025 = vmatpush1.bf16.msra.mxu0 0
        %2026 = vmatprep.subr.bf16.mxu0 0
        %2027 = vmatpush1.bf16.msra.mxu0 0
        %2028 = vmatprep.subr.bf16.mxu0 0
        %2029 = vmatpush1.bf16.msra.mxu0 0
        %2030 = vmatprep.subr.bf16.mxu0 0
        %2031 = vmatpush1.bf16.msra.mxu0 0
        %2032 = vmatprep.mubr.bf16.mxu0 0
        %2033 = vmatmul.mubr.bf16.gmra.mrb[0].mxu0 %v1950
        %v2034 = vpop.f32.mrb[0].mxu0
        %v2035 = vadd.f32 0.0, %v2034
        %v2036 = vpop.f32.mrb[0].mxu0
        %v2037 = vpop.f32.mrb[0].mxu0
        %v2038 = vadd.f32 0.0, %v2037
        %v2039 = vpop.f32.mrb[0].mxu0
        %2040 = vmatprep.mubr.bf16.mxu0 0
        %2041 = vmatmul.mubr.bf16.gmra.mrb[0].mxu0 %v1953
        %v2042 = vpop.f32.mrb[0].mxu0
        %v2043 = vadd.f32 0.0, %v2042
        %v2044 = vpop.f32.mrb[0].mxu0
        %v2045 = vpop.f32.mrb[0].mxu0
        %v2046 = vadd.f32 0.0, %v2045
        %v2047 = vpop.f32.mrb[0].mxu0
        %2048 = vmatprep.mubr.bf16.mxu0 0
        %2049 = vmatmul.mubr.bf16.gmra.mrb[0].mxu0 %v1956
        %v2050 = vpop.f32.mrb[0].mxu0
        %v2051 = vadd.f32 0.0, %v2050
        %v2052 = vpop.f32.mrb[0].mxu0
        %v2053 = vpop.f32.mrb[0].mxu0
        %v2054 = vadd.f32 0.0, %v2053
        %v2055 = vpop.f32.mrb[0].mxu0
        %2056 = vmatprep.mubr.bf16.mxu0 0
        %2057 = vmatmul.mubr.bf16.gmra.mrb[0].mxu0 %v1959
        %v2058 = vpop.f32.mrb[0].mxu0
        %v2059 = vadd.f32 0.0, %v2058
        %v2060 = vpop.f32.mrb[0].mxu0
        %v2061 = vpop.f32.mrb[0].mxu0
        %v2062 = vadd.f32 0.0, %v2061
        %v2063 = vpop.f32.mrb[0].mxu0
        %2064 = vmatprep.mubr.bf16.mxu0 0
        %2065 = vmatmul.mubr.bf16.gmra.mrb[0].mxu0 %v1962
        %v2066 = vpop.f32.mrb[0].mxu0
        %v2067 = vadd.f32 0.0, %v2066
        %v2068 = vpop.f32.mrb[0].mxu0
        %v2069 = vpop.f32.mrb[0].mxu0
        %v2070 = vadd.f32 0.0, %v2069
        %v2071 = vpop.f32.mrb[0].mxu0
        %2072 = vmatprep.mubr.bf16.mxu0 0
        %2073 = vmatmul.mubr.bf16.gmra.mrb[0].mxu0 %v1965
        %v2074 = vpop.f32.mrb[0].mxu0
        %v2075 = vadd.f32 0.0, %v2074
        %v2076 = vpop.f32.mrb[0].mxu0
        %v2077 = vpop.f32.mrb[0].mxu0
        %v2078 = vadd.f32 0.0, %v2077
        %v2079 = vpop.f32.mrb[0].mxu0
        %2080 = vmatprep.mubr.bf16.mxu0 0
        %2081 = vmatmul.mubr.bf16.gmra.mrb[0].mxu0 %v1968
        %v2082 = vpop.f32.mrb[0].mxu0
        %v2083 = vadd.f32 0.0, %v2082
        %v2084 = vpop.f32.mrb[0].mxu0
        %v2085 = vpop.f32.mrb[0].mxu0
        %v2086 = vadd.f32 0.0, %v2085
        %v2087 = vpop.f32.mrb[0].mxu0
        %2088 = vmatprep.mubr.bf16.mxu0 0
        %2089 = vmatmul.mubr.bf16.gmra.mrb[0].mxu0 %v1971
        %v2090 = vpop.f32.mrb[0].mxu0
        %v2091 = vadd.f32 0.0, %v2090
        %v2092 = vpop.f32.mrb[0].mxu0
        %v2093 = vpop.f32.mrb[0].mxu0
        %v2094 = vadd.f32 0.0, %v2093
        %v2095 = vpop.f32.mrb[0].mxu0
        %2096 = vmatprep.mubr.bf16.mxu0 0
        %2097 = vmatmul.mubr.bf16.gmra.mrb[0].mxu0 %v1974
        %v2098 = vpop.f32.mrb[0].mxu0
        %v2099 = vadd.f32 0.0, %v2098
        %v2100 = vpop.f32.mrb[0].mxu0
        %v2101 = vpop.f32.mrb[0].mxu0
        %v2102 = vadd.f32 0.0, %v2101
        %v2103 = vpop.f32.mrb[0].mxu0
        %2104 = vmatprep.mubr.bf16.mxu0 0
        %2105 = vmatmul.mubr.bf16.gmra.mrb[0].mxu0 %v1977
        %v2106 = vpop.f32.mrb[0].mxu0
        %v2107 = vadd.f32 0.0, %v2106
        %v2108 = vpop.f32.mrb[0].mxu0
        %v2109 = vpop.f32.mrb[0].mxu0
        %v2110 = vadd.f32 0.0, %v2109
        %v2111 = vpop.f32.mrb[0].mxu0
        %2112 = vmatprep.mubr.bf16.mxu0 0
        %2113 = vmatmul.mubr.bf16.gmra.mrb[0].mxu0 %v1980
        %v2114 = vpop.f32.mrb[0].mxu0
        %v2115 = vadd.f32 0.0, %v2114
        %v2116 = vpop.f32.mrb[0].mxu0
        %v2117 = vpop.f32.mrb[0].mxu0
        %v2118 = vadd.f32 0.0, %v2117
        %v2119 = vpop.f32.mrb[0].mxu0
        %2120 = vmatprep.mubr.bf16.mxu0 0
        %2121 = vmatmul.mubr.bf16.gmra.mrb[0].mxu0 %v1983
        %v2122 = vpop.f32.mrb[0].mxu0
        %v2123 = vadd.f32 0.0, %v2122
        %v2124 = vpop.f32.mrb[0].mxu0
        %v2125 = vpop.f32.mrb[0].mxu0
        %v2126 = vadd.f32 0.0, %v2125
        %v2127 = vpop.f32.mrb[0].mxu0
        %2128 = vmatprep.mubr.bf16.mxu0 0
        %2129 = vmatmul.mubr.bf16.gmra.mrb[0].mxu0 %v1986
        %v2130 = vpop.f32.mrb[0].mxu0
        %v2131 = vadd.f32 0.0, %v2130
        %v2132 = vpop.f32.mrb[0].mxu0
        %v2133 = vpop.f32.mrb[0].mxu0
        %v2134 = vadd.f32 0.0, %v2133
        %v2135 = vpop.f32.mrb[0].mxu0
        %2136 = vmatprep.mubr.bf16.mxu0 0
        %2137 = vmatmul.mubr.bf16.gmra.mrb[0].mxu0 %v1989
        %v2138 = vpop.f32.mrb[0].mxu0
        %v2139 = vadd.f32 0.0, %v2138
        %v2140 = vpop.f32.mrb[0].mxu0
        %v2141 = vpop.f32.mrb[0].mxu0
        %v2142 = vadd.f32 0.0, %v2141
        %v2143 = vpop.f32.mrb[0].mxu0
        %2144 = vmatprep.mubr.bf16.mxu0 0
        %2145 = vmatmul.mubr.bf16.gmra.mrb[0].mxu0 %v1992
        %v2146 = vpop.f32.mrb[0].mxu0
        %v2147 = vadd.f32 0.0, %v2146
        %v2148 = vpop.f32.mrb[0].mxu0
        %v2149 = vpop.f32.mrb[0].mxu0
        %v2150 = vadd.f32 0.0, %v2149
        %v2151 = vpop.f32.mrb[0].mxu0
        %2152 = vmatprep.mubr.bf16.mxu0 0
        %2153 = vmatmul.mubr.bf16.gmra.mrb[0].mxu0 %v1995
        %v2154 = vpop.f32.mrb[0].mxu0
        %v2155 = vadd.f32 0.0, %v2154
        %v2156 = vpop.f32.mrb[0].mxu0
        %v2157 = vpop.f32.mrb[0].mxu0
        %v2158 = vadd.f32 0.0, %v2157
        %v2159 = vpop.f32.mrb[0].mxu0
        %2160 = vdwg.mxu0
        %v2161 = vadd.f32 %v1867, %v2035
        %v2162 = vadd.f32 %v1868, %v2038
        %v2163 = vadd.f32 %v1869, %v2043
        %v2164 = vadd.f32 %v1870, %v2046
        %v2165 = vadd.f32 %v1871, %v2051
        %v2166 = vadd.f32 %v1872, %v2054
        %v2167 = vadd.f32 %v1873, %v2059
        %v2168 = vadd.f32 %v1874, %v2062
        %v2169 = vadd.f32 %v1875, %v2067
        %v2170 = vadd.f32 %v1876, %v2070
        %v2171 = vadd.f32 %v1877, %v2075
        %v2172 = vadd.f32 %v1878, %v2078
        %v2173 = vadd.f32 %v1879, %v2083
        %v2174 = vadd.f32 %v1880, %v2086
        %v2175 = vadd.f32 %v1881, %v2091
        %v2176 = vadd.f32 %v1882, %v2094
        %v2177 = vadd.f32 %v1883, %v2099
        %v2178 = vadd.f32 %v1884, %v2102
        %v2179 = vadd.f32 %v1885, %v2107
        %v2180 = vadd.f32 %v1886, %v2110
        %v2181 = vadd.f32 %v1887, %v2115
        %v2182 = vadd.f32 %v1888, %v2118
        %v2183 = vadd.f32 %v1889, %v2123
        %v2184 = vadd.f32 %v1890, %v2126
        %v2185 = vadd.f32 %v1891, %v2131
        %v2186 = vadd.f32 %v1892, %v2134
        %v2187 = vadd.f32 %v1893, %v2139
        %v2188 = vadd.f32 %v1894, %v2142
        %v2189 = vadd.f32 %v1895, %v2147
        %v2190 = vadd.f32 %v1896, %v2150
        %v2191 = vadd.f32 %v1897, %v2155
        %v2192 = vadd.f32 %v1898, %v2158
        %v2193 = vld [vmem:[%s754 + $0x2] sm:$0xff]
        %v2194 = vld [vmem:[%s754 + $0xa] sm:$0xff]
        %v2195 = vld [vmem:[%s754 + $0x1a] sm:$0xff]
        %v2196 = vld [vmem:[%s754 + $0x22] sm:$0xff]
        %v2197 = vld [vmem:[%s754 + $0x32] sm:$0xff]
        %v2198 = vld [vmem:[%s754 + $0x3a] sm:$0xff]
        %v2199 = vld [vmem:[%s754 + $0x4a] sm:$0xff]
        %v2200 = vld [vmem:[%s754 + $0x52] sm:$0xff]
        %v2201 = vld [vmem:[%s754 + $0x62] sm:$0xff]
        %v2202 = vld [vmem:[%s754 + $0x6a] sm:$0xff]
        %v2203 = vld [vmem:[%s754 + $0x7a] sm:$0xff]
        %v2204 = vld [vmem:[%s754 + $0x82] sm:$0xff]
        %v2205 = vld [vmem:[%s754 + $0x92] sm:$0xff]
        %v2206 = vld [vmem:[%s754 + $0x9a] sm:$0xff]
        %v2207 = vld [vmem:[%s754 + $0xaa] sm:$0xff]
        %v2208 = vld [vmem:[%s754 + $0xb2] sm:$0xff]
        %v2209 = vld [vmem:[%s754 + $0xc2] sm:$0xff]
        %v2210 = vld [vmem:[%s754 + $0xca] sm:$0xff]
        %v2211 = vld [vmem:[%s754 + $0xda] sm:$0xff]
        %v2212 = vld [vmem:[%s754 + $0xe2] sm:$0xff]
        %v2213 = vld [vmem:[%s754 + $0xf2] sm:$0xff]
        %v2214 = vld [vmem:[%s754 + $0xfa] sm:$0xff]
        %v2215 = vld [vmem:[%s754 + $0x10a] sm:$0xff]
        %v2216 = vld [vmem:[%s754 + $0x112] sm:$0xff]
        %v2217 = vld [vmem:[%s754 + $0x122] sm:$0xff]
        %v2218 = vld [vmem:[%s754 + $0x12a] sm:$0xff]
        %v2219 = vld [vmem:[%s754 + $0x13a] sm:$0xff]
        %v2220 = vld [vmem:[%s754 + $0x142] sm:$0xff]
        %v2221 = vld [vmem:[%s754 + $0x152] sm:$0xff]
        %v2222 = vld [vmem:[%s754 + $0x15a] sm:$0xff]
        %v2223 = vld [vmem:[%s754 + $0x16a] sm:$0xff]
        %v2224 = vld [vmem:[%s754 + $0x172] sm:$0xff]
        %v2225 = vpack.c.bf16 %v2194, %v2193
        %v2226 = vpack.c.bf16 %v2196, %v2195
        %v2227 = vpack.c.bf16 %v2198, %v2197
        %v2228 = vpack.c.bf16 %v2200, %v2199
        %v2229 = vpack.c.bf16 %v2202, %v2201
        %v2230 = vpack.c.bf16 %v2204, %v2203
        %v2231 = vpack.c.bf16 %v2206, %v2205
        %v2232 = vpack.c.bf16 %v2208, %v2207
        %v2233 = vpack.c.bf16 %v2210, %v2209
        %v2234 = vpack.c.bf16 %v2212, %v2211
        %v2235 = vpack.c.bf16 %v2214, %v2213
        %v2236 = vpack.c.bf16 %v2216, %v2215
        %v2237 = vpack.c.bf16 %v2218, %v2217
        %v2238 = vpack.c.bf16 %v2220, %v2219
        %v2239 = vpack.c.bf16 %v2222, %v2221
        %v2240 = vpack.c.bf16 %v2224, %v2223
        %s2241 = scalar_lea.vmem %s3, 20
        %v2242 = vld [vmem:[%s2241] sm:$0xf]
        %v2244 = vsel %vm698, %v2225, 0
        %v2247 = vsel %vm698, %v2226, 0
        %v2250 = vsel %vm698, %v2227, 0
        %v2253 = vsel %vm698, %v2228, 0
        %v2256 = vsel %vm698, %v2229, 0
        %v2259 = vsel %vm698, %v2230, 0
        %v2262 = vsel %vm698, %v2231, 0
        %v2265 = vsel %vm698, %v2232, 0
        %v2268 = vsel %vm698, %v2233, 0
        %v2271 = vsel %vm698, %v2234, 0
        %v2274 = vsel %vm698, %v2235, 0
        %v2277 = vsel %vm698, %v2236, 0
        %v2280 = vsel %vm698, %v2237, 0
        %v2283 = vsel %vm698, %v2238, 0
        %v2286 = vsel %vm698, %v2239, 0
        %v2289 = vsel %vm698, %v2240, 0
        %v2292 = vsel %vm934, %v2242, 0
        %2294 = vmatprep.subr.bf16.mxu0 0
        %2295 = vmatpush1.bf16.msra.mxu0 %v2292
        %2296 = vmatprep.subr.bf16.mxu0 0
        %2297 = vmatpush1.bf16.msra.mxu0 0
        %2298 = vmatprep.subr.bf16.mxu0 0
        %2299 = vmatpush1.bf16.msra.mxu0 0
        %2300 = vmatprep.subr.bf16.mxu0 0
        %2301 = vmatpush1.bf16.msra.mxu0 0
        %2302 = vmatprep.subr.bf16.mxu0 0
        %2303 = vmatpush1.bf16.msra.mxu0 0
        %2304 = vmatprep.subr.bf16.mxu0 0
        %2305 = vmatpush1.bf16.msra.mxu0 0
        %2306 = vmatprep.subr.bf16.mxu0 0
        %2307 = vmatpush1.bf16.msra.mxu0 0
        %2308 = vmatprep.subr.bf16.mxu0 0
        %2309 = vmatpush1.bf16.msra.mxu0 0
        %2310 = vmatprep.subr.bf16.mxu0 0
        %2311 = vmatpush1.bf16.msra.mxu0 0
        %2312 = vmatprep.subr.bf16.mxu0 0
        %2313 = vmatpush1.bf16.msra.mxu0 0
        %2314 = vmatprep.subr.bf16.mxu0 0
        %2315 = vmatpush1.bf16.msra.mxu0 0
        %2316 = vmatprep.subr.bf16.mxu0 0
        %2317 = vmatpush1.bf16.msra.mxu0 0
        %2318 = vmatprep.subr.bf16.mxu0 0
        %2319 = vmatpush1.bf16.msra.mxu0 0
        %2320 = vmatprep.subr.bf16.mxu0 0
        %2321 = vmatpush1.bf16.msra.mxu0 0
        %2322 = vmatprep.subr.bf16.mxu0 0
        %2323 = vmatpush1.bf16.msra.mxu0 0
        %2324 = vmatprep.subr.bf16.mxu0 0
        %2325 = vmatpush1.bf16.msra.mxu0 0
        %2326 = vmatprep.mubr.bf16.mxu0 0
        %2327 = vmatmul.mubr.bf16.gmra.mrb[0].mxu0 %v2244
        %v2328 = vpop.f32.mrb[0].mxu0
        %v2329 = vadd.f32 0.0, %v2328
        %v2330 = vpop.f32.mrb[0].mxu0
        %v2331 = vpop.f32.mrb[0].mxu0
        %v2332 = vadd.f32 0.0, %v2331
        %v2333 = vpop.f32.mrb[0].mxu0
        %2334 = vmatprep.mubr.bf16.mxu0 0
        %2335 = vmatmul.mubr.bf16.gmra.mrb[0].mxu0 %v2247
        %v2336 = vpop.f32.mrb[0].mxu0
        %v2337 = vadd.f32 0.0, %v2336
        %v2338 = vpop.f32.mrb[0].mxu0
        %v2339 = vpop.f32.mrb[0].mxu0
        %v2340 = vadd.f32 0.0, %v2339
        %v2341 = vpop.f32.mrb[0].mxu0
        %2342 = vmatprep.mubr.bf16.mxu0 0
        %2343 = vmatmul.mubr.bf16.gmra.mrb[0].mxu0 %v2250
        %v2344 = vpop.f32.mrb[0].mxu0
        %v2345 = vadd.f32 0.0, %v2344
        %v2346 = vpop.f32.mrb[0].mxu0
        %v2347 = vpop.f32.mrb[0].mxu0
        %v2348 = vadd.f32 0.0, %v2347
        %v2349 = vpop.f32.mrb[0].mxu0
        %2350 = vmatprep.mubr.bf16.mxu0 0
        %2351 = vmatmul.mubr.bf16.gmra.mrb[0].mxu0 %v2253
        %v2352 = vpop.f32.mrb[0].mxu0
        %v2353 = vadd.f32 0.0, %v2352
        %v2354 = vpop.f32.mrb[0].mxu0
        %v2355 = vpop.f32.mrb[0].mxu0
        %v2356 = vadd.f32 0.0, %v2355
        %v2357 = vpop.f32.mrb[0].mxu0
        %2358 = vmatprep.mubr.bf16.mxu0 0
        %2359 = vmatmul.mubr.bf16.gmra.mrb[0].mxu0 %v2256
        %v2360 = vpop.f32.mrb[0].mxu0
        %v2361 = vadd.f32 0.0, %v2360
        %v2362 = vpop.f32.mrb[0].mxu0
        %v2363 = vpop.f32.mrb[0].mxu0
        %v2364 = vadd.f32 0.0, %v2363
        %v2365 = vpop.f32.mrb[0].mxu0
        %2366 = vmatprep.mubr.bf16.mxu0 0
        %2367 = vmatmul.mubr.bf16.gmra.mrb[0].mxu0 %v2259
        %v2368 = vpop.f32.mrb[0].mxu0
        %v2369 = vadd.f32 0.0, %v2368
        %v2370 = vpop.f32.mrb[0].mxu0
        %v2371 = vpop.f32.mrb[0].mxu0
        %v2372 = vadd.f32 0.0, %v2371
        %v2373 = vpop.f32.mrb[0].mxu0
        %2374 = vmatprep.mubr.bf16.mxu0 0
        %2375 = vmatmul.mubr.bf16.gmra.mrb[0].mxu0 %v2262
        %v2376 = vpop.f32.mrb[0].mxu0
        %v2377 = vadd.f32 0.0, %v2376
        %v2378 = vpop.f32.mrb[0].mxu0
        %v2379 = vpop.f32.mrb[0].mxu0
        %v2380 = vadd.f32 0.0, %v2379
        %v2381 = vpop.f32.mrb[0].mxu0
        %2382 = vmatprep.mubr.bf16.mxu0 0
        %2383 = vmatmul.mubr.bf16.gmra.mrb[0].mxu0 %v2265
        %v2384 = vpop.f32.mrb[0].mxu0
        %v2385 = vadd.f32 0.0, %v2384
        %v2386 = vpop.f32.mrb[0].mxu0
        %v2387 = vpop.f32.mrb[0].mxu0
        %v2388 = vadd.f32 0.0, %v2387
        %v2389 = vpop.f32.mrb[0].mxu0
        %2390 = vmatprep.mubr.bf16.mxu0 0
        %2391 = vmatmul.mubr.bf16.gmra.mrb[0].mxu0 %v2268
        %v2392 = vpop.f32.mrb[0].mxu0
        %v2393 = vadd.f32 0.0, %v2392
        %v2394 = vpop.f32.mrb[0].mxu0
        %v2395 = vpop.f32.mrb[0].mxu0
        %v2396 = vadd.f32 0.0, %v2395
        %v2397 = vpop.f32.mrb[0].mxu0
        %2398 = vmatprep.mubr.bf16.mxu0 0
        %2399 = vmatmul.mubr.bf16.gmra.mrb[0].mxu0 %v2271
        %v2400 = vpop.f32.mrb[0].mxu0
        %v2401 = vadd.f32 0.0, %v2400
        %v2402 = vpop.f32.mrb[0].mxu0
        %v2403 = vpop.f32.mrb[0].mxu0
        %v2404 = vadd.f32 0.0, %v2403
        %v2405 = vpop.f32.mrb[0].mxu0
        %2406 = vmatprep.mubr.bf16.mxu0 0
        %2407 = vmatmul.mubr.bf16.gmra.mrb[0].mxu0 %v2274
        %v2408 = vpop.f32.mrb[0].mxu0
        %v2409 = vadd.f32 0.0, %v2408
        %v2410 = vpop.f32.mrb[0].mxu0
        %v2411 = vpop.f32.mrb[0].mxu0
        %v2412 = vadd.f32 0.0, %v2411
        %v2413 = vpop.f32.mrb[0].mxu0
        %2414 = vmatprep.mubr.bf16.mxu0 0
        %2415 = vmatmul.mubr.bf16.gmra.mrb[0].mxu0 %v2277
        %v2416 = vpop.f32.mrb[0].mxu0
        %v2417 = vadd.f32 0.0, %v2416
        %v2418 = vpop.f32.mrb[0].mxu0
        %v2419 = vpop.f32.mrb[0].mxu0
        %v2420 = vadd.f32 0.0, %v2419
        %v2421 = vpop.f32.mrb[0].mxu0
        %2422 = vmatprep.mubr.bf16.mxu0 0
        %2423 = vmatmul.mubr.bf16.gmra.mrb[0].mxu0 %v2280
        %v2424 = vpop.f32.mrb[0].mxu0
        %v2425 = vadd.f32 0.0, %v2424
        %v2426 = vpop.f32.mrb[0].mxu0
        %v2427 = vpop.f32.mrb[0].mxu0
        %v2428 = vadd.f32 0.0, %v2427
        %v2429 = vpop.f32.mrb[0].mxu0
        %2430 = vmatprep.mubr.bf16.mxu0 0
        %2431 = vmatmul.mubr.bf16.gmra.mrb[0].mxu0 %v2283
        %v2432 = vpop.f32.mrb[0].mxu0
        %v2433 = vadd.f32 0.0, %v2432
        %v2434 = vpop.f32.mrb[0].mxu0
        %v2435 = vpop.f32.mrb[0].mxu0
        %v2436 = vadd.f32 0.0, %v2435
        %v2437 = vpop.f32.mrb[0].mxu0
        %2438 = vmatprep.mubr.bf16.mxu0 0
        %2439 = vmatmul.mubr.bf16.gmra.mrb[0].mxu0 %v2286
        %v2440 = vpop.f32.mrb[0].mxu0
        %v2441 = vadd.f32 0.0, %v2440
        %v2442 = vpop.f32.mrb[0].mxu0
        %v2443 = vpop.f32.mrb[0].mxu0
        %v2444 = vadd.f32 0.0, %v2443
        %v2445 = vpop.f32.mrb[0].mxu0
        %2446 = vmatprep.mubr.bf16.mxu0 0
        %2447 = vmatmul.mubr.bf16.gmra.mrb[0].mxu0 %v2289
        %v2448 = vpop.f32.mrb[0].mxu0
        %v2449 = vadd.f32 0.0, %v2448
        %v2450 = vpop.f32.mrb[0].mxu0
        %v2451 = vpop.f32.mrb[0].mxu0
        %v2452 = vadd.f32 0.0, %v2451
        %v2453 = vpop.f32.mrb[0].mxu0
        %2454 = vdwg.mxu0
        %v2455 = vadd.f32 %v2161, %v2329
        %v2456 = vadd.f32 %v2162, %v2332
        %v2457 = vadd.f32 %v2163, %v2337
        %v2458 = vadd.f32 %v2164, %v2340
        %v2459 = vadd.f32 %v2165, %v2345
        %v2460 = vadd.f32 %v2166, %v2348
        %v2461 = vadd.f32 %v2167, %v2353
        %v2462 = vadd.f32 %v2168, %v2356
        %v2463 = vadd.f32 %v2169, %v2361
        %v2464 = vadd.f32 %v2170, %v2364
        %v2465 = vadd.f32 %v2171, %v2369
        %v2466 = vadd.f32 %v2172, %v2372
        %v2467 = vadd.f32 %v2173, %v2377
        %v2468 = vadd.f32 %v2174, %v2380
        %v2469 = vadd.f32 %v2175, %v2385
        %v2470 = vadd.f32 %v2176, %v2388
        %v2471 = vadd.f32 %v2177, %v2393
        %v2472 = vadd.f32 %v2178, %v2396
        %v2473 = vadd.f32 %v2179, %v2401
        %v2474 = vadd.f32 %v2180, %v2404
        %v2475 = vadd.f32 %v2181, %v2409
        %v2476 = vadd.f32 %v2182, %v2412
        %v2477 = vadd.f32 %v2183, %v2417
        %v2478 = vadd.f32 %v2184, %v2420
        %v2479 = vadd.f32 %v2185, %v2425
        %v2480 = vadd.f32 %v2186, %v2428
        %v2481 = vadd.f32 %v2187, %v2433
        %v2482 = vadd.f32 %v2188, %v2436
        %v2483 = vadd.f32 %v2189, %v2441
        %v2484 = vadd.f32 %v2190, %v2444
        %v2485 = vadd.f32 %v2191, %v2449
        %v2486 = vadd.f32 %v2192, %v2452
        %s2487 = scalar_lea.vmem [#allocation2], 48
        %v2488 = vld [vmem:[%s2487] sm:$0xff]
        %v2489 = vld [vmem:[%s2487 + $0x8] sm:$0xff]
        %v2490 = vld [vmem:[%s2487 + $0x18] sm:$0xff]
        %v2491 = vld [vmem:[%s2487 + $0x20] sm:$0xff]
        %v2492 = vld [vmem:[%s2487 + $0x30] sm:$0xff]
        %v2493 = vld [vmem:[%s2487 + $0x38] sm:$0xff]
        %v2494 = vld [vmem:[%s2487 + $0x48] sm:$0xff]
        %v2495 = vld [vmem:[%s2487 + $0x50] sm:$0xff]
        %v2496 = vld [vmem:[%s2487 + $0x60] sm:$0xff]
        %v2497 = vld [vmem:[%s2487 + $0x68] sm:$0xff]
        %v2498 = vld [vmem:[%s2487 + $0x78] sm:$0xff]
        %v2499 = vld [vmem:[%s2487 + $0x80] sm:$0xff]
        %v2500 = vld [vmem:[%s2487 + $0x90] sm:$0xff]
        %v2501 = vld [vmem:[%s2487 + $0x98] sm:$0xff]
        %v2502 = vld [vmem:[%s2487 + $0xa8] sm:$0xff]
        %v2503 = vld [vmem:[%s2487 + $0xb0] sm:$0xff]
        %v2504 = vld [vmem:[%s2487 + $0xc0] sm:$0xff]
        %v2505 = vld [vmem:[%s2487 + $0xc8] sm:$0xff]
        %v2506 = vld [vmem:[%s2487 + $0xd8] sm:$0xff]
        %v2507 = vld [vmem:[%s2487 + $0xe0] sm:$0xff]
        %v2508 = vld [vmem:[%s2487 + $0xf0] sm:$0xff]
        %v2509 = vld [vmem:[%s2487 + $0xf8] sm:$0xff]
        %v2510 = vld [vmem:[%s2487 + $0x108] sm:$0xff]
        %v2511 = vld [vmem:[%s2487 + $0x110] sm:$0xff]
        %v2512 = vld [vmem:[%s2487 + $0x120] sm:$0xff]
        %v2513 = vld [vmem:[%s2487 + $0x128] sm:$0xff]
        %v2514 = vld [vmem:[%s2487 + $0x138] sm:$0xff]
        %v2515 = vld [vmem:[%s2487 + $0x140] sm:$0xff]
        %v2516 = vld [vmem:[%s2487 + $0x150] sm:$0xff]
        %v2517 = vld [vmem:[%s2487 + $0x158] sm:$0xff]
        %v2518 = vld [vmem:[%s2487 + $0x168] sm:$0xff]
        %v2519 = vld [vmem:[%s2487 + $0x170] sm:$0xff]
        %v2520 = vpack.c.bf16 %v2489, %v2488
        %v2521 = vpack.c.bf16 %v2491, %v2490
        %v2522 = vpack.c.bf16 %v2493, %v2492
        %v2523 = vpack.c.bf16 %v2495, %v2494
        %v2524 = vpack.c.bf16 %v2497, %v2496
        %v2525 = vpack.c.bf16 %v2499, %v2498
        %v2526 = vpack.c.bf16 %v2501, %v2500
        %v2527 = vpack.c.bf16 %v2503, %v2502
        %v2528 = vpack.c.bf16 %v2505, %v2504
        %v2529 = vpack.c.bf16 %v2507, %v2506
        %v2530 = vpack.c.bf16 %v2509, %v2508
        %v2531 = vpack.c.bf16 %v2511, %v2510
        %v2532 = vpack.c.bf16 %v2513, %v2512
        %v2533 = vpack.c.bf16 %v2515, %v2514
        %v2534 = vpack.c.bf16 %v2517, %v2516
        %v2535 = vpack.c.bf16 %v2519, %v2518
        %s2536 = scalar_lea.vmem %s3, 24
        %v2537 = vld [vmem:[%s2536] sm:$0xf]
        %v2539 = vsel %vm698, %v2520, 0
        %v2542 = vsel %vm698, %v2521, 0
        %v2545 = vsel %vm698, %v2522, 0
        %v2548 = vsel %vm698, %v2523, 0
        %v2551 = vsel %vm698, %v2524, 0
        %v2554 = vsel %vm698, %v2525, 0
        %v2557 = vsel %vm698, %v2526, 0
        %v2560 = vsel %vm698, %v2527, 0
        %v2563 = vsel %vm698, %v2528, 0
        %v2566 = vsel %vm698, %v2529, 0
        %v2569 = vsel %vm698, %v2530, 0
        %v2572 = vsel %vm698, %v2531, 0
        %v2575 = vsel %vm698, %v2532, 0
        %v2578 = vsel %vm698, %v2533, 0
        %v2581 = vsel %vm698, %v2534, 0
        %v2584 = vsel %vm698, %v2535, 0
        %v2587 = vsel %vm934, %v2537, 0
        %2589 = vmatprep.subr.bf16.mxu0 0
        %2590 = vmatpush1.bf16.msra.mxu0 %v2587
        %2591 = vmatprep.subr.bf16.mxu0 0
        %2592 = vmatpush1.bf16.msra.mxu0 0
        %2593 = vmatprep.subr.bf16.mxu0 0
        %2594 = vmatpush1.bf16.msra.mxu0 0
        %2595 = vmatprep.subr.bf16.mxu0 0
        %2596 = vmatpush1.bf16.msra.mxu0 0
        %2597 = vmatprep.subr.bf16.mxu0 0
        %2598 = vmatpush1.bf16.msra.mxu0 0
        %2599 = vmatprep.subr.bf16.mxu0 0
        %2600 = vmatpush1.bf16.msra.mxu0 0
        %2601 = vmatprep.subr.bf16.mxu0 0
        %2602 = vmatpush1.bf16.msra.mxu0 0
        %2603 = vmatprep.subr.bf16.mxu0 0
        %2604 = vmatpush1.bf16.msra.mxu0 0
        %2605 = vmatprep.subr.bf16.mxu0 0
        %2606 = vmatpush1.bf16.msra.mxu0 0
        %2607 = vmatprep.subr.bf16.mxu0 0
        %2608 = vmatpush1.bf16.msra.mxu0 0
        %2609 = vmatprep.subr.bf16.mxu0 0
        %2610 = vmatpush1.bf16.msra.mxu0 0
        %2611 = vmatprep.subr.bf16.mxu0 0
        %2612 = vmatpush1.bf16.msra.mxu0 0
        %2613 = vmatprep.subr.bf16.mxu0 0
        %2614 = vmatpush1.bf16.msra.mxu0 0
        %2615 = vmatprep.subr.bf16.mxu0 0
        %2616 = vmatpush1.bf16.msra.mxu0 0
        %2617 = vmatprep.subr.bf16.mxu0 0
        %2618 = vmatpush1.bf16.msra.mxu0 0
        %2619 = vmatprep.subr.bf16.mxu0 0
        %2620 = vmatpush1.bf16.msra.mxu0 0
        %2621 = vmatprep.mubr.bf16.mxu0 0
        %2622 = vmatmul.mubr.bf16.gmra.mrb[0].mxu0 %v2539
        %v2623 = vpop.f32.mrb[0].mxu0
        %v2624 = vadd.f32 0.0, %v2623
        %v2625 = vpop.f32.mrb[0].mxu0
        %v2626 = vpop.f32.mrb[0].mxu0
        %v2627 = vadd.f32 0.0, %v2626
        %v2628 = vpop.f32.mrb[0].mxu0
        %2629 = vmatprep.mubr.bf16.mxu0 0
        %2630 = vmatmul.mubr.bf16.gmra.mrb[0].mxu0 %v2542
        %v2631 = vpop.f32.mrb[0].mxu0
        %v2632 = vadd.f32 0.0, %v2631
        %v2633 = vpop.f32.mrb[0].mxu0
        %v2634 = vpop.f32.mrb[0].mxu0
        %v2635 = vadd.f32 0.0, %v2634
        %v2636 = vpop.f32.mrb[0].mxu0
        %2637 = vmatprep.mubr.bf16.mxu0 0
        %2638 = vmatmul.mubr.bf16.gmra.mrb[0].mxu0 %v2545
        %v2639 = vpop.f32.mrb[0].mxu0
        %v2640 = vadd.f32 0.0, %v2639
        %v2641 = vpop.f32.mrb[0].mxu0
        %v2642 = vpop.f32.mrb[0].mxu0
        %v2643 = vadd.f32 0.0, %v2642
        %v2644 = vpop.f32.mrb[0].mxu0
        %2645 = vmatprep.mubr.bf16.mxu0 0
        %2646 = vmatmul.mubr.bf16.gmra.mrb[0].mxu0 %v2548
        %v2647 = vpop.f32.mrb[0].mxu0
        %v2648 = vadd.f32 0.0, %v2647
        %v2649 = vpop.f32.mrb[0].mxu0
        %v2650 = vpop.f32.mrb[0].mxu0
        %v2651 = vadd.f32 0.0, %v2650
        %v2652 = vpop.f32.mrb[0].mxu0
        %2653 = vmatprep.mubr.bf16.mxu0 0
        %2654 = vmatmul.mubr.bf16.gmra.mrb[0].mxu0 %v2551
        %v2655 = vpop.f32.mrb[0].mxu0
        %v2656 = vadd.f32 0.0, %v2655
        %v2657 = vpop.f32.mrb[0].mxu0
        %v2658 = vpop.f32.mrb[0].mxu0
        %v2659 = vadd.f32 0.0, %v2658
        %v2660 = vpop.f32.mrb[0].mxu0
        %2661 = vmatprep.mubr.bf16.mxu0 0
        %2662 = vmatmul.mubr.bf16.gmra.mrb[0].mxu0 %v2554
        %v2663 = vpop.f32.mrb[0].mxu0
        %v2664 = vadd.f32 0.0, %v2663
        %v2665 = vpop.f32.mrb[0].mxu0
        %v2666 = vpop.f32.mrb[0].mxu0
        %v2667 = vadd.f32 0.0, %v2666
        %v2668 = vpop.f32.mrb[0].mxu0
        %2669 = vmatprep.mubr.bf16.mxu0 0
        %2670 = vmatmul.mubr.bf16.gmra.mrb[0].mxu0 %v2557
        %v2671 = vpop.f32.mrb[0].mxu0
        %v2672 = vadd.f32 0.0, %v2671
        %v2673 = vpop.f32.mrb[0].mxu0
        %v2674 = vpop.f32.mrb[0].mxu0
        %v2675 = vadd.f32 0.0, %v2674
        %v2676 = vpop.f32.mrb[0].mxu0
        %2677 = vmatprep.mubr.bf16.mxu0 0
        %2678 = vmatmul.mubr.bf16.gmra.mrb[0].mxu0 %v2560
        %v2679 = vpop.f32.mrb[0].mxu0
        %v2680 = vadd.f32 0.0, %v2679
        %v2681 = vpop.f32.mrb[0].mxu0
        %v2682 = vpop.f32.mrb[0].mxu0
        %v2683 = vadd.f32 0.0, %v2682
        %v2684 = vpop.f32.mrb[0].mxu0
        %2685 = vmatprep.mubr.bf16.mxu0 0
        %2686 = vmatmul.mubr.bf16.gmra.mrb[0].mxu0 %v2563
        %v2687 = vpop.f32.mrb[0].mxu0
        %v2688 = vadd.f32 0.0, %v2687
        %v2689 = vpop.f32.mrb[0].mxu0
        %v2690 = vpop.f32.mrb[0].mxu0
        %v2691 = vadd.f32 0.0, %v2690
        %v2692 = vpop.f32.mrb[0].mxu0
        %2693 = vmatprep.mubr.bf16.mxu0 0
        %2694 = vmatmul.mubr.bf16.gmra.mrb[0].mxu0 %v2566
        %v2695 = vpop.f32.mrb[0].mxu0
        %v2696 = vadd.f32 0.0, %v2695
        %v2697 = vpop.f32.mrb[0].mxu0
        %v2698 = vpop.f32.mrb[0].mxu0
        %v2699 = vadd.f32 0.0, %v2698
        %v2700 = vpop.f32.mrb[0].mxu0
        %2701 = vmatprep.mubr.bf16.mxu0 0
        %2702 = vmatmul.mubr.bf16.gmra.mrb[0].mxu0 %v2569
        %v2703 = vpop.f32.mrb[0].mxu0
        %v2704 = vadd.f32 0.0, %v2703
        %v2705 = vpop.f32.mrb[0].mxu0
        %v2706 = vpop.f32.mrb[0].mxu0
        %v2707 = vadd.f32 0.0, %v2706
        %v2708 = vpop.f32.mrb[0].mxu0
        %2709 = vmatprep.mubr.bf16.mxu0 0
        %2710 = vmatmul.mubr.bf16.gmra.mrb[0].mxu0 %v2572
        %v2711 = vpop.f32.mrb[0].mxu0
        %v2712 = vadd.f32 0.0, %v2711
        %v2713 = vpop.f32.mrb[0].mxu0
        %v2714 = vpop.f32.mrb[0].mxu0
        %v2715 = vadd.f32 0.0, %v2714
        %v2716 = vpop.f32.mrb[0].mxu0
        %2717 = vmatprep.mubr.bf16.mxu0 0
        %2718 = vmatmul.mubr.bf16.gmra.mrb[0].mxu0 %v2575
        %v2719 = vpop.f32.mrb[0].mxu0
        %v2720 = vadd.f32 0.0, %v2719
        %v2721 = vpop.f32.mrb[0].mxu0
        %v2722 = vpop.f32.mrb[0].mxu0
        %v2723 = vadd.f32 0.0, %v2722
        %v2724 = vpop.f32.mrb[0].mxu0
        %2725 = vmatprep.mubr.bf16.mxu0 0
        %2726 = vmatmul.mubr.bf16.gmra.mrb[0].mxu0 %v2578
        %v2727 = vpop.f32.mrb[0].mxu0
        %v2728 = vadd.f32 0.0, %v2727
        %v2729 = vpop.f32.mrb[0].mxu0
        %v2730 = vpop.f32.mrb[0].mxu0
        %v2731 = vadd.f32 0.0, %v2730
        %v2732 = vpop.f32.mrb[0].mxu0
        %2733 = vmatprep.mubr.bf16.mxu0 0
        %2734 = vmatmul.mubr.bf16.gmra.mrb[0].mxu0 %v2581
        %v2735 = vpop.f32.mrb[0].mxu0
        %v2736 = vadd.f32 0.0, %v2735
        %v2737 = vpop.f32.mrb[0].mxu0
        %v2738 = vpop.f32.mrb[0].mxu0
        %v2739 = vadd.f32 0.0, %v2738
        %v2740 = vpop.f32.mrb[0].mxu0
        %2741 = vmatprep.mubr.bf16.mxu0 0
        %2742 = vmatmul.mubr.bf16.gmra.mrb[0].mxu0 %v2584
        %v2743 = vpop.f32.mrb[0].mxu0
        %v2744 = vadd.f32 0.0, %v2743
        %v2745 = vpop.f32.mrb[0].mxu0
        %v2746 = vpop.f32.mrb[0].mxu0
        %v2747 = vadd.f32 0.0, %v2746
        %v2748 = vpop.f32.mrb[0].mxu0
        %2749 = vdwg.mxu0
        %v2750 = vadd.f32 %v2455, %v2624
        %v2751 = vadd.f32 %v2456, %v2627
        %v2752 = vadd.f32 %v2457, %v2632
        %v2753 = vadd.f32 %v2458, %v2635
        %v2754 = vadd.f32 %v2459, %v2640
        %v2755 = vadd.f32 %v2460, %v2643
        %v2756 = vadd.f32 %v2461, %v2648
        %v2757 = vadd.f32 %v2462, %v2651
        %v2758 = vadd.f32 %v2463, %v2656
        %v2759 = vadd.f32 %v2464, %v2659
        %v2760 = vadd.f32 %v2465, %v2664
        %v2761 = vadd.f32 %v2466, %v2667
        %v2762 = vadd.f32 %v2467, %v2672
        %v2763 = vadd.f32 %v2468, %v2675
        %v2764 = vadd.f32 %v2469, %v2680
        %v2765 = vadd.f32 %v2470, %v2683
        %v2766 = vadd.f32 %v2471, %v2688
        %v2767 = vadd.f32 %v2472, %v2691
        %v2768 = vadd.f32 %v2473, %v2696
        %v2769 = vadd.f32 %v2474, %v2699
        %v2770 = vadd.f32 %v2475, %v2704
        %v2771 = vadd.f32 %v2476, %v2707
        %v2772 = vadd.f32 %v2477, %v2712
        %v2773 = vadd.f32 %v2478, %v2715
        %v2774 = vadd.f32 %v2479, %v2720
        %v2775 = vadd.f32 %v2480, %v2723
        %v2776 = vadd.f32 %v2481, %v2728
        %v2777 = vadd.f32 %v2482, %v2731
        %v2778 = vadd.f32 %v2483, %v2736
        %v2779 = vadd.f32 %v2484, %v2739
        %v2780 = vadd.f32 %v2485, %v2744
        %v2781 = vadd.f32 %v2486, %v2747
        %v2782 = vld [vmem:[%s2487 + $0x1] sm:$0xff]
        %v2783 = vld [vmem:[%s2487 + $0x9] sm:$0xff]
        %v2784 = vld [vmem:[%s2487 + $0x19] sm:$0xff]
        %v2785 = vld [vmem:[%s2487 + $0x21] sm:$0xff]
        %v2786 = vld [vmem:[%s2487 + $0x31] sm:$0xff]
        %v2787 = vld [vmem:[%s2487 + $0x39] sm:$0xff]
        %v2788 = vld [vmem:[%s2487 + $0x49] sm:$0xff]
        %v2789 = vld [vmem:[%s2487 + $0x51] sm:$0xff]
        %v2790 = vld [vmem:[%s2487 + $0x61] sm:$0xff]
        %v2791 = vld [vmem:[%s2487 + $0x69] sm:$0xff]
        %v2792 = vld [vmem:[%s2487 + $0x79] sm:$0xff]
        %v2793 = vld [vmem:[%s2487 + $0x81] sm:$0xff]
        %v2794 = vld [vmem:[%s2487 + $0x91] sm:$0xff]
        %v2795 = vld [vmem:[%s2487 + $0x99] sm:$0xff]
        %v2796 = vld [vmem:[%s2487 + $0xa9] sm:$0xff]
        %v2797 = vld [vmem:[%s2487 + $0xb1] sm:$0xff]
        %v2798 = vld [vmem:[%s2487 + $0xc1] sm:$0xff]
        %v2799 = vld [vmem:[%s2487 + $0xc9] sm:$0xff]
        %v2800 = vld [vmem:[%s2487 + $0xd9] sm:$0xff]
        %v2801 = vld [vmem:[%s2487 + $0xe1] sm:$0xff]
        %v2802 = vld [vmem:[%s2487 + $0xf1] sm:$0xff]
        %v2803 = vld [vmem:[%s2487 + $0xf9] sm:$0xff]
        %v2804 = vld [vmem:[%s2487 + $0x109] sm:$0xff]
        %v2805 = vld [vmem:[%s2487 + $0x111] sm:$0xff]
        %v2806 = vld [vmem:[%s2487 + $0x121] sm:$0xff]
        %v2807 = vld [vmem:[%s2487 + $0x129] sm:$0xff]
        %v2808 = vld [vmem:[%s2487 + $0x139] sm:$0xff]
        %v2809 = vld [vmem:[%s2487 + $0x141] sm:$0xff]
        %v2810 = vld [vmem:[%s2487 + $0x151] sm:$0xff]
        %v2811 = vld [vmem:[%s2487 + $0x159] sm:$0xff]
        %v2812 = vld [vmem:[%s2487 + $0x169] sm:$0xff]
        %v2813 = vld [vmem:[%s2487 + $0x171] sm:$0xff]
        %v2814 = vpack.c.bf16 %v2783, %v2782
        %v2815 = vpack.c.bf16 %v2785, %v2784
        %v2816 = vpack.c.bf16 %v2787, %v2786
        %v2817 = vpack.c.bf16 %v2789, %v2788
        %v2818 = vpack.c.bf16 %v2791, %v2790
        %v2819 = vpack.c.bf16 %v2793, %v2792
        %v2820 = vpack.c.bf16 %v2795, %v2794
        %v2821 = vpack.c.bf16 %v2797, %v2796
        %v2822 = vpack.c.bf16 %v2799, %v2798
        %v2823 = vpack.c.bf16 %v2801, %v2800
        %v2824 = vpack.c.bf16 %v2803, %v2802
        %v2825 = vpack.c.bf16 %v2805, %v2804
        %v2826 = vpack.c.bf16 %v2807, %v2806
        %v2827 = vpack.c.bf16 %v2809, %v2808
        %v2828 = vpack.c.bf16 %v2811, %v2810
        %v2829 = vpack.c.bf16 %v2813, %v2812
        %s2830 = scalar_lea.vmem %s3, 28
        %v2831 = vld [vmem:[%s2830] sm:$0xf]
        %v2833 = vsel %vm698, %v2814, 0
        %v2836 = vsel %vm698, %v2815, 0
        %v2839 = vsel %vm698, %v2816, 0
        %v2842 = vsel %vm698, %v2817, 0
        %v2845 = vsel %vm698, %v2818, 0
        %v2848 = vsel %vm698, %v2819, 0
        %v2851 = vsel %vm698, %v2820, 0
        %v2854 = vsel %vm698, %v2821, 0
        %v2857 = vsel %vm698, %v2822, 0
        %v2860 = vsel %vm698, %v2823, 0
        %v2863 = vsel %vm698, %v2824, 0
        %v2866 = vsel %vm698, %v2825, 0
        %v2869 = vsel %vm698, %v2826, 0
        %v2872 = vsel %vm698, %v2827, 0
        %v2875 = vsel %vm698, %v2828, 0
        %v2878 = vsel %vm698, %v2829, 0
        %v2881 = vsel %vm934, %v2831, 0
        %2883 = vmatprep.subr.bf16.mxu0 0
        %2884 = vmatpush1.bf16.msra.mxu0 %v2881
        %2885 = vmatprep.subr.bf16.mxu0 0
        %2886 = vmatpush1.bf16.msra.mxu0 0
        %2887 = vmatprep.subr.bf16.mxu0 0
        %2888 = vmatpush1.bf16.msra.mxu0 0
        %2889 = vmatprep.subr.bf16.mxu0 0
        %2890 = vmatpush1.bf16.msra.mxu0 0
        %2891 = vmatprep.subr.bf16.mxu0 0
        %2892 = vmatpush1.bf16.msra.mxu0 0
        %2893 = vmatprep.subr.bf16.mxu0 0
        %2894 = vmatpush1.bf16.msra.mxu0 0
        %2895 = vmatprep.subr.bf16.mxu0 0
        %2896 = vmatpush1.bf16.msra.mxu0 0
        %2897 = vmatprep.subr.bf16.mxu0 0
        %2898 = vmatpush1.bf16.msra.mxu0 0
        %2899 = vmatprep.subr.bf16.mxu0 0
        %2900 = vmatpush1.bf16.msra.mxu0 0
        %2901 = vmatprep.subr.bf16.mxu0 0
        %2902 = vmatpush1.bf16.msra.mxu0 0
        %2903 = vmatprep.subr.bf16.mxu0 0
        %2904 = vmatpush1.bf16.msra.mxu0 0
        %2905 = vmatprep.subr.bf16.mxu0 0
        %2906 = vmatpush1.bf16.msra.mxu0 0
        %2907 = vmatprep.subr.bf16.mxu0 0
        %2908 = vmatpush1.bf16.msra.mxu0 0
        %2909 = vmatprep.subr.bf16.mxu0 0
        %2910 = vmatpush1.bf16.msra.mxu0 0
        %2911 = vmatprep.subr.bf16.mxu0 0
        %2912 = vmatpush1.bf16.msra.mxu0 0
        %2913 = vmatprep.subr.bf16.mxu0 0
        %2914 = vmatpush1.bf16.msra.mxu0 0
        %2915 = vmatprep.mubr.bf16.mxu0 0
        %2916 = vmatmul.mubr.bf16.gmra.mrb[0].mxu0 %v2833
        %v2917 = vpop.f32.mrb[0].mxu0
        %v2918 = vadd.f32 0.0, %v2917
        %v2919 = vpop.f32.mrb[0].mxu0
        %v2920 = vpop.f32.mrb[0].mxu0
        %v2921 = vadd.f32 0.0, %v2920
        %v2922 = vpop.f32.mrb[0].mxu0
        %2923 = vmatprep.mubr.bf16.mxu0 0
        %2924 = vmatmul.mubr.bf16.gmra.mrb[0].mxu0 %v2836
        %v2925 = vpop.f32.mrb[0].mxu0
        %v2926 = vadd.f32 0.0, %v2925
        %v2927 = vpop.f32.mrb[0].mxu0
        %v2928 = vpop.f32.mrb[0].mxu0
        %v2929 = vadd.f32 0.0, %v2928
        %v2930 = vpop.f32.mrb[0].mxu0
        %2931 = vmatprep.mubr.bf16.mxu0 0
        %2932 = vmatmul.mubr.bf16.gmra.mrb[0].mxu0 %v2839
        %v2933 = vpop.f32.mrb[0].mxu0
        %v2934 = vadd.f32 0.0, %v2933
        %v2935 = vpop.f32.mrb[0].mxu0
        %v2936 = vpop.f32.mrb[0].mxu0
        %v2937 = vadd.f32 0.0, %v2936
        %v2938 = vpop.f32.mrb[0].mxu0
        %2939 = vmatprep.mubr.bf16.mxu0 0
        %2940 = vmatmul.mubr.bf16.gmra.mrb[0].mxu0 %v2842
        %v2941 = vpop.f32.mrb[0].mxu0
        %v2942 = vadd.f32 0.0, %v2941
        %v2943 = vpop.f32.mrb[0].mxu0
        %v2944 = vpop.f32.mrb[0].mxu0
        %v2945 = vadd.f32 0.0, %v2944
        %v2946 = vpop.f32.mrb[0].mxu0
        %2947 = vmatprep.mubr.bf16.mxu0 0
        %2948 = vmatmul.mubr.bf16.gmra.mrb[0].mxu0 %v2845
        %v2949 = vpop.f32.mrb[0].mxu0
        %v2950 = vadd.f32 0.0, %v2949
        %v2951 = vpop.f32.mrb[0].mxu0
        %v2952 = vpop.f32.mrb[0].mxu0
        %v2953 = vadd.f32 0.0, %v2952
        %v2954 = vpop.f32.mrb[0].mxu0
        %2955 = vmatprep.mubr.bf16.mxu0 0
        %2956 = vmatmul.mubr.bf16.gmra.mrb[0].mxu0 %v2848
        %v2957 = vpop.f32.mrb[0].mxu0
        %v2958 = vadd.f32 0.0, %v2957
        %v2959 = vpop.f32.mrb[0].mxu0
        %v2960 = vpop.f32.mrb[0].mxu0
        %v2961 = vadd.f32 0.0, %v2960
        %v2962 = vpop.f32.mrb[0].mxu0
        %2963 = vmatprep.mubr.bf16.mxu0 0
        %2964 = vmatmul.mubr.bf16.gmra.mrb[0].mxu0 %v2851
        %v2965 = vpop.f32.mrb[0].mxu0
        %v2966 = vadd.f32 0.0, %v2965
        %v2967 = vpop.f32.mrb[0].mxu0
        %v2968 = vpop.f32.mrb[0].mxu0
        %v2969 = vadd.f32 0.0, %v2968
        %v2970 = vpop.f32.mrb[0].mxu0
        %2971 = vmatprep.mubr.bf16.mxu0 0
        %2972 = vmatmul.mubr.bf16.gmra.mrb[0].mxu0 %v2854
        %v2973 = vpop.f32.mrb[0].mxu0
        %v2974 = vadd.f32 0.0, %v2973
        %v2975 = vpop.f32.mrb[0].mxu0
        %v2976 = vpop.f32.mrb[0].mxu0
        %v2977 = vadd.f32 0.0, %v2976
        %v2978 = vpop.f32.mrb[0].mxu0
        %2979 = vmatprep.mubr.bf16.mxu0 0
        %2980 = vmatmul.mubr.bf16.gmra.mrb[0].mxu0 %v2857
        %v2981 = vpop.f32.mrb[0].mxu0
        %v2982 = vadd.f32 0.0, %v2981
        %v2983 = vpop.f32.mrb[0].mxu0
        %v2984 = vpop.f32.mrb[0].mxu0
        %v2985 = vadd.f32 0.0, %v2984
        %v2986 = vpop.f32.mrb[0].mxu0
        %2987 = vmatprep.mubr.bf16.mxu0 0
        %2988 = vmatmul.mubr.bf16.gmra.mrb[0].mxu0 %v2860
        %v2989 = vpop.f32.mrb[0].mxu0
        %v2990 = vadd.f32 0.0, %v2989
        %v2991 = vpop.f32.mrb[0].mxu0
        %v2992 = vpop.f32.mrb[0].mxu0
        %v2993 = vadd.f32 0.0, %v2992
        %v2994 = vpop.f32.mrb[0].mxu0
        %2995 = vmatprep.mubr.bf16.mxu0 0
        %2996 = vmatmul.mubr.bf16.gmra.mrb[0].mxu0 %v2863
        %v2997 = vpop.f32.mrb[0].mxu0
        %v2998 = vadd.f32 0.0, %v2997
        %v2999 = vpop.f32.mrb[0].mxu0
        %v3000 = vpop.f32.mrb[0].mxu0
        %v3001 = vadd.f32 0.0, %v3000
        %v3002 = vpop.f32.mrb[0].mxu0
        %3003 = vmatprep.mubr.bf16.mxu0 0
        %3004 = vmatmul.mubr.bf16.gmra.mrb[0].mxu0 %v2866
        %v3005 = vpop.f32.mrb[0].mxu0
        %v3006 = vadd.f32 0.0, %v3005
        %v3007 = vpop.f32.mrb[0].mxu0
        %v3008 = vpop.f32.mrb[0].mxu0
        %v3009 = vadd.f32 0.0, %v3008
        %v3010 = vpop.f32.mrb[0].mxu0
        %3011 = vmatprep.mubr.bf16.mxu0 0
        %3012 = vmatmul.mubr.bf16.gmra.mrb[0].mxu0 %v2869
        %v3013 = vpop.f32.mrb[0].mxu0
        %v3014 = vadd.f32 0.0, %v3013
        %v3015 = vpop.f32.mrb[0].mxu0
        %v3016 = vpop.f32.mrb[0].mxu0
        %v3017 = vadd.f32 0.0, %v3016
        %v3018 = vpop.f32.mrb[0].mxu0
        %3019 = vmatprep.mubr.bf16.mxu0 0
        %3020 = vmatmul.mubr.bf16.gmra.mrb[0].mxu0 %v2872
        %v3021 = vpop.f32.mrb[0].mxu0
        %v3022 = vadd.f32 0.0, %v3021
        %v3023 = vpop.f32.mrb[0].mxu0
        %v3024 = vpop.f32.mrb[0].mxu0
        %v3025 = vadd.f32 0.0, %v3024
        %v3026 = vpop.f32.mrb[0].mxu0
        %3027 = vmatprep.mubr.bf16.mxu0 0
        %3028 = vmatmul.mubr.bf16.gmra.mrb[0].mxu0 %v2875
        %v3029 = vpop.f32.mrb[0].mxu0
        %v3030 = vadd.f32 0.0, %v3029
        %v3031 = vpop.f32.mrb[0].mxu0
        %v3032 = vpop.f32.mrb[0].mxu0
        %v3033 = vadd.f32 0.0, %v3032
        %v3034 = vpop.f32.mrb[0].mxu0
        %3035 = vmatprep.mubr.bf16.mxu0 0
        %3036 = vmatmul.mubr.bf16.gmra.mrb[0].mxu0 %v2878
        %v3037 = vpop.f32.mrb[0].mxu0
        %v3038 = vadd.f32 0.0, %v3037
        %v3039 = vpop.f32.mrb[0].mxu0
        %v3040 = vpop.f32.mrb[0].mxu0
        %v3041 = vadd.f32 0.0, %v3040
        %v3042 = vpop.f32.mrb[0].mxu0
        %3043 = vdwg.mxu0
        %v3044 = vadd.f32 %v2750, %v2918
        %v3045 = vadd.f32 %v2751, %v2921
        %v3046 = vadd.f32 %v2752, %v2926
        %v3047 = vadd.f32 %v2753, %v2929
        %v3048 = vadd.f32 %v2754, %v2934
        %v3049 = vadd.f32 %v2755, %v2937
        %v3050 = vadd.f32 %v2756, %v2942
        %v3051 = vadd.f32 %v2757, %v2945
        %v3052 = vadd.f32 %v2758, %v2950
        %v3053 = vadd.f32 %v2759, %v2953
        %v3054 = vadd.f32 %v2760, %v2958
        %v3055 = vadd.f32 %v2761, %v2961
        %v3056 = vadd.f32 %v2762, %v2966
        %v3057 = vadd.f32 %v2763, %v2969
        %v3058 = vadd.f32 %v2764, %v2974
        %v3059 = vadd.f32 %v2765, %v2977
        %v3060 = vadd.f32 %v2766, %v2982
        %v3061 = vadd.f32 %v2767, %v2985
        %v3062 = vadd.f32 %v2768, %v2990
        %v3063 = vadd.f32 %v2769, %v2993
        %v3064 = vadd.f32 %v2770, %v2998
        %v3065 = vadd.f32 %v2771, %v3001
        %v3066 = vadd.f32 %v2772, %v3006
        %v3067 = vadd.f32 %v2773, %v3009
        %v3068 = vadd.f32 %v2774, %v3014
        %v3069 = vadd.f32 %v2775, %v3017
        %v3070 = vadd.f32 %v2776, %v3022
        %v3071 = vadd.f32 %v2777, %v3025
        %v3072 = vadd.f32 %v2778, %v3030
        %v3073 = vadd.f32 %v2779, %v3033
        %v3074 = vadd.f32 %v2780, %v3038
        %v3075 = vadd.f32 %v2781, %v3041
        %v3076 = vld [vmem:[%s2487 + $0x2] sm:$0xff]
        %v3077 = vld [vmem:[%s2487 + $0xa] sm:$0xff]
        %v3078 = vld [vmem:[%s2487 + $0x1a] sm:$0xff]
        %v3079 = vld [vmem:[%s2487 + $0x22] sm:$0xff]
        %v3080 = vld [vmem:[%s2487 + $0x32] sm:$0xff]
        %v3081 = vld [vmem:[%s2487 + $0x3a] sm:$0xff]
        %v3082 = vld [vmem:[%s2487 + $0x4a] sm:$0xff]
        %v3083 = vld [vmem:[%s2487 + $0x52] sm:$0xff]
        %v3084 = vld [vmem:[%s2487 + $0x62] sm:$0xff]
        %v3085 = vld [vmem:[%s2487 + $0x6a] sm:$0xff]
        %v3086 = vld [vmem:[%s2487 + $0x7a] sm:$0xff]
        %v3087 = vld [vmem:[%s2487 + $0x82] sm:$0xff]
        %v3088 = vld [vmem:[%s2487 + $0x92] sm:$0xff]
        %v3089 = vld [vmem:[%s2487 + $0x9a] sm:$0xff]
        %v3090 = vld [vmem:[%s2487 + $0xaa] sm:$0xff]
        %v3091 = vld [vmem:[%s2487 + $0xb2] sm:$0xff]
        %v3092 = vld [vmem:[%s2487 + $0xc2] sm:$0xff]
        %v3093 = vld [vmem:[%s2487 + $0xca] sm:$0xff]
        %v3094 = vld [vmem:[%s2487 + $0xda] sm:$0xff]
        %v3095 = vld [vmem:[%s2487 + $0xe2] sm:$0xff]
        %v3096 = vld [vmem:[%s2487 + $0xf2] sm:$0xff]
        %v3097 = vld [vmem:[%s2487 + $0xfa] sm:$0xff]
        %v3098 = vld [vmem:[%s2487 + $0x10a] sm:$0xff]
        %v3099 = vld [vmem:[%s2487 + $0x112] sm:$0xff]
        %v3100 = vld [vmem:[%s2487 + $0x122] sm:$0xff]
        %v3101 = vld [vmem:[%s2487 + $0x12a] sm:$0xff]
        %v3102 = vld [vmem:[%s2487 + $0x13a] sm:$0xff]
        %v3103 = vld [vmem:[%s2487 + $0x142] sm:$0xff]
        %v3104 = vld [vmem:[%s2487 + $0x152] sm:$0xff]
        %v3105 = vld [vmem:[%s2487 + $0x15a] sm:$0xff]
        %v3106 = vld [vmem:[%s2487 + $0x16a] sm:$0xff]
        %v3107 = vld [vmem:[%s2487 + $0x172] sm:$0xff]
        %v3108 = vpack.c.bf16 %v3077, %v3076
        %v3109 = vpack.c.bf16 %v3079, %v3078
        %v3110 = vpack.c.bf16 %v3081, %v3080
        %v3111 = vpack.c.bf16 %v3083, %v3082
        %v3112 = vpack.c.bf16 %v3085, %v3084
        %v3113 = vpack.c.bf16 %v3087, %v3086
        %v3114 = vpack.c.bf16 %v3089, %v3088
        %v3115 = vpack.c.bf16 %v3091, %v3090
        %v3116 = vpack.c.bf16 %v3093, %v3092
        %v3117 = vpack.c.bf16 %v3095, %v3094
        %v3118 = vpack.c.bf16 %v3097, %v3096
        %v3119 = vpack.c.bf16 %v3099, %v3098
        %v3120 = vpack.c.bf16 %v3101, %v3100
        %v3121 = vpack.c.bf16 %v3103, %v3102
        %v3122 = vpack.c.bf16 %v3105, %v3104
        %v3123 = vpack.c.bf16 %v3107, %v3106
        %s3124 = scalar_lea.vmem %s3, 32
        %v3125 = vld [vmem:[%s3124] sm:$0xf]
        %v3127 = vsel %vm698, %v3108, 0
        %v3130 = vsel %vm698, %v3109, 0
        %v3133 = vsel %vm698, %v3110, 0
        %v3136 = vsel %vm698, %v3111, 0
        %v3139 = vsel %vm698, %v3112, 0
        %v3142 = vsel %vm698, %v3113, 0
        %v3145 = vsel %vm698, %v3114, 0
        %v3148 = vsel %vm698, %v3115, 0
        %v3151 = vsel %vm698, %v3116, 0
        %v3154 = vsel %vm698, %v3117, 0
        %v3157 = vsel %vm698, %v3118, 0
        %v3160 = vsel %vm698, %v3119, 0
        %v3163 = vsel %vm698, %v3120, 0
        %v3166 = vsel %vm698, %v3121, 0
        %v3169 = vsel %vm698, %v3122, 0
        %v3172 = vsel %vm698, %v3123, 0
        %v3175 = vsel %vm934, %v3125, 0
        %3177 = vmatprep.subr.bf16.mxu0 0
        %3178 = vmatpush1.bf16.msra.mxu0 %v3175
        %3179 = vmatprep.subr.bf16.mxu0 0
        %3180 = vmatpush1.bf16.msra.mxu0 0
        %3181 = vmatprep.subr.bf16.mxu0 0
        %3182 = vmatpush1.bf16.msra.mxu0 0
        %3183 = vmatprep.subr.bf16.mxu0 0
        %3184 = vmatpush1.bf16.msra.mxu0 0
        %3185 = vmatprep.subr.bf16.mxu0 0
        %3186 = vmatpush1.bf16.msra.mxu0 0
        %3187 = vmatprep.subr.bf16.mxu0 0
        %3188 = vmatpush1.bf16.msra.mxu0 0
        %3189 = vmatprep.subr.bf16.mxu0 0
        %3190 = vmatpush1.bf16.msra.mxu0 0
        %3191 = vmatprep.subr.bf16.mxu0 0
        %3192 = vmatpush1.bf16.msra.mxu0 0
        %3193 = vmatprep.subr.bf16.mxu0 0
        %3194 = vmatpush1.bf16.msra.mxu0 0
        %3195 = vmatprep.subr.bf16.mxu0 0
        %3196 = vmatpush1.bf16.msra.mxu0 0
        %3197 = vmatprep.subr.bf16.mxu0 0
        %3198 = vmatpush1.bf16.msra.mxu0 0
        %3199 = vmatprep.subr.bf16.mxu0 0
        %3200 = vmatpush1.bf16.msra.mxu0 0
        %3201 = vmatprep.subr.bf16.mxu0 0
        %3202 = vmatpush1.bf16.msra.mxu0 0
        %3203 = vmatprep.subr.bf16.mxu0 0
        %3204 = vmatpush1.bf16.msra.mxu0 0
        %3205 = vmatprep.subr.bf16.mxu0 0
        %3206 = vmatpush1.bf16.msra.mxu0 0
        %3207 = vmatprep.subr.bf16.mxu0 0
        %3208 = vmatpush1.bf16.msra.mxu0 0
        %3209 = vmatprep.mubr.bf16.mxu0 0
        %3210 = vmatmul.mubr.bf16.gmra.mrb[0].mxu0 %v3127
        %v3211 = vpop.f32.mrb[0].mxu0
        %v3212 = vadd.f32 0.0, %v3211
        %v3213 = vpop.f32.mrb[0].mxu0
        %v3214 = vpop.f32.mrb[0].mxu0
        %v3215 = vadd.f32 0.0, %v3214
        %v3216 = vpop.f32.mrb[0].mxu0
        %3217 = vmatprep.mubr.bf16.mxu0 0
        %3218 = vmatmul.mubr.bf16.gmra.mrb[0].mxu0 %v3130
        %v3219 = vpop.f32.mrb[0].mxu0
        %v3220 = vadd.f32 0.0, %v3219
        %v3221 = vpop.f32.mrb[0].mxu0
        %v3222 = vpop.f32.mrb[0].mxu0
        %v3223 = vadd.f32 0.0, %v3222
        %v3224 = vpop.f32.mrb[0].mxu0
        %3225 = vmatprep.mubr.bf16.mxu0 0
        %3226 = vmatmul.mubr.bf16.gmra.mrb[0].mxu0 %v3133
        %v3227 = vpop.f32.mrb[0].mxu0
        %v3228 = vadd.f32 0.0, %v3227
        %v3229 = vpop.f32.mrb[0].mxu0
        %v3230 = vpop.f32.mrb[0].mxu0
        %v3231 = vadd.f32 0.0, %v3230
        %v3232 = vpop.f32.mrb[0].mxu0
        %3233 = vmatprep.mubr.bf16.mxu0 0
        %3234 = vmatmul.mubr.bf16.gmra.mrb[0].mxu0 %v3136
        %v3235 = vpop.f32.mrb[0].mxu0
        %v3236 = vadd.f32 0.0, %v3235
        %v3237 = vpop.f32.mrb[0].mxu0
        %v3238 = vpop.f32.mrb[0].mxu0
        %v3239 = vadd.f32 0.0, %v3238
        %v3240 = vpop.f32.mrb[0].mxu0
        %3241 = vmatprep.mubr.bf16.mxu0 0
        %3242 = vmatmul.mubr.bf16.gmra.mrb[0].mxu0 %v3139
        %v3243 = vpop.f32.mrb[0].mxu0
        %v3244 = vadd.f32 0.0, %v3243
        %v3245 = vpop.f32.mrb[0].mxu0
        %v3246 = vpop.f32.mrb[0].mxu0
        %v3247 = vadd.f32 0.0, %v3246
        %v3248 = vpop.f32.mrb[0].mxu0
        %3249 = vmatprep.mubr.bf16.mxu0 0
        %3250 = vmatmul.mubr.bf16.gmra.mrb[0].mxu0 %v3142
        %v3251 = vpop.f32.mrb[0].mxu0
        %v3252 = vadd.f32 0.0, %v3251
        %v3253 = vpop.f32.mrb[0].mxu0
        %v3254 = vpop.f32.mrb[0].mxu0
        %v3255 = vadd.f32 0.0, %v3254
        %v3256 = vpop.f32.mrb[0].mxu0
        %3257 = vmatprep.mubr.bf16.mxu0 0
        %3258 = vmatmul.mubr.bf16.gmra.mrb[0].mxu0 %v3145
        %v3259 = vpop.f32.mrb[0].mxu0
        %v3260 = vadd.f32 0.0, %v3259
        %v3261 = vpop.f32.mrb[0].mxu0
        %v3262 = vpop.f32.mrb[0].mxu0
        %v3263 = vadd.f32 0.0, %v3262
        %v3264 = vpop.f32.mrb[0].mxu0
        %3265 = vmatprep.mubr.bf16.mxu0 0
        %3266 = vmatmul.mubr.bf16.gmra.mrb[0].mxu0 %v3148
        %v3267 = vpop.f32.mrb[0].mxu0
        %v3268 = vadd.f32 0.0, %v3267
        %v3269 = vpop.f32.mrb[0].mxu0
        %v3270 = vpop.f32.mrb[0].mxu0
        %v3271 = vadd.f32 0.0, %v3270
        %v3272 = vpop.f32.mrb[0].mxu0
        %3273 = vmatprep.mubr.bf16.mxu0 0
        %3274 = vmatmul.mubr.bf16.gmra.mrb[0].mxu0 %v3151
        %v3275 = vpop.f32.mrb[0].mxu0
        %v3276 = vadd.f32 0.0, %v3275
        %v3277 = vpop.f32.mrb[0].mxu0
        %v3278 = vpop.f32.mrb[0].mxu0
        %v3279 = vadd.f32 0.0, %v3278
        %v3280 = vpop.f32.mrb[0].mxu0
        %3281 = vmatprep.mubr.bf16.mxu0 0
        %3282 = vmatmul.mubr.bf16.gmra.mrb[0].mxu0 %v3154
        %v3283 = vpop.f32.mrb[0].mxu0
        %v3284 = vadd.f32 0.0, %v3283
        %v3285 = vpop.f32.mrb[0].mxu0
        %v3286 = vpop.f32.mrb[0].mxu0
        %v3287 = vadd.f32 0.0, %v3286
        %v3288 = vpop.f32.mrb[0].mxu0
        %3289 = vmatprep.mubr.bf16.mxu0 0
        %3290 = vmatmul.mubr.bf16.gmra.mrb[0].mxu0 %v3157
        %v3291 = vpop.f32.mrb[0].mxu0
        %v3292 = vadd.f32 0.0, %v3291
        %v3293 = vpop.f32.mrb[0].mxu0
        %v3294 = vpop.f32.mrb[0].mxu0
        %v3295 = vadd.f32 0.0, %v3294
        %v3296 = vpop.f32.mrb[0].mxu0
        %3297 = vmatprep.mubr.bf16.mxu0 0
        %3298 = vmatmul.mubr.bf16.gmra.mrb[0].mxu0 %v3160
        %v3299 = vpop.f32.mrb[0].mxu0
        %v3300 = vadd.f32 0.0, %v3299
        %v3301 = vpop.f32.mrb[0].mxu0
        %v3302 = vpop.f32.mrb[0].mxu0
        %v3303 = vadd.f32 0.0, %v3302
        %v3304 = vpop.f32.mrb[0].mxu0
        %3305 = vmatprep.mubr.bf16.mxu0 0
        %3306 = vmatmul.mubr.bf16.gmra.mrb[0].mxu0 %v3163
        %v3307 = vpop.f32.mrb[0].mxu0
        %v3308 = vadd.f32 0.0, %v3307
        %v3309 = vpop.f32.mrb[0].mxu0
        %v3310 = vpop.f32.mrb[0].mxu0
        %v3311 = vadd.f32 0.0, %v3310
        %v3312 = vpop.f32.mrb[0].mxu0
        %3313 = vmatprep.mubr.bf16.mxu0 0
        %3314 = vmatmul.mubr.bf16.gmra.mrb[0].mxu0 %v3166
        %v3315 = vpop.f32.mrb[0].mxu0
        %v3316 = vadd.f32 0.0, %v3315
        %v3317 = vpop.f32.mrb[0].mxu0
        %v3318 = vpop.f32.mrb[0].mxu0
        %v3319 = vadd.f32 0.0, %v3318
        %v3320 = vpop.f32.mrb[0].mxu0
        %3321 = vmatprep.mubr.bf16.mxu0 0
        %3322 = vmatmul.mubr.bf16.gmra.mrb[0].mxu0 %v3169
        %v3323 = vpop.f32.mrb[0].mxu0
        %v3324 = vadd.f32 0.0, %v3323
        %v3325 = vpop.f32.mrb[0].mxu0
        %v3326 = vpop.f32.mrb[0].mxu0
        %v3327 = vadd.f32 0.0, %v3326
        %v3328 = vpop.f32.mrb[0].mxu0
        %3329 = vmatprep.mubr.bf16.mxu0 0
        %3330 = vmatmul.mubr.bf16.gmra.mrb[0].mxu0 %v3172
        %v3331 = vpop.f32.mrb[0].mxu0
        %v3332 = vadd.f32 0.0, %v3331
        %v3333 = vpop.f32.mrb[0].mxu0
        %v3334 = vpop.f32.mrb[0].mxu0
        %v3335 = vadd.f32 0.0, %v3334
        %v3336 = vpop.f32.mrb[0].mxu0
        %3337 = vdwg.mxu0
        %v3338 = vadd.f32 %v3044, %v3212
        %v3339 = vadd.f32 %v3045, %v3215
        %v3340 = vadd.f32 %v3046, %v3220
        %v3341 = vadd.f32 %v3047, %v3223
        %v3342 = vadd.f32 %v3048, %v3228
        %v3343 = vadd.f32 %v3049, %v3231
        %v3344 = vadd.f32 %v3050, %v3236
        %v3345 = vadd.f32 %v3051, %v3239
        %v3346 = vadd.f32 %v3052, %v3244
        %v3347 = vadd.f32 %v3053, %v3247
        %v3348 = vadd.f32 %v3054, %v3252
        %v3349 = vadd.f32 %v3055, %v3255
        %v3350 = vadd.f32 %v3056, %v3260
        %v3351 = vadd.f32 %v3057, %v3263
        %v3352 = vadd.f32 %v3058, %v3268
        %v3353 = vadd.f32 %v3059, %v3271
        %v3354 = vadd.f32 %v3060, %v3276
        %v3355 = vadd.f32 %v3061, %v3279
        %v3356 = vadd.f32 %v3062, %v3284
        %v3357 = vadd.f32 %v3063, %v3287
        %v3358 = vadd.f32 %v3064, %v3292
        %v3359 = vadd.f32 %v3065, %v3295
        %v3360 = vadd.f32 %v3066, %v3300
        %v3361 = vadd.f32 %v3067, %v3303
        %v3362 = vadd.f32 %v3068, %v3308
        %v3363 = vadd.f32 %v3069, %v3311
        %v3364 = vadd.f32 %v3070, %v3316
        %v3365 = vadd.f32 %v3071, %v3319
        %v3366 = vadd.f32 %v3072, %v3324
        %v3367 = vadd.f32 %v3073, %v3327
        %v3368 = vadd.f32 %v3074, %v3332
        %v3369 = vadd.f32 %v3075, %v3335
        %v3370 = vld [vmem:[%s4] sm:$0x1]
        %v3372 = vlaneseq
        %v3373 = vshrl.u32 %v3372, 7
        %v3374 = vsub.s32 0, %v3373
        %v3375 = vrot.slane %v3370, %v3374
        %v3377 = vadd.f32 %v3338, %v3375
        %v3378 = vadd.f32 %v3339, %v3375
        %v3379 = vadd.f32 %v3340, %v3375
        %v3380 = vadd.f32 %v3341, %v3375
        %v3381 = vadd.f32 %v3342, %v3375
        %v3382 = vadd.f32 %v3343, %v3375
        %v3383 = vadd.f32 %v3344, %v3375
        %v3384 = vadd.f32 %v3345, %v3375
        %v3385 = vadd.f32 %v3346, %v3375
        %v3386 = vadd.f32 %v3347, %v3375
        %v3387 = vadd.f32 %v3348, %v3375
        %v3388 = vadd.f32 %v3349, %v3375
        %v3389 = vadd.f32 %v3350, %v3375
        %v3390 = vadd.f32 %v3351, %v3375
        %v3391 = vadd.f32 %v3352, %v3375
        %v3392 = vadd.f32 %v3353, %v3375
        %v3393 = vadd.f32 %v3354, %v3375
        %v3394 = vadd.f32 %v3355, %v3375
        %v3395 = vadd.f32 %v3356, %v3375
        %v3396 = vadd.f32 %v3357, %v3375
        %v3397 = vadd.f32 %v3358, %v3375
        %v3398 = vadd.f32 %v3359, %v3375
        %v3399 = vadd.f32 %v3360, %v3375
        %v3400 = vadd.f32 %v3361, %v3375
        %v3401 = vadd.f32 %v3362, %v3375
        %v3402 = vadd.f32 %v3363, %v3375
        %v3403 = vadd.f32 %v3364, %v3375
        %v3404 = vadd.f32 %v3365, %v3375
        %v3405 = vadd.f32 %v3366, %v3375
        %v3406 = vadd.f32 %v3367, %v3375
        %v3407 = vadd.f32 %v3368, %v3375
        %v3408 = vadd.f32 %v3369, %v3375
        %v3409 = vmax.f32 %v3377, 0.0
        %v3410 = vmax.f32 %v3378, 0.0
        %v3411 = vmax.f32 %v3379, 0.0
        %v3412 = vmax.f32 %v3380, 0.0
        %v3413 = vmax.f32 %v3381, 0.0
        %v3414 = vmax.f32 %v3382, 0.0
        %v3415 = vmax.f32 %v3383, 0.0
        %v3416 = vmax.f32 %v3384, 0.0
        %v3417 = vmax.f32 %v3385, 0.0
        %v3418 = vmax.f32 %v3386, 0.0
        %v3419 = vmax.f32 %v3387, 0.0
        %v3420 = vmax.f32 %v3388, 0.0
        %v3421 = vmax.f32 %v3389, 0.0
        %v3422 = vmax.f32 %v3390, 0.0
        %v3423 = vmax.f32 %v3391, 0.0
        %v3424 = vmax.f32 %v3392, 0.0
        %v3425 = vmax.f32 %v3393, 0.0
        %v3426 = vmax.f32 %v3394, 0.0
        %v3427 = vmax.f32 %v3395, 0.0
        %v3428 = vmax.f32 %v3396, 0.0
        %v3429 = vmax.f32 %v3397, 0.0
        %v3430 = vmax.f32 %v3398, 0.0
        %v3431 = vmax.f32 %v3399, 0.0
        %v3432 = vmax.f32 %v3400, 0.0
        %v3433 = vmax.f32 %v3401, 0.0
        %v3434 = vmax.f32 %v3402, 0.0
        %v3435 = vmax.f32 %v3403, 0.0
        %v3436 = vmax.f32 %v3404, 0.0
        %v3437 = vmax.f32 %v3405, 0.0
        %v3438 = vmax.f32 %v3406, 0.0
        %v3439 = vmax.f32 %v3407, 0.0
        %v3440 = vmax.f32 %v3408, 0.0
        %v3441 = vpack.c.bf16 %v3410, %v3409
        %v3442 = vpack.c.bf16 %v3412, %v3411
        %v3443 = vpack.c.bf16 %v3414, %v3413
        %v3444 = vpack.c.bf16 %v3416, %v3415
        %v3445 = vpack.c.bf16 %v3418, %v3417
        %v3446 = vpack.c.bf16 %v3420, %v3419
        %v3447 = vpack.c.bf16 %v3422, %v3421
        %v3448 = vpack.c.bf16 %v3424, %v3423
        %v3449 = vpack.c.bf16 %v3426, %v3425
        %v3450 = vpack.c.bf16 %v3428, %v3427
        %v3451 = vpack.c.bf16 %v3430, %v3429
        %v3452 = vpack.c.bf16 %v3432, %v3431
        %v3453 = vpack.c.bf16 %v3434, %v3433
        %v3454 = vpack.c.bf16 %v3436, %v3435
        %v3455 = vpack.c.bf16 %v3438, %v3437
        %v3456 = vpack.c.bf16 %v3440, %v3439
        %v3457 = vld [vmem:[%s5] sm:$0xf]
        %v3458 = vld [vmem:[%s6] sm:$0x1]
        %v3460 = vlaneseq
        %v3461 = vshrl.u32 %v3460, 7
        %v3462 = vsub.s32 0, %v3461
        %v3463 = vrot.slane %v3458, %v3462
        %v3466 = vsel %vm698, %v3441, 0
        %v3469 = vsel %vm698, %v3442, 0
        %v3472 = vsel %vm698, %v3443, 0
        %v3475 = vsel %vm698, %v3444, 0
        %v3478 = vsel %vm698, %v3445, 0
        %v3481 = vsel %vm698, %v3446, 0
        %v3484 = vsel %vm698, %v3447, 0
        %v3487 = vsel %vm698, %v3448, 0
        %v3490 = vsel %vm698, %v3449, 0
        %v3493 = vsel %vm698, %v3450, 0
        %v3496 = vsel %vm698, %v3451, 0
        %v3499 = vsel %vm698, %v3452, 0
        %v3502 = vsel %vm698, %v3453, 0
        %v3505 = vsel %vm698, %v3454, 0
        %v3508 = vsel %vm698, %v3455, 0
        %v3511 = vsel %vm698, %v3456, 0
        %v3514 = vsel %vm934, %v3457, 0
        %3516 = vmatprep.subr.bf16.mxu0 0
        %3517 = vmatpush1.bf16.msra.mxu0 %v3514
        %3518 = vmatprep.subr.bf16.mxu0 0
        %3519 = vmatpush1.bf16.msra.mxu0 0
        %3520 = vmatprep.subr.bf16.mxu0 0
        %3521 = vmatpush1.bf16.msra.mxu0 0
        %3522 = vmatprep.subr.bf16.mxu0 0
        %3523 = vmatpush1.bf16.msra.mxu0 0
        %3524 = vmatprep.subr.bf16.mxu0 0
        %3525 = vmatpush1.bf16.msra.mxu0 0
        %3526 = vmatprep.subr.bf16.mxu0 0
        %3527 = vmatpush1.bf16.msra.mxu0 0
        %3528 = vmatprep.subr.bf16.mxu0 0
        %3529 = vmatpush1.bf16.msra.mxu0 0
        %3530 = vmatprep.subr.bf16.mxu0 0
        %3531 = vmatpush1.bf16.msra.mxu0 0
        %3532 = vmatprep.subr.bf16.mxu0 0
        %3533 = vmatpush1.bf16.msra.mxu0 0
        %3534 = vmatprep.subr.bf16.mxu0 0
        %3535 = vmatpush1.bf16.msra.mxu0 0
        %3536 = vmatprep.subr.bf16.mxu0 0
        %3537 = vmatpush1.bf16.msra.mxu0 0
        %3538 = vmatprep.subr.bf16.mxu0 0
        %3539 = vmatpush1.bf16.msra.mxu0 0
        %3540 = vmatprep.subr.bf16.mxu0 0
        %3541 = vmatpush1.bf16.msra.mxu0 0
        %3542 = vmatprep.subr.bf16.mxu0 0
        %3543 = vmatpush1.bf16.msra.mxu0 0
        %3544 = vmatprep.subr.bf16.mxu0 0
        %3545 = vmatpush1.bf16.msra.mxu0 0
        %3546 = vmatprep.subr.bf16.mxu0 0
        %3547 = vmatpush1.bf16.msra.mxu0 0
        %3548 = vmatprep.mubr.bf16.mxu0 0
        %3549 = vmatmul.mubr.bf16.gmra.mrb[0].mxu0 %v3466
        %v3550 = vpop.f32.mrb[0].mxu0
        %v3551 = vadd.f32 %v3463, %v3550
        %v3552 = vpop.f32.mrb[0].mxu0
        %v3553 = vpop.f32.mrb[0].mxu0
        %v3554 = vadd.f32 %v3463, %v3553
        %v3555 = vpop.f32.mrb[0].mxu0
        %3556 = vmatprep.mubr.bf16.mxu0 0
        %3557 = vmatmul.mubr.bf16.gmra.mrb[0].mxu0 %v3469
        %v3558 = vpop.f32.mrb[0].mxu0
        %v3559 = vadd.f32 %v3463, %v3558
        %v3560 = vpop.f32.mrb[0].mxu0
        %v3561 = vpop.f32.mrb[0].mxu0
        %v3562 = vadd.f32 %v3463, %v3561
        %v3563 = vpop.f32.mrb[0].mxu0
        %3564 = vmatprep.mubr.bf16.mxu0 0
        %3565 = vmatmul.mubr.bf16.gmra.mrb[0].mxu0 %v3472
        %v3566 = vpop.f32.mrb[0].mxu0
        %v3567 = vadd.f32 %v3463, %v3566
        %v3568 = vpop.f32.mrb[0].mxu0
        %v3569 = vpop.f32.mrb[0].mxu0
        %v3570 = vadd.f32 %v3463, %v3569
        %v3571 = vpop.f32.mrb[0].mxu0
        %3572 = vmatprep.mubr.bf16.mxu0 0
        %3573 = vmatmul.mubr.bf16.gmra.mrb[0].mxu0 %v3475
        %v3574 = vpop.f32.mrb[0].mxu0
        %v3575 = vadd.f32 %v3463, %v3574
        %v3576 = vpop.f32.mrb[0].mxu0
        %v3577 = vpop.f32.mrb[0].mxu0
        %v3578 = vadd.f32 %v3463, %v3577
        %v3579 = vpop.f32.mrb[0].mxu0
        %3580 = vmatprep.mubr.bf16.mxu0 0
        %3581 = vmatmul.mubr.bf16.gmra.mrb[0].mxu0 %v3478
        %v3582 = vpop.f32.mrb[0].mxu0
        %v3583 = vadd.f32 %v3463, %v3582
        %v3584 = vpop.f32.mrb[0].mxu0
        %v3585 = vpop.f32.mrb[0].mxu0
        %v3586 = vadd.f32 %v3463, %v3585
        %v3587 = vpop.f32.mrb[0].mxu0
        %3588 = vmatprep.mubr.bf16.mxu0 0
        %3589 = vmatmul.mubr.bf16.gmra.mrb[0].mxu0 %v3481
        %v3590 = vpop.f32.mrb[0].mxu0
        %v3591 = vadd.f32 %v3463, %v3590
        %v3592 = vpop.f32.mrb[0].mxu0
        %v3593 = vpop.f32.mrb[0].mxu0
        %v3594 = vadd.f32 %v3463, %v3593
        %v3595 = vpop.f32.mrb[0].mxu0
        %3596 = vmatprep.mubr.bf16.mxu0 0
        %3597 = vmatmul.mubr.bf16.gmra.mrb[0].mxu0 %v3484
        %v3598 = vpop.f32.mrb[0].mxu0
        %v3599 = vadd.f32 %v3463, %v3598
        %v3600 = vpop.f32.mrb[0].mxu0
        %v3601 = vpop.f32.mrb[0].mxu0
        %v3602 = vadd.f32 %v3463, %v3601
        %v3603 = vpop.f32.mrb[0].mxu0
        %3604 = vmatprep.mubr.bf16.mxu0 0
        %3605 = vmatmul.mubr.bf16.gmra.mrb[0].mxu0 %v3487
        %v3606 = vpop.f32.mrb[0].mxu0
        %v3607 = vadd.f32 %v3463, %v3606
        %v3608 = vpop.f32.mrb[0].mxu0
        %v3609 = vpop.f32.mrb[0].mxu0
        %v3610 = vadd.f32 %v3463, %v3609
        %v3611 = vpop.f32.mrb[0].mxu0
        %3612 = vmatprep.mubr.bf16.mxu0 0
        %3613 = vmatmul.mubr.bf16.gmra.mrb[0].mxu0 %v3490
        %v3614 = vpop.f32.mrb[0].mxu0
        %v3615 = vadd.f32 %v3463, %v3614
        %v3616 = vpop.f32.mrb[0].mxu0
        %v3617 = vpop.f32.mrb[0].mxu0
        %v3618 = vadd.f32 %v3463, %v3617
        %v3619 = vpop.f32.mrb[0].mxu0
        %3620 = vmatprep.mubr.bf16.mxu0 0
        %3621 = vmatmul.mubr.bf16.gmra.mrb[0].mxu0 %v3493
        %v3622 = vpop.f32.mrb[0].mxu0
        %v3623 = vadd.f32 %v3463, %v3622
        %v3624 = vpop.f32.mrb[0].mxu0
        %v3625 = vpop.f32.mrb[0].mxu0
        %v3626 = vadd.f32 %v3463, %v3625
        %v3627 = vpop.f32.mrb[0].mxu0
        %3628 = vmatprep.mubr.bf16.mxu0 0
        %3629 = vmatmul.mubr.bf16.gmra.mrb[0].mxu0 %v3496
        %v3630 = vpop.f32.mrb[0].mxu0
        %v3631 = vadd.f32 %v3463, %v3630
        %v3632 = vpop.f32.mrb[0].mxu0
        %v3633 = vpop.f32.mrb[0].mxu0
        %v3634 = vadd.f32 %v3463, %v3633
        %v3635 = vpop.f32.mrb[0].mxu0
        %3636 = vmatprep.mubr.bf16.mxu0 0
        %3637 = vmatmul.mubr.bf16.gmra.mrb[0].mxu0 %v3499
        %v3638 = vpop.f32.mrb[0].mxu0
        %v3639 = vadd.f32 %v3463, %v3638
        %v3640 = vpop.f32.mrb[0].mxu0
        %v3641 = vpop.f32.mrb[0].mxu0
        %v3642 = vadd.f32 %v3463, %v3641
        %v3643 = vpop.f32.mrb[0].mxu0
        %3644 = vmatprep.mubr.bf16.mxu0 0
        %3645 = vmatmul.mubr.bf16.gmra.mrb[0].mxu0 %v3502
        %v3646 = vpop.f32.mrb[0].mxu0
        %v3647 = vadd.f32 %v3463, %v3646
        %v3648 = vpop.f32.mrb[0].mxu0
        %v3649 = vpop.f32.mrb[0].mxu0
        %v3650 = vadd.f32 %v3463, %v3649
        %v3651 = vpop.f32.mrb[0].mxu0
        %3652 = vmatprep.mubr.bf16.mxu0 0
        %3653 = vmatmul.mubr.bf16.gmra.mrb[0].mxu0 %v3505
        %v3654 = vpop.f32.mrb[0].mxu0
        %v3655 = vadd.f32 %v3463, %v3654
        %v3656 = vpop.f32.mrb[0].mxu0
        %v3657 = vpop.f32.mrb[0].mxu0
        %v3658 = vadd.f32 %v3463, %v3657
        %v3659 = vpop.f32.mrb[0].mxu0
        %3660 = vmatprep.mubr.bf16.mxu0 0
        %3661 = vmatmul.mubr.bf16.gmra.mrb[0].mxu0 %v3508
        %v3662 = vpop.f32.mrb[0].mxu0
        %v3663 = vadd.f32 %v3463, %v3662
        %v3664 = vpop.f32.mrb[0].mxu0
        %v3665 = vpop.f32.mrb[0].mxu0
        %v3666 = vadd.f32 %v3463, %v3665
        %v3667 = vpop.f32.mrb[0].mxu0
        %3668 = vmatprep.mubr.bf16.mxu0 0
        %3669 = vmatmul.mubr.bf16.gmra.mrb[0].mxu0 %v3511
        %v3670 = vpop.f32.mrb[0].mxu0
        %v3671 = vadd.f32 %v3463, %v3670
        %v3672 = vpop.f32.mrb[0].mxu0
        %v3673 = vpop.f32.mrb[0].mxu0
        %v3674 = vadd.f32 %v3463, %v3673
        %v3675 = vpop.f32.mrb[0].mxu0
        %3676 = vdwg.mxu0
        %v3677 = vld [vmem:[%s7] sm:$0x3]
        %v3678 = vld [vmem:[%s8] sm:$0x1]
        %v3680 = vlaneseq
        %v3681 = vshrl.u32 %v3680, 7
        %v3682 = vsub.s32 0, %v3681
        %v3683 = vrot.slane %v3678, %v3682
        %v3686 = vsel %vm501, %v3677, 0
        %3688 = vmatprep.subr.bf16.mxu0 0
        %3689 = vmatpush1.bf16.msra.mxu0 %v3686
        %3690 = vmatprep.subr.bf16.mxu0 0
        %3691 = vmatpush1.bf16.msra.mxu0 0
        %3692 = vmatprep.subr.bf16.mxu0 0
        %3693 = vmatpush1.bf16.msra.mxu0 0
        %3694 = vmatprep.subr.bf16.mxu0 0
        %3695 = vmatpush1.bf16.msra.mxu0 0
        %3696 = vmatprep.subr.bf16.mxu0 0
        %3697 = vmatpush1.bf16.msra.mxu0 0
        %3698 = vmatprep.subr.bf16.mxu0 0
        %3699 = vmatpush1.bf16.msra.mxu0 0
        %3700 = vmatprep.subr.bf16.mxu0 0
        %3701 = vmatpush1.bf16.msra.mxu0 0
        %3702 = vmatprep.subr.bf16.mxu0 0
        %3703 = vmatpush1.bf16.msra.mxu0 0
        %3704 = vmatprep.subr.bf16.mxu0 0
        %3705 = vmatpush1.bf16.msra.mxu0 0
        %3706 = vmatprep.subr.bf16.mxu0 0
        %3707 = vmatpush1.bf16.msra.mxu0 0
        %3708 = vmatprep.subr.bf16.mxu0 0
        %3709 = vmatpush1.bf16.msra.mxu0 0
        %3710 = vmatprep.subr.bf16.mxu0 0
        %3711 = vmatpush1.bf16.msra.mxu0 0
        %3712 = vmatprep.subr.bf16.mxu0 0
        %3713 = vmatpush1.bf16.msra.mxu0 0
        %3714 = vmatprep.subr.bf16.mxu0 0
        %3715 = vmatpush1.bf16.msra.mxu0 0
        %3716 = vmatprep.subr.bf16.mxu0 0
        %3717 = vmatpush1.bf16.msra.mxu0 0
        %3718 = vmatprep.subr.bf16.mxu0 0
        %3719 = vmatpush1.bf16.msra.mxu0 0
        %3720 = vmatprep.mubr.bf16.mxu0 0
        %3721 = vmatmul.mubr.bf16.gmra.mrb[0].mxu0 %v454
        %v3722 = vpop.f32.mrb[0].mxu0
        %v3723 = vadd.f32 %v3683, %v3722
        %v3724 = vpop.f32.mrb[0].mxu0
        %v3725 = vpop.f32.mrb[0].mxu0
        %v3726 = vadd.f32 %v3683, %v3725
        %v3727 = vpop.f32.mrb[0].mxu0
        %3728 = vmatprep.mubr.bf16.mxu0 0
        %3729 = vmatmul.mubr.bf16.gmra.mrb[0].mxu0 %v457
        %v3730 = vpop.f32.mrb[0].mxu0
        %v3731 = vadd.f32 %v3683, %v3730
        %v3732 = vpop.f32.mrb[0].mxu0
        %v3733 = vpop.f32.mrb[0].mxu0
        %v3734 = vadd.f32 %v3683, %v3733
        %v3735 = vpop.f32.mrb[0].mxu0
        %3736 = vmatprep.mubr.bf16.mxu0 0
        %3737 = vmatmul.mubr.bf16.gmra.mrb[0].mxu0 %v460
        %v3738 = vpop.f32.mrb[0].mxu0
        %v3739 = vadd.f32 %v3683, %v3738
        %v3740 = vpop.f32.mrb[0].mxu0
        %v3741 = vpop.f32.mrb[0].mxu0
        %v3742 = vadd.f32 %v3683, %v3741
        %v3743 = vpop.f32.mrb[0].mxu0
        %3744 = vmatprep.mubr.bf16.mxu0 0
        %3745 = vmatmul.mubr.bf16.gmra.mrb[0].mxu0 %v463
        %v3746 = vpop.f32.mrb[0].mxu0
        %v3747 = vadd.f32 %v3683, %v3746
        %v3748 = vpop.f32.mrb[0].mxu0
        %v3749 = vpop.f32.mrb[0].mxu0
        %v3750 = vadd.f32 %v3683, %v3749
        %v3751 = vpop.f32.mrb[0].mxu0
        %3752 = vmatprep.mubr.bf16.mxu0 0
        %3753 = vmatmul.mubr.bf16.gmra.mrb[0].mxu0 %v466
        %v3754 = vpop.f32.mrb[0].mxu0
        %v3755 = vadd.f32 %v3683, %v3754
        %v3756 = vpop.f32.mrb[0].mxu0
        %v3757 = vpop.f32.mrb[0].mxu0
        %v3758 = vadd.f32 %v3683, %v3757
        %v3759 = vpop.f32.mrb[0].mxu0
        %3760 = vmatprep.mubr.bf16.mxu0 0
        %3761 = vmatmul.mubr.bf16.gmra.mrb[0].mxu0 %v469
        %v3762 = vpop.f32.mrb[0].mxu0
        %v3763 = vadd.f32 %v3683, %v3762
        %v3764 = vpop.f32.mrb[0].mxu0
        %v3765 = vpop.f32.mrb[0].mxu0
        %v3766 = vadd.f32 %v3683, %v3765
        %v3767 = vpop.f32.mrb[0].mxu0
        %3768 = vmatprep.mubr.bf16.mxu0 0
        %3769 = vmatmul.mubr.bf16.gmra.mrb[0].mxu0 %v472
        %v3770 = vpop.f32.mrb[0].mxu0
        %v3771 = vadd.f32 %v3683, %v3770
        %v3772 = vpop.f32.mrb[0].mxu0
        %v3773 = vpop.f32.mrb[0].mxu0
        %v3774 = vadd.f32 %v3683, %v3773
        %v3775 = vpop.f32.mrb[0].mxu0
        %3776 = vmatprep.mubr.bf16.mxu0 0
        %3777 = vmatmul.mubr.bf16.gmra.mrb[0].mxu0 %v475
        %v3778 = vpop.f32.mrb[0].mxu0
        %v3779 = vadd.f32 %v3683, %v3778
        %v3780 = vpop.f32.mrb[0].mxu0
        %v3781 = vpop.f32.mrb[0].mxu0
        %v3782 = vadd.f32 %v3683, %v3781
        %v3783 = vpop.f32.mrb[0].mxu0
        %3784 = vmatprep.mubr.bf16.mxu0 0
        %3785 = vmatmul.mubr.bf16.gmra.mrb[0].mxu0 %v478
        %v3786 = vpop.f32.mrb[0].mxu0
        %v3787 = vadd.f32 %v3683, %v3786
        %v3788 = vpop.f32.mrb[0].mxu0
        %v3789 = vpop.f32.mrb[0].mxu0
        %v3790 = vadd.f32 %v3683, %v3789
        %v3791 = vpop.f32.mrb[0].mxu0
        %3792 = vmatprep.mubr.bf16.mxu0 0
        %3793 = vmatmul.mubr.bf16.gmra.mrb[0].mxu0 %v481
        %v3794 = vpop.f32.mrb[0].mxu0
        %v3795 = vadd.f32 %v3683, %v3794
        %v3796 = vpop.f32.mrb[0].mxu0
        %v3797 = vpop.f32.mrb[0].mxu0
        %v3798 = vadd.f32 %v3683, %v3797
        %v3799 = vpop.f32.mrb[0].mxu0
        %3800 = vmatprep.mubr.bf16.mxu0 0
        %3801 = vmatmul.mubr.bf16.gmra.mrb[0].mxu0 %v484
        %v3802 = vpop.f32.mrb[0].mxu0
        %v3803 = vadd.f32 %v3683, %v3802
        %v3804 = vpop.f32.mrb[0].mxu0
        %v3805 = vpop.f32.mrb[0].mxu0
        %v3806 = vadd.f32 %v3683, %v3805
        %v3807 = vpop.f32.mrb[0].mxu0
        %3808 = vmatprep.mubr.bf16.mxu0 0
        %3809 = vmatmul.mubr.bf16.gmra.mrb[0].mxu0 %v487
        %v3810 = vpop.f32.mrb[0].mxu0
        %v3811 = vadd.f32 %v3683, %v3810
        %v3812 = vpop.f32.mrb[0].mxu0
        %v3813 = vpop.f32.mrb[0].mxu0
        %v3814 = vadd.f32 %v3683, %v3813
        %v3815 = vpop.f32.mrb[0].mxu0
        %3816 = vmatprep.mubr.bf16.mxu0 0
        %3817 = vmatmul.mubr.bf16.gmra.mrb[0].mxu0 %v490
        %v3818 = vpop.f32.mrb[0].mxu0
        %v3819 = vadd.f32 %v3683, %v3818
        %v3820 = vpop.f32.mrb[0].mxu0
        %v3821 = vpop.f32.mrb[0].mxu0
        %v3822 = vadd.f32 %v3683, %v3821
        %v3823 = vpop.f32.mrb[0].mxu0
        %3824 = vmatprep.mubr.bf16.mxu0 0
        %3825 = vmatmul.mubr.bf16.gmra.mrb[0].mxu0 %v493
        %v3826 = vpop.f32.mrb[0].mxu0
        %v3827 = vadd.f32 %v3683, %v3826
        %v3828 = vpop.f32.mrb[0].mxu0
        %v3829 = vpop.f32.mrb[0].mxu0
        %v3830 = vadd.f32 %v3683, %v3829
        %v3831 = vpop.f32.mrb[0].mxu0
        %3832 = vmatprep.mubr.bf16.mxu0 0
        %3833 = vmatmul.mubr.bf16.gmra.mrb[0].mxu0 %v496
        %v3834 = vpop.f32.mrb[0].mxu0
        %v3835 = vadd.f32 %v3683, %v3834
        %v3836 = vpop.f32.mrb[0].mxu0
        %v3837 = vpop.f32.mrb[0].mxu0
        %v3838 = vadd.f32 %v3683, %v3837
        %v3839 = vpop.f32.mrb[0].mxu0
        %3840 = vmatprep.mubr.bf16.mxu0 0
        %3841 = vmatmul.mubr.bf16.gmra.mrb[0].mxu0 %v499
        %v3842 = vpop.f32.mrb[0].mxu0
        %v3843 = vadd.f32 %v3683, %v3842
        %v3844 = vpop.f32.mrb[0].mxu0
        %v3845 = vpop.f32.mrb[0].mxu0
        %v3846 = vadd.f32 %v3683, %v3845
        %v3847 = vpop.f32.mrb[0].mxu0
        %3848 = vdwg.mxu0
        %v3849 = vadd.f32 %v3551, %v3723
        %v3850 = vadd.f32 %v3554, %v3726
        %v3851 = vadd.f32 %v3559, %v3731
        %v3852 = vadd.f32 %v3562, %v3734
        %v3853 = vadd.f32 %v3567, %v3739
        %v3854 = vadd.f32 %v3570, %v3742
        %v3855 = vadd.f32 %v3575, %v3747
        %v3856 = vadd.f32 %v3578, %v3750
        %v3857 = vadd.f32 %v3583, %v3755
        %v3858 = vadd.f32 %v3586, %v3758
        %v3859 = vadd.f32 %v3591, %v3763
        %v3860 = vadd.f32 %v3594, %v3766
        %v3861 = vadd.f32 %v3599, %v3771
        %v3862 = vadd.f32 %v3602, %v3774
        %v3863 = vadd.f32 %v3607, %v3779
        %v3864 = vadd.f32 %v3610, %v3782
        %v3865 = vadd.f32 %v3615, %v3787
        %v3866 = vadd.f32 %v3618, %v3790
        %v3867 = vadd.f32 %v3623, %v3795
        %v3868 = vadd.f32 %v3626, %v3798
        %v3869 = vadd.f32 %v3631, %v3803
        %v3870 = vadd.f32 %v3634, %v3806
        %v3871 = vadd.f32 %v3639, %v3811
        %v3872 = vadd.f32 %v3642, %v3814
        %v3873 = vadd.f32 %v3647, %v3819
        %v3874 = vadd.f32 %v3650, %v3822
        %v3875 = vadd.f32 %v3655, %v3827
        %v3876 = vadd.f32 %v3658, %v3830
        %v3877 = vadd.f32 %v3663, %v3835
        %v3878 = vadd.f32 %v3666, %v3838
        %v3879 = vadd.f32 %v3671, %v3843
        %v3880 = vadd.f32 %v3674, %v3846
        %v3881 = vmax.f32 %v3849, 0.0
        %v3882 = vmax.f32 %v3850, 0.0
        %v3883 = vmax.f32 %v3851, 0.0
        %v3884 = vmax.f32 %v3852, 0.0
        %v3885 = vmax.f32 %v3853, 0.0
        %v3886 = vmax.f32 %v3854, 0.0
        %v3887 = vmax.f32 %v3855, 0.0
        %v3888 = vmax.f32 %v3856, 0.0
        %v3889 = vmax.f32 %v3857, 0.0
        %v3890 = vmax.f32 %v3858, 0.0
        %v3891 = vmax.f32 %v3859, 0.0
        %v3892 = vmax.f32 %v3860, 0.0
        %v3893 = vmax.f32 %v3861, 0.0
        %v3894 = vmax.f32 %v3862, 0.0
        %v3895 = vmax.f32 %v3863, 0.0
        %v3896 = vmax.f32 %v3864, 0.0
        %v3897 = vmax.f32 %v3865, 0.0
        %v3898 = vmax.f32 %v3866, 0.0
        %v3899 = vmax.f32 %v3867, 0.0
        %v3900 = vmax.f32 %v3868, 0.0
        %v3901 = vmax.f32 %v3869, 0.0
        %v3902 = vmax.f32 %v3870, 0.0
        %v3903 = vmax.f32 %v3871, 0.0
        %v3904 = vmax.f32 %v3872, 0.0
        %v3905 = vmax.f32 %v3873, 0.0
        %v3906 = vmax.f32 %v3874, 0.0
        %v3907 = vmax.f32 %v3875, 0.0
        %v3908 = vmax.f32 %v3876, 0.0
        %v3909 = vmax.f32 %v3877, 0.0
        %v3910 = vmax.f32 %v3878, 0.0
        %v3911 = vmax.f32 %v3879, 0.0
        %v3912 = vmax.f32 %v3880, 0.0
        %vm3913 = vcmask 261120
        %3914 = vst.msk [vmem:[%s325] sm:$0xff] %vm3913, %v3881
        %3915 = vst.msk [vmem:[%s325 + $0x8] sm:$0xff] %vm3913, %v3882
        %3916 = vst.msk [vmem:[%s325 + $0x10] sm:$0xff] %vm3913, %v3883
        %3917 = vst.msk [vmem:[%s325 + $0x18] sm:$0xff] %vm3913, %v3884
        %3918 = vst.msk [vmem:[%s325 + $0x20] sm:$0xff] %vm3913, %v3885
        %3919 = vst.msk [vmem:[%s325 + $0x28] sm:$0xff] %vm3913, %v3886
        %3920 = vst.msk [vmem:[%s325 + $0x30] sm:$0xff] %vm3913, %v3887
        %3921 = vst.msk [vmem:[%s325 + $0x38] sm:$0xff] %vm3913, %v3888
        %3922 = vst.msk [vmem:[%s325 + $0x40] sm:$0xff] %vm3913, %v3889
        %3923 = vst.msk [vmem:[%s325 + $0x48] sm:$0xff] %vm3913, %v3890
        %3924 = vst.msk [vmem:[%s325 + $0x50] sm:$0xff] %vm3913, %v3891
        %3925 = vst.msk [vmem:[%s325 + $0x58] sm:$0xff] %vm3913, %v3892
        %3926 = vst.msk [vmem:[%s325 + $0x60] sm:$0xff] %vm3913, %v3893
        %3927 = vst.msk [vmem:[%s325 + $0x68] sm:$0xff] %vm3913, %v3894
        %3928 = vst.msk [vmem:[%s325 + $0x70] sm:$0xff] %vm3913, %v3895
        %3929 = vst.msk [vmem:[%s325 + $0x78] sm:$0xff] %vm3913, %v3896
        %3930 = vst.msk [vmem:[%s325 + $0x80] sm:$0xff] %vm3913, %v3897
        %3931 = vst.msk [vmem:[%s325 + $0x88] sm:$0xff] %vm3913, %v3898
        %3932 = vst.msk [vmem:[%s325 + $0x90] sm:$0xff] %vm3913, %v3899
        %3933 = vst.msk [vmem:[%s325 + $0x98] sm:$0xff] %vm3913, %v3900
        %3934 = vst.msk [vmem:[%s325 + $0xa0] sm:$0xff] %vm3913, %v3901
        %3935 = vst.msk [vmem:[%s325 + $0xa8] sm:$0xff] %vm3913, %v3902
        %3936 = vst.msk [vmem:[%s325 + $0xb0] sm:$0xff] %vm3913, %v3903
        %3937 = vst.msk [vmem:[%s325 + $0xb8] sm:$0xff] %vm3913, %v3904
        %3938 = vst.msk [vmem:[%s325 + $0xc0] sm:$0xff] %vm3913, %v3905
        %3939 = vst.msk [vmem:[%s325 + $0xc8] sm:$0xff] %vm3913, %v3906
        %3940 = vst.msk [vmem:[%s325 + $0xd0] sm:$0xff] %vm3913, %v3907
        %3941 = vst.msk [vmem:[%s325 + $0xd8] sm:$0xff] %vm3913, %v3908
        %3942 = vst.msk [vmem:[%s325 + $0xe0] sm:$0xff] %vm3913, %v3909
        %3943 = vst.msk [vmem:[%s325 + $0xe8] sm:$0xff] %vm3913, %v3910
        %3944 = vst.msk [vmem:[%s325 + $0xf0] sm:$0xff] %vm3913, %v3911
        %3945 = vst.msk [vmem:[%s325 + $0xf8] sm:$0xff] %vm3913, %v3912
        %s3946 = sand.u32 %s225, 1
        %s3947 = scalar_lea.sflag [#allocation4], %s3946
        %s3948 = sand.u32 %s225, 1
        %s3949 = smul.addr %s3948, 256
        %s3950 = scalar_lea.vmem [#allocation3], %s3949
        // Predicated region
        $region57: #{tpu_custom_call.1} parent=55 // pred_check
          %p3951 = pneg %p235
        $region58: #{tpu_custom_call.1} parent=55 // pred_check_branch
          %3953 = sbr.rel (%p3951) target = $region60
        $region59: #{tpu_custom_call.1} parent=55 // pred_region
          %s3955 = ssub.s32 4096, 4096
          %3956 = vsyncadd %s3947, %s3955
          %s3957 = smul.addr %s23, 32
          %s3958 = smul.addr %s3957, 128
          %s3959 = scalar_lea.hbm %s9, %s3958
          %s3960 = sshll.u32 %s3950, 4
          %s3961 = int_to_ptr.vmem [resolvable:$true] %s3960
          %3966 = dma.vmem_to_hbm [thread:$0]  %s3961, 4096, %s3959, %s3947, 128, 128, 8
        $region60: #{tpu_custom_call.1} parent=55 // pred_fallthru
          _
      $region56: #{tpu_custom_call.1} parent=5 // pred_fallthru
        _
      %p3967 = scmp.le.s32.totalorder 2, %s18
      // Predicated region
      $region61: #{tpu_custom_call.1} parent=5 // pred_check
        %p3968 = pneg %p3967
      $region62: #{tpu_custom_call.1} parent=5 // pred_check_branch
        %3970 = sbr.rel (%p3968) target = $region64
      $region63: #{tpu_custom_call.1} parent=5 // pred_region
        %s3971 = ssub.s32 %s18, 2
        // Predicated region
        $region65: #{tpu_custom_call.1} parent=63 // pred_check
          %p3972 = pneg %p241
        $region66: #{tpu_custom_call.1} parent=63 // pred_check_branch
          %3974 = sbr.rel (%p3972) target = $region68
        $region67: #{tpu_custom_call.1} parent=63 // pred_region
          %s3975 = sand.u32 %s226, 1
          %s3976 = scalar_lea.sflag [#allocation4], %s3975
          %s3977 = sand.u32 %s226, 1
          %s3978 = smul.addr %s3977, 256
          %s3979 = scalar_lea.vmem [#allocation3], %s3978
          %3980 = dma.done %s3976, 4096
        $region68: #{tpu_custom_call.1} parent=63 // pred_fallthru
          _
      $region64: #{tpu_custom_call.1} parent=5 // pred_fallthru
        _
    $region6: #{tpu_custom_call.1} parent=1 // loop_footer
      %s22 = sadd.s32 1, %s18
    $region7: #{tpu_custom_call.1} parent=1 // loop_footer_branch
      %17 = sbr.rel target = $region3
    $region8: #{tpu_custom_call.1} parent=1 // loop_exit
      _
    %3981 = vsyncpa [#allocation4], 1
    %s3982 = scalar_lea.sflag [#allocation4], 1
    %3983 = vsyncpa %s3982, 1

</llo_original>
